<compile_context>
chip_gen: v7x
topology: tpu7x:2x2x1
jax: 0.10.0
libtpu: 0.0.40
codegen_flags: <defaults>
</compile_context>

<pallas_src>
import functools
import math

import jax
import jax.numpy as jnp
from jax.experimental import pallas as pl
from jax.experimental.pallas import tpu as pltpu

D_MODEL = 32
N_HEADS = 4
HEAD_DIM = D_MODEL // N_HEADS
DIM_FF = 64
EPS = 1e-5

# Per-layer (unpacked) parameter names, as produced by init_layer_params().
PARAM_ORDER = (
    "sa_wq", "sa_bq", "sa_wk", "sa_bk", "sa_wv", "sa_bv", "sa_wo", "sa_bo",
    "ca_wq", "ca_bq", "ca_wk", "ca_bk", "ca_wv", "ca_bv", "ca_wo", "ca_bo",
    "w1", "b1", "w2", "b2",
    "n1w", "n1b", "n2w", "n2b", "n3w", "n3b",
)

# Packed / stacked parameter names fed to the fused kernel (leading layer axis).
PACKED_ORDER = (
    "sa_wqk", "sa_bqk", "sa_wv", "sa_bv", "sa_wo", "sa_bo",
    "ca_wq", "ca_bq", "ca_wk", "ca_bk", "ca_wv", "ca_bv", "ca_wo", "ca_bo",
    "w1", "b1", "w2", "b2",
    "n1w", "n1b", "n2w", "n2b", "n3w", "n3b",
)


def _layer_norm(x, w, b):
    mu = jnp.mean(x, axis=-1, keepdims=True)
    var = jnp.mean((x - mu) ** 2, axis=-1, keepdims=True)
    return (x - mu) * jax.lax.rsqrt(var + EPS) * w + b


def _attend(q, k, v, batch, wo, bo):
    """Multi-head scaled-dot-product attention.

    q: (batch*Lq, D), k/v: (batch*Lk, D); the 1/sqrt(head_dim) scale is already
    folded into the Q projection.  Returns (batch*Lq, D).
    """
    lq = q.shape[0] // batch
    lk = k.shape[0] // batch
    heads = []
    for h in range(N_HEADS):
        sl = slice(h * HEAD_DIM, (h + 1) * HEAD_DIM)
        qh = q[:, sl].reshape(batch, lq, HEAD_DIM)
        kh = k[:, sl].reshape(batch, lk, HEAD_DIM)
        vh = v[:, sl].reshape(batch, lk, HEAD_DIM)
        s = jnp.einsum("bqd,bkd->bqk", qh, kh,
                       preferred_element_type=jnp.float32)
        s = s - jnp.max(s, axis=-1, keepdims=True)
        p = jnp.exp(s)
        p = p * pl.reciprocal(jnp.sum(p, axis=-1, keepdims=True), approx=True)
        oh = jnp.einsum("bqk,bkd->bqd", p, vh,
                        preferred_element_type=jnp.float32)
        heads.append(oh.reshape(batch * lq, HEAD_DIM))
    attn = jnp.concatenate(heads, axis=-1)
    return jnp.dot(attn, wo, preferred_element_type=jnp.float32) + bo


def _fused_decoder_pallas(tgt2, qpos2, memk2, memv2, packed, *, batch,
                          num_layers):
    """Run all decoder layers in one pallas_call.

    tgt2/qpos2: (B*T, D); memk2 (= memory+pos) / memv2 (= memory): (B*S, D).
    packed[name]: stacked per-layer weights with a leading layer axis.
    Returns (num_layers, B*T, D): the activation after every layer.
    """
    n_rows, d = tgt2.shape
    m_rows = memk2.shape[0]
    n_w = len(PACKED_ORDER)
    weights = [packed[name] for name in PACKED_ORDER]

    def kernel(tgt_ref, qpos_ref, memk_ref, memv_ref, *rest):
        wrefs = dict(zip(PACKED_ORDER, rest[:n_w]))
        out_ref = rest[n_w]
        x_ref = rest[n_w + 1]          # VMEM carry of the activation

        def w(name):
            return wrefs[name][0]      # (1, a, b) block -> (a, b)

        layer = pl.program_id(0)

        @pl.when(layer == 0)
        def _():
            x_ref[...] = tgt_ref[...]

        x = x_ref[...]                 # (B*T, D)
        qpos = qpos_ref[...]           # (B*T, D)

        # --- self-attention: q = k = x + query_pos (fused QK proj), v = x ---
        qk_in = x + qpos
        qk = jnp.dot(qk_in, w("sa_wqk"),
                     preferred_element_type=jnp.float32) + w("sa_bqk")
        v = jnp.dot(x, w("sa_wv"),
                    preferred_element_type=jnp.float32) + w("sa_bv")
        sa = _attend(qk[:, :d], qk[:, d:], v, batch, w("sa_wo"), w("sa_bo"))
        x = _layer_norm(x + sa, w("n1w"), w("n1b"))

        # --- cross-attention: q = x + query_pos, k = memory + pos, v = memory
        q = jnp.dot(x + qpos, w("ca_wq"),
                    preferred_element_type=jnp.float32) + w("ca_bq")
        k = jnp.dot(memk_ref[...], w("ca_wk"),
                    preferred_element_type=jnp.float32) + w("ca_bk")
        v = jnp.dot(memv_ref[...], w("ca_wv"),
                    preferred_element_type=jnp.float32) + w("ca_bv")
        ca = _attend(q, k, v, batch, w("ca_wo"), w("ca_bo"))
        x = _layer_norm(x + ca, w("n2w"), w("n2b"))

        # --- FFN: linear2(relu(linear1(x))) ---
        h = jnp.maximum(
            jnp.dot(x, w("w1"), preferred_element_type=jnp.float32) + w("b1"),
            0.0)
        ff = jnp.dot(h, w("w2"),
                     preferred_element_type=jnp.float32) + w("b2")
        x = _layer_norm(x + ff, w("n3w"), w("n3b"))

        x_ref[...] = x                 # carry to next layer
        out_ref[0] = x                 # per-layer output slot

    def resident_spec(rows):
        # Constant block index across layers -> DMA'd once, stays in VMEM.
        return pl.BlockSpec((rows, d), lambda l: (0, 0))

    def weight_spec(arr):
        return pl.BlockSpec((1,) + arr.shape[1:], lambda l: (l, 0, 0))

    return pl.pallas_call(
        kernel,
        out_shape=jax.ShapeDtypeStruct((num_layers, n_rows, d), jnp.float32),
        grid_spec=pltpu.PrefetchScalarGridSpec(
            num_scalar_prefetch=0,
            grid=(num_layers,),
            in_specs=([resident_spec(n_rows), resident_spec(n_rows),
                       resident_spec(m_rows), resident_spec(m_rows)]
                      + [weight_spec(wt) for wt in weights]),
            out_specs=pl.BlockSpec((1, n_rows, d), lambda l: (l, 0, 0)),
            scratch_shapes=[pltpu.VMEM((n_rows, d), jnp.float32)],
        ),
        compiler_params=pltpu.CompilerParams(
            dimension_semantics=("arbitrary",)),
    )(tgt2, qpos2, memk2, memv2, *weights)


def pack_layer_params(layer_params):
    """Pack / pre-scale per-layer params and stack them on a leading layer axis
    so a single fused pallas_call can index them per layer."""
    scale = 1.0 / math.sqrt(HEAD_DIM)
    per_layer = []
    for p in layer_params:
        per_layer.append({
            # self-attn: q and k share the same input (x + query_pos) -> fuse;
            # fold the 1/sqrt(head_dim) scale into the q half.
            "sa_wqk": jnp.concatenate([p["sa_wq"] * scale, p["sa_wk"]], axis=1),
            "sa_bqk": jnp.concatenate([p["sa_bq"] * scale, p["sa_bk"]], axis=1),
            "sa_wv": p["sa_wv"], "sa_bv": p["sa_bv"],
            "sa_wo": p["sa_wo"], "sa_bo": p["sa_bo"],
            "ca_wq": p["ca_wq"] * scale, "ca_bq": p["ca_bq"] * scale,
            "ca_wk": p["ca_wk"], "ca_bk": p["ca_bk"],
            "ca_wv": p["ca_wv"], "ca_bv": p["ca_bv"],
            "ca_wo": p["ca_wo"], "ca_bo": p["ca_bo"],
            "w1": p["w1"], "b1": p["b1"], "w2": p["w2"], "b2": p["b2"],
            "n1w": p["n1w"], "n1b": p["n1b"],
            "n2w": p["n2w"], "n2b": p["n2b"],
            "n3w": p["n3w"], "n3b": p["n3b"],
        })
    return {name: jnp.stack([d[name] for d in per_layer], axis=0)
            for name in PACKED_ORDER}


@functools.partial(jax.jit, static_argnames=("return_intermediate",))
def transformer_decoder(tgt, memory, layer_params, query_pos, pos,
                        norm_params=None, return_intermediate=False):
    """tgt/query_pos: (T, B, D); memory/pos: (S, B, D). Returns (1, T, B, D)
    or (num_layers, T, B, D) when return_intermediate=True."""
    t_len, b, d = tgt.shape
    num_layers = len(layer_params)

    packed = pack_layer_params(layer_params)

    def flat(x):  # (L, B, D) seq-first -> (B*L, D) batch-major rows
        return jnp.transpose(x, (1, 0, 2)).reshape(-1, d)

    out_all = _fused_decoder_pallas(
        flat(tgt), flat(query_pos), flat(memory + pos), flat(memory),
        packed, batch=b, num_layers=num_layers)

    # (L, B*T, D) -> (L, T, B, D)
    out_all = jnp.transpose(out_all.reshape(num_layers, b, t_len, d),
                            (0, 2, 1, 3))

    if norm_params is not None:
        nw, nb = norm_params
        if return_intermediate:
            return _layer_norm(out_all, nw, nb)
        return _layer_norm(out_all[-1], nw, nb)[None]
    if return_intermediate:
        return out_all
    return out_all[-1][None]


def param_shapes():
    D, F = D_MODEL, DIM_FF
    s = {}
    for pfx in ("sa", "ca"):
        for n in ("wq", "wk", "wv", "wo"):
            s[f"{pfx}_{n}"] = (D, D)
        for n in ("bq", "bk", "bv", "bo"):
            s[f"{pfx}_{n}"] = (1, D)
    s["w1"], s["b1"] = (D, F), (1, F)
    s["w2"], s["b2"] = (F, D), (1, D)
    for i in (1, 2, 3):
        s[f"n{i}w"] = (1, D)
        s[f"n{i}b"] = (1, D)
    return s


def init_layer_params(key):
    shapes = param_shapes()
    keys = jax.random.split(key, len(PARAM_ORDER))
    params = {}
    for name, k in zip(PARAM_ORDER, keys):
        shp = shapes[name]
        if name in ("n1w", "n2w", "n3w"):
            params[name] = jnp.ones(shp, jnp.float32)          # LayerNorm weight
        elif name in ("n1b", "n2b", "n3b"):
            params[name] = jnp.zeros(shp, jnp.float32)         # LayerNorm bias
        elif name.startswith("w") or "_w" in name:
            fan_in = shp[0]
            params[name] = (jax.random.normal(k, shp, jnp.float32)
                            * (1.0 / math.sqrt(fan_in)))
        else:  # linear biases
            params[name] = jax.random.normal(k, shp, jnp.float32) * 0.01
    return params


if __name__ == "__main__":
    B, T, S, D = 2, 8, 16, D_MODEL
    num_layers = 2

    key = jax.random.PRNGKey(0)
    k_tgt, k_mem, k_qp, k_pos, k_params = jax.random.split(key, 5)

    tgt = jax.random.normal(k_tgt, (T, B, D), jnp.float32)
    memory = jax.random.normal(k_mem, (S, B, D), jnp.float32)
    query_pos = jax.random.normal(k_qp, (T, B, D), jnp.float32)
    pos = jax.random.normal(k_pos, (S, B, D), jnp.float32)

    layer_keys = jax.random.split(k_params, num_layers)
    layer_params = [init_layer_params(k) for k in layer_keys]
    norm_params = (jnp.ones((1, D), jnp.float32), jnp.zeros((1, D), jnp.float32))

    out = transformer_decoder(tgt, memory, layer_params, query_pos, pos,
                              norm_params=norm_params,
                              return_intermediate=False)
    out = jax.block_until_ready(out)
    assert out.shape == (1, T, B, D), out.shape
    assert jnp.all(jnp.isfinite(out))
    print("KERNEL_OK")
</pallas_src>

<mosaic_0001>
module attributes {stable_mosaic.version = 11 : i64} {
  func.func @kernel(%arg0: i32, %arg1: memref<16x32xf32, #tpu.memory_space<vmem>>, %arg2: memref<16x32xf32, #tpu.memory_space<vmem>>, %arg3: memref<32x32xf32, #tpu.memory_space<vmem>>, %arg4: memref<32x32xf32, #tpu.memory_space<vmem>>, %arg5: memref<1x32x64xf32, #tpu.memory_space<vmem>>, %arg6: memref<1x1x64xf32, #tpu.memory_space<vmem>>, %arg7: memref<1x32x32xf32, #tpu.memory_space<vmem>>, %arg8: memref<1x1x32xf32, #tpu.memory_space<vmem>>, %arg9: memref<1x32x32xf32, #tpu.memory_space<vmem>>, %arg10: memref<1x1x32xf32, #tpu.memory_space<vmem>>, %arg11: memref<1x32x32xf32, #tpu.memory_space<vmem>>, %arg12: memref<1x1x32xf32, #tpu.memory_space<vmem>>, %arg13: memref<1x32x32xf32, #tpu.memory_space<vmem>>, %arg14: memref<1x1x32xf32, #tpu.memory_space<vmem>>, %arg15: memref<1x32x32xf32, #tpu.memory_space<vmem>>, %arg16: memref<1x1x32xf32, #tpu.memory_space<vmem>>, %arg17: memref<1x32x32xf32, #tpu.memory_space<vmem>>, %arg18: memref<1x1x32xf32, #tpu.memory_space<vmem>>, %arg19: memref<1x32x64xf32, #tpu.memory_space<vmem>>, %arg20: memref<1x1x64xf32, #tpu.memory_space<vmem>>, %arg21: memref<1x64x32xf32, #tpu.memory_space<vmem>>, %arg22: memref<1x1x32xf32, #tpu.memory_space<vmem>>, %arg23: memref<1x1x32xf32, #tpu.memory_space<vmem>>, %arg24: memref<1x1x32xf32, #tpu.memory_space<vmem>>, %arg25: memref<1x1x32xf32, #tpu.memory_space<vmem>>, %arg26: memref<1x1x32xf32, #tpu.memory_space<vmem>>, %arg27: memref<1x1x32xf32, #tpu.memory_space<vmem>>, %arg28: memref<1x1x32xf32, #tpu.memory_space<vmem>>, %arg29: memref<1x16x32xf32, #tpu.memory_space<vmem>>, %arg30: memref<16x32xf32, #tpu.memory_space<vmem>>) attributes {dimension_semantics = [#tpu.dimension_semantics<arbitrary>], iteration_bounds = array<i64: 2>, scalar_prefetch = 0 : i64, scratch_operands = 1 : i64, tpu.core_type = #tpu.core_type<tc>, window_params = [{pipeline_mode = #tpu.pipeline_mode<synchronous>, transform_indices = @transform_0, window_bounds = array<i64: 16, 32>}, {pipeline_mode = #tpu.pipeline_mode<synchronous>, transform_indices = @transform_1, window_bounds = array<i64: 16, 32>}, {pipeline_mode = #tpu.pipeline_mode<synchronous>, transform_indices = @transform_2, window_bounds = array<i64: 32, 32>}, {pipeline_mode = #tpu.pipeline_mode<synchronous>, transform_indices = @transform_3, window_bounds = array<i64: 32, 32>}, {transform_indices = @transform_4, window_bounds = array<i64: 1, 32, 64>}, {transform_indices = @transform_5, window_bounds = array<i64: 1, 1, 64>}, {transform_indices = @transform_6, window_bounds = array<i64: 1, 32, 32>}, {transform_indices = @transform_7, window_bounds = array<i64: 1, 1, 32>}, {transform_indices = @transform_8, window_bounds = array<i64: 1, 32, 32>}, {transform_indices = @transform_9, window_bounds = array<i64: 1, 1, 32>}, {transform_indices = @transform_10, window_bounds = array<i64: 1, 32, 32>}, {transform_indices = @transform_11, window_bounds = array<i64: 1, 1, 32>}, {transform_indices = @transform_12, window_bounds = array<i64: 1, 32, 32>}, {transform_indices = @transform_13, window_bounds = array<i64: 1, 1, 32>}, {transform_indices = @transform_14, window_bounds = array<i64: 1, 32, 32>}, {transform_indices = @transform_15, window_bounds = array<i64: 1, 1, 32>}, {transform_indices = @transform_16, window_bounds = array<i64: 1, 32, 32>}, {transform_indices = @transform_17, window_bounds = array<i64: 1, 1, 32>}, {transform_indices = @transform_18, window_bounds = array<i64: 1, 32, 64>}, {transform_indices = @transform_19, window_bounds = array<i64: 1, 1, 64>}, {transform_indices = @transform_20, window_bounds = array<i64: 1, 64, 32>}, {transform_indices = @transform_21, window_bounds = array<i64: 1, 1, 32>}, {transform_indices = @transform_22, window_bounds = array<i64: 1, 1, 32>}, {transform_indices = @transform_23, window_bounds = array<i64: 1, 1, 32>}, {transform_indices = @transform_24, window_bounds = array<i64: 1, 1, 32>}, {transform_indices = @transform_25, window_bounds = array<i64: 1, 1, 32>}, {transform_indices = @transform_26, window_bounds = array<i64: 1, 1, 32>}, {transform_indices = @transform_27, window_bounds = array<i64: 1, 1, 32>}, {transform_indices = @transform_28, window_bounds = array<i64: 1, 16, 32>}]} {
    %c0_i32 = arith.constant 0 : i32
    %0 = arith.cmpi eq, %arg0, %c0_i32 : i32
    %1 = arith.extui %0 : i1 to i32
    %c0_i32_0 = arith.constant 0 : i32
    %2 = arith.cmpi ne, %1, %c0_i32_0 : i32
    scf.if %2 {
      %c0_141 = arith.constant 0 : index
      %c0_142 = arith.constant 0 : index
      %315 = vector.load %arg1[%c0_141, %c0_142] : memref<16x32xf32, #tpu.memory_space<vmem>>, vector<16x32xf32>
      %c0_143 = arith.constant 0 : index
      %c0_144 = arith.constant 0 : index
      %316 = vector.load %arg30[%c0_143, %c0_144] : memref<16x32xf32, #tpu.memory_space<vmem>>, vector<16x32xf32>
      tpu.vector_store %arg30[%c0_143, %c0_144], %315 {strides = array<i32>} : memref<16x32xf32, #tpu.memory_space<vmem>>, vector<16x32xf32>,
    } else {
    }
    %c0 = arith.constant 0 : index
    %c0_1 = arith.constant 0 : index
    %3 = vector.load %arg30[%c0, %c0_1] : memref<16x32xf32, #tpu.memory_space<vmem>>, vector<16x32xf32>
    %c0_2 = arith.constant 0 : index
    %c0_3 = arith.constant 0 : index
    %4 = vector.load %arg2[%c0_2, %c0_3] : memref<16x32xf32, #tpu.memory_space<vmem>>, vector<16x32xf32>
    %5 = arith.addf %3, %4 : vector<16x32xf32>
    %c0_4 = arith.constant 0 : index
    %c0_5 = arith.constant 0 : index
    %c0_6 = arith.constant 0 : index
    %6 = vector.load %arg5[%c0_4, %c0_5, %c0_6] : memref<1x32x64xf32, #tpu.memory_space<vmem>>, vector<1x32x64xf32>
    %7 = vector.shape_cast %6 : vector<1x32x64xf32> to vector<32x64xf32>
    %cst = arith.constant dense<0.000000e+00> : vector<16x64xf32>
    %8 = tpu.matmul %5, %7, %cst {dimension_numbers = #tpu.dot_dimension_numbers<[1], [0], [0], [1], [0, 0, 1, 1], [], []>} : vector<16x32xf32>, vector<32x64xf32>, vector<16x64xf32> -> vector<16x64xf32>
    %c0_7 = arith.constant 0 : index
    %c0_8 = arith.constant 0 : index
    %c0_9 = arith.constant 0 : index
    %9 = vector.load %arg6[%c0_7, %c0_8, %c0_9] : memref<1x1x64xf32, #tpu.memory_space<vmem>>, vector<1x1x64xf32>
    %10 = vector.shape_cast %9 : vector<1x1x64xf32> to vector<1x64xf32>
    %11 = vector.broadcast %10 : vector<1x64xf32> to vector<16x64xf32>
    %12 = arith.addf %8, %11 : vector<16x64xf32>
    %c0_10 = arith.constant 0 : index
    %c0_11 = arith.constant 0 : index
    %c0_12 = arith.constant 0 : index
    %13 = vector.load %arg7[%c0_10, %c0_11, %c0_12] : memref<1x32x32xf32, #tpu.memory_space<vmem>>, vector<1x32x32xf32>
    %14 = vector.shape_cast %13 : vector<1x32x32xf32> to vector<32x32xf32>
    %cst_13 = arith.constant dense<0.000000e+00> : vector<16x32xf32>
    %15 = tpu.matmul %3, %14, %cst_13 {dimension_numbers = #tpu.dot_dimension_numbers<[1], [0], [0], [1], [0, 0, 1, 1], [], []>} : vector<16x32xf32>, vector<32x32xf32>, vector<16x32xf32> -> vector<16x32xf32>
    %c0_14 = arith.constant 0 : index
    %c0_15 = arith.constant 0 : index
    %c0_16 = arith.constant 0 : index
    %16 = vector.load %arg8[%c0_14, %c0_15, %c0_16] : memref<1x1x32xf32, #tpu.memory_space<vmem>>, vector<1x1x32xf32>
    %17 = vector.shape_cast %16 : vector<1x1x32xf32> to vector<1x32xf32>
    %18 = vector.broadcast %17 : vector<1x32xf32> to vector<16x32xf32>
    %19 = arith.addf %15, %18 : vector<16x32xf32>
    %20 = vector.extract_strided_slice %12 {offsets = [0, 0], sizes = [16, 32], strides = [1, 1]} : vector<16x64xf32> to vector<16x32xf32>
    %21 = vector.extract_strided_slice %12 {offsets = [0, 32], sizes = [16, 32], strides = [1, 1]} : vector<16x64xf32> to vector<16x32xf32>
    %c0_17 = arith.constant 0 : index
    %c0_18 = arith.constant 0 : index
    %c0_19 = arith.constant 0 : index
    %22 = vector.load %arg9[%c0_17, %c0_18, %c0_19] : memref<1x32x32xf32, #tpu.memory_space<vmem>>, vector<1x32x32xf32>
    %23 = vector.shape_cast %22 : vector<1x32x32xf32> to vector<32x32xf32>
    %c0_20 = arith.constant 0 : index
    %c0_21 = arith.constant 0 : index
    %c0_22 = arith.constant 0 : index
    %24 = vector.load %arg10[%c0_20, %c0_21, %c0_22] : memref<1x1x32xf32, #tpu.memory_space<vmem>>, vector<1x1x32xf32>
    %25 = vector.shape_cast %24 : vector<1x1x32xf32> to vector<1x32xf32>
    %26 = vector.extract_strided_slice %20 {offsets = [0, 0], sizes = [16, 8], strides = [1, 1]} : vector<16x32xf32> to vector<16x8xf32>
    %27 = vector.shape_cast %26 : vector<16x8xf32> to vector<2x8x8xf32>
    %28 = vector.extract_strided_slice %21 {offsets = [0, 0], sizes = [16, 8], strides = [1, 1]} : vector<16x32xf32> to vector<16x8xf32>
    %29 = vector.shape_cast %28 : vector<16x8xf32> to vector<2x8x8xf32>
    %30 = vector.extract_strided_slice %19 {offsets = [0, 0], sizes = [16, 8], strides = [1, 1]} : vector<16x32xf32> to vector<16x8xf32>
    %31 = vector.shape_cast %30 : vector<16x8xf32> to vector<2x8x8xf32>
    "tpu.trace_start"() <{level = 10 : i32, message = "bqd,bkd->bqk"}> : () -> ()
    %cst_23 = arith.constant dense<0.000000e+00> : vector<2x8x8xf32>
    %32 = tpu.matmul %27, %29, %cst_23 {dimension_numbers = #tpu.dot_dimension_numbers<[2], [2], [1], [1], [0, 0, 0, 1, 1, 1], [0], [0]>} : vector<2x8x8xf32>, vector<2x8x8xf32>, vector<2x8x8xf32> -> vector<2x8x8xf32>
    "tpu.trace_stop"() : () -> ()
    %cst_24 = arith.constant dense<0xFF800000> : vector<2x8xf32>
    %33 = vector.multi_reduction <maximumf>, %32, %cst_24 [2] : vector<2x8x8xf32> to vector<2x8xf32>
    %34 = vector.shape_cast %33 : vector<2x8xf32> to vector<2x8x1xf32>
    %35 = vector.broadcast %34 : vector<2x8x1xf32> to vector<2x8x8xf32>
    %36 = arith.subf %32, %35 : vector<2x8x8xf32>
    %37 = math.exp %36 : vector<2x8x8xf32>
    %cst_25 = arith.constant dense<0.000000e+00> : vector<2x8xf32>
    %38 = vector.multi_reduction <add>, %37, %cst_25 [2] : vector<2x8x8xf32> to vector<2x8xf32>
    %39 = vector.shape_cast %38 : vector<2x8xf32> to vector<2x8x1xf32>
    %40 = tpu.reciprocal %39 {approx = true} : vector<2x8x1xf32> -> vector<2x8x1xf32>
    %41 = vector.broadcast %40 : vector<2x8x1xf32> to vector<2x8x8xf32>
    %42 = arith.mulf %37, %41 : vector<2x8x8xf32>
    "tpu.trace_start"() <{level = 10 : i32, message = "bqk,bkd->bqd"}> : () -> ()
    %cst_26 = arith.constant dense<0.000000e+00> : vector<2x8x8xf32>
    %43 = tpu.matmul %42, %31, %cst_26 {dimension_numbers = #tpu.dot_dimension_numbers<[2], [1], [1], [2], [0, 0, 0, 1, 1, 2], [0], [0]>} : vector<2x8x8xf32>, vector<2x8x8xf32>, vector<2x8x8xf32> -> vector<2x8x8xf32>
    "tpu.trace_stop"() : () -> ()
    %44 = vector.shape_cast %43 : vector<2x8x8xf32> to vector<16x8xf32>
    %45 = vector.extract_strided_slice %20 {offsets = [0, 8], sizes = [16, 8], strides = [1, 1]} : vector<16x32xf32> to vector<16x8xf32>
    %46 = vector.shape_cast %45 : vector<16x8xf32> to vector<2x8x8xf32>
    %47 = vector.extract_strided_slice %21 {offsets = [0, 8], sizes = [16, 8], strides = [1, 1]} : vector<16x32xf32> to vector<16x8xf32>
    %48 = vector.shape_cast %47 : vector<16x8xf32> to vector<2x8x8xf32>
    %49 = vector.extract_strided_slice %19 {offsets = [0, 8], sizes = [16, 8], strides = [1, 1]} : vector<16x32xf32> to vector<16x8xf32>
    %50 = vector.shape_cast %49 : vector<16x8xf32> to vector<2x8x8xf32>
    "tpu.trace_start"() <{level = 10 : i32, message = "bqd,bkd->bqk"}> : () -> ()
    %cst_27 = arith.constant dense<0.000000e+00> : vector<2x8x8xf32>
    %51 = tpu.matmul %46, %48, %cst_27 {dimension_numbers = #tpu.dot_dimension_numbers<[2], [2], [1], [1], [0, 0, 0, 1, 1, 1], [0], [0]>} : vector<2x8x8xf32>, vector<2x8x8xf32>, vector<2x8x8xf32> -> vector<2x8x8xf32>
    "tpu.trace_stop"() : () -> ()
    %cst_28 = arith.constant dense<0xFF800000> : vector<2x8xf32>
    %52 = vector.multi_reduction <maximumf>, %51, %cst_28 [2] : vector<2x8x8xf32> to vector<2x8xf32>
    %53 = vector.shape_cast %52 : vector<2x8xf32> to vector<2x8x1xf32>
    %54 = vector.broadcast %53 : vector<2x8x1xf32> to vector<2x8x8xf32>
    %55 = arith.subf %51, %54 : vector<2x8x8xf32>
    %56 = math.exp %55 : vector<2x8x8xf32>
    %cst_29 = arith.constant dense<0.000000e+00> : vector<2x8xf32>
    %57 = vector.multi_reduction <add>, %56, %cst_29 [2] : vector<2x8x8xf32> to vector<2x8xf32>
    %58 = vector.shape_cast %57 : vector<2x8xf32> to vector<2x8x1xf32>
    %59 = tpu.reciprocal %58 {approx = true} : vector<2x8x1xf32> -> vector<2x8x1xf32>
    %60 = vector.broadcast %59 : vector<2x8x1xf32> to vector<2x8x8xf32>
    %61 = arith.mulf %56, %60 : vector<2x8x8xf32>
    "tpu.trace_start"() <{level = 10 : i32, message = "bqk,bkd->bqd"}> : () -> ()
    %cst_30 = arith.constant dense<0.000000e+00> : vector<2x8x8xf32>
    %62 = tpu.matmul %61, %50, %cst_30 {dimension_numbers = #tpu.dot_dimension_numbers<[2], [1], [1], [2], [0, 0, 0, 1, 1, 2], [0], [0]>} : vector<2x8x8xf32>, vector<2x8x8xf32>, vector<2x8x8xf32> -> vector<2x8x8xf32>
    "tpu.trace_stop"() : () -> ()
    %63 = vector.shape_cast %62 : vector<2x8x8xf32> to vector<16x8xf32>
    %64 = vector.extract_strided_slice %20 {offsets = [0, 16], sizes = [16, 8], strides = [1, 1]} : vector<16x32xf32> to vector<16x8xf32>
    %65 = vector.shape_cast %64 : vector<16x8xf32> to vector<2x8x8xf32>
    %66 = vector.extract_strided_slice %21 {offsets = [0, 16], sizes = [16, 8], strides = [1, 1]} : vector<16x32xf32> to vector<16x8xf32>
    %67 = vector.shape_cast %66 : vector<16x8xf32> to vector<2x8x8xf32>
    %68 = vector.extract_strided_slice %19 {offsets = [0, 16], sizes = [16, 8], strides = [1, 1]} : vector<16x32xf32> to vector<16x8xf32>
    %69 = vector.shape_cast %68 : vector<16x8xf32> to vector<2x8x8xf32>
    "tpu.trace_start"() <{level = 10 : i32, message = "bqd,bkd->bqk"}> : () -> ()
    %cst_31 = arith.constant dense<0.000000e+00> : vector<2x8x8xf32>
    %70 = tpu.matmul %65, %67, %cst_31 {dimension_numbers = #tpu.dot_dimension_numbers<[2], [2], [1], [1], [0, 0, 0, 1, 1, 1], [0], [0]>} : vector<2x8x8xf32>, vector<2x8x8xf32>, vector<2x8x8xf32> -> vector<2x8x8xf32>
    "tpu.trace_stop"() : () -> ()
    %cst_32 = arith.constant dense<0xFF800000> : vector<2x8xf32>
    %71 = vector.multi_reduction <maximumf>, %70, %cst_32 [2] : vector<2x8x8xf32> to vector<2x8xf32>
    %72 = vector.shape_cast %71 : vector<2x8xf32> to vector<2x8x1xf32>
    %73 = vector.broadcast %72 : vector<2x8x1xf32> to vector<2x8x8xf32>
    %74 = arith.subf %70, %73 : vector<2x8x8xf32>
    %75 = math.exp %74 : vector<2x8x8xf32>
    %cst_33 = arith.constant dense<0.000000e+00> : vector<2x8xf32>
    %76 = vector.multi_reduction <add>, %75, %cst_33 [2] : vector<2x8x8xf32> to vector<2x8xf32>
    %77 = vector.shape_cast %76 : vector<2x8xf32> to vector<2x8x1xf32>
    %78 = tpu.reciprocal %77 {approx = true} : vector<2x8x1xf32> -> vector<2x8x1xf32>
    %79 = vector.broadcast %78 : vector<2x8x1xf32> to vector<2x8x8xf32>
    %80 = arith.mulf %75, %79 : vector<2x8x8xf32>
    "tpu.trace_start"() <{level = 10 : i32, message = "bqk,bkd->bqd"}> : () -> ()
    %cst_34 = arith.constant dense<0.000000e+00> : vector<2x8x8xf32>
    %81 = tpu.matmul %80, %69, %cst_34 {dimension_numbers = #tpu.dot_dimension_numbers<[2], [1], [1], [2], [0, 0, 0, 1, 1, 2], [0], [0]>} : vector<2x8x8xf32>, vector<2x8x8xf32>, vector<2x8x8xf32> -> vector<2x8x8xf32>
    "tpu.trace_stop"() : () -> ()
    %82 = vector.shape_cast %81 : vector<2x8x8xf32> to vector<16x8xf32>
    %83 = vector.extract_strided_slice %20 {offsets = [0, 24], sizes = [16, 8], strides = [1, 1]} : vector<16x32xf32> to vector<16x8xf32>
    %84 = vector.shape_cast %83 : vector<16x8xf32> to vector<2x8x8xf32>
    %85 = vector.extract_strided_slice %21 {offsets = [0, 24], sizes = [16, 8], strides = [1, 1]} : vector<16x32xf32> to vector<16x8xf32>
    %86 = vector.shape_cast %85 : vector<16x8xf32> to vector<2x8x8xf32>
    %87 = vector.extract_strided_slice %19 {offsets = [0, 24], sizes = [16, 8], strides = [1, 1]} : vector<16x32xf32> to vector<16x8xf32>
    %88 = vector.shape_cast %87 : vector<16x8xf32> to vector<2x8x8xf32>
    "tpu.trace_start"() <{level = 10 : i32, message = "bqd,bkd->bqk"}> : () -> ()
    %cst_35 = arith.constant dense<0.000000e+00> : vector<2x8x8xf32>
    %89 = tpu.matmul %84, %86, %cst_35 {dimension_numbers = #tpu.dot_dimension_numbers<[2], [2], [1], [1], [0, 0, 0, 1, 1, 1], [0], [0]>} : vector<2x8x8xf32>, vector<2x8x8xf32>, vector<2x8x8xf32> -> vector<2x8x8xf32>
    "tpu.trace_stop"() : () -> ()
    %cst_36 = arith.constant dense<0xFF800000> : vector<2x8xf32>
    %90 = vector.multi_reduction <maximumf>, %89, %cst_36 [2] : vector<2x8x8xf32> to vector<2x8xf32>
    %91 = vector.shape_cast %90 : vector<2x8xf32> to vector<2x8x1xf32>
    %92 = vector.broadcast %91 : vector<2x8x1xf32> to vector<2x8x8xf32>
    %93 = arith.subf %89, %92 : vector<2x8x8xf32>
    %94 = math.exp %93 : vector<2x8x8xf32>
    %cst_37 = arith.constant dense<0.000000e+00> : vector<2x8xf32>
    %95 = vector.multi_reduction <add>, %94, %cst_37 [2] : vector<2x8x8xf32> to vector<2x8xf32>
    %96 = vector.shape_cast %95 : vector<2x8xf32> to vector<2x8x1xf32>
    %97 = tpu.reciprocal %96 {approx = true} : vector<2x8x1xf32> -> vector<2x8x1xf32>
    %98 = vector.broadcast %97 : vector<2x8x1xf32> to vector<2x8x8xf32>
    %99 = arith.mulf %94, %98 : vector<2x8x8xf32>
    "tpu.trace_start"() <{level = 10 : i32, message = "bqk,bkd->bqd"}> : () -> ()
    %cst_38 = arith.constant dense<0.000000e+00> : vector<2x8x8xf32>
    %100 = tpu.matmul %99, %88, %cst_38 {dimension_numbers = #tpu.dot_dimension_numbers<[2], [1], [1], [2], [0, 0, 0, 1, 1, 2], [0], [0]>} : vector<2x8x8xf32>, vector<2x8x8xf32>, vector<2x8x8xf32> -> vector<2x8x8xf32>
    "tpu.trace_stop"() : () -> ()
    %101 = vector.shape_cast %100 : vector<2x8x8xf32> to vector<16x8xf32>
    %102 = tpu.concatenate %44, %63, %82, %101 in 1 : vector<16x8xf32>, vector<16x8xf32>, vector<16x8xf32>, vector<16x8xf32> -> vector<16x32xf32>
    %cst_39 = arith.constant dense<0.000000e+00> : vector<16x32xf32>
    %103 = tpu.matmul %102, %23, %cst_39 {dimension_numbers = #tpu.dot_dimension_numbers<[1], [0], [0], [1], [0, 0, 1, 1], [], []>} : vector<16x32xf32>, vector<32x32xf32>, vector<16x32xf32> -> vector<16x32xf32>
    %104 = vector.broadcast %25 : vector<1x32xf32> to vector<16x32xf32>
    %105 = arith.addf %103, %104 : vector<16x32xf32>
    %106 = arith.addf %3, %105 : vector<16x32xf32>
    %c0_40 = arith.constant 0 : index
    %c0_41 = arith.constant 0 : index
    %c0_42 = arith.constant 0 : index
    %107 = vector.load %arg23[%c0_40, %c0_41, %c0_42] : memref<1x1x32xf32, #tpu.memory_space<vmem>>, vector<1x1x32xf32>
    %108 = vector.shape_cast %107 : vector<1x1x32xf32> to vector<1x32xf32>
    %c0_43 = arith.constant 0 : index
    %c0_44 = arith.constant 0 : index
    %c0_45 = arith.constant 0 : index
    %109 = vector.load %arg24[%c0_43, %c0_44, %c0_45] : memref<1x1x32xf32, #tpu.memory_space<vmem>>, vector<1x1x32xf32>
    %110 = vector.shape_cast %109 : vector<1x1x32xf32> to vector<1x32xf32>
    %cst_46 = arith.constant dense<0.000000e+00> : vector<16xf32>
    %111 = vector.multi_reduction <add>, %106, %cst_46 [1] : vector<16x32xf32> to vector<16xf32>
    %112 = vector.shape_cast %111 : vector<16xf32> to vector<16x1xf32>
    %cst_47 = arith.constant 3.200000e+01 : f32
    %113 = vector.broadcast %cst_47 : f32 to vector<16x1xf32>
    %114 = arith.divf %112, %113 : vector<16x1xf32>
    %115 = vector.broadcast %114 : vector<16x1xf32> to vector<16x32xf32>
    %116 = arith.subf %106, %115 : vector<16x32xf32>
    %117 = arith.mulf %116, %116 : vector<16x32xf32>
    %cst_48 = arith.constant dense<0.000000e+00> : vector<16xf32>
    %118 = vector.multi_reduction <add>, %117, %cst_48 [1] : vector<16x32xf32> to vector<16xf32>
    %119 = vector.shape_cast %118 : vector<16xf32> to vector<16x1xf32>
    %cst_49 = arith.constant 3.200000e+01 : f32
    %120 = vector.broadcast %cst_49 : f32 to vector<16x1xf32>
    %121 = arith.divf %119, %120 : vector<16x1xf32>
    %122 = vector.broadcast %114 : vector<16x1xf32> to vector<16x32xf32>
    %123 = arith.subf %106, %122 : vector<16x32xf32>
    %cst_50 = arith.constant 9.99999974E-6 : f32
    %124 = vector.broadcast %cst_50 : f32 to vector<16x1xf32>
    %125 = arith.addf %121, %124 : vector<16x1xf32>
    %126 = math.rsqrt %125 : vector<16x1xf32>
    %127 = vector.broadcast %126 : vector<16x1xf32> to vector<16x32xf32>
    %128 = arith.mulf %123, %127 : vector<16x32xf32>
    %129 = vector.broadcast %108 : vector<1x32xf32> to vector<16x32xf32>
    %130 = arith.mulf %128, %129 : vector<16x32xf32>
    %131 = vector.broadcast %110 : vector<1x32xf32> to vector<16x32xf32>
    %132 = arith.addf %130, %131 : vector<16x32xf32>
    %133 = arith.addf %132, %4 : vector<16x32xf32>
    %c0_51 = arith.constant 0 : index
    %c0_52 = arith.constant 0 : index
    %c0_53 = arith.constant 0 : index
    %134 = vector.load %arg11[%c0_51, %c0_52, %c0_53] : memref<1x32x32xf32, #tpu.memory_space<vmem>>, vector<1x32x32xf32>
    %135 = vector.shape_cast %134 : vector<1x32x32xf32> to vector<32x32xf32>
    %cst_54 = arith.constant dense<0.000000e+00> : vector<16x32xf32>
    %136 = tpu.matmul %133, %135, %cst_54 {dimension_numbers = #tpu.dot_dimension_numbers<[1], [0], [0], [1], [0, 0, 1, 1], [], []>} : vector<16x32xf32>, vector<32x32xf32>, vector<16x32xf32> -> vector<16x32xf32>
    %c0_55 = arith.constant 0 : index
    %c0_56 = arith.constant 0 : index
    %c0_57 = arith.constant 0 : index
    %137 = vector.load %arg12[%c0_55, %c0_56, %c0_57] : memref<1x1x32xf32, #tpu.memory_space<vmem>>, vector<1x1x32xf32>
    %138 = vector.shape_cast %137 : vector<1x1x32xf32> to vector<1x32xf32>
    %139 = vector.broadcast %138 : vector<1x32xf32> to vector<16x32xf32>
    %140 = arith.addf %136, %139 : vector<16x32xf32>
    %c0_58 = arith.constant 0 : index
    %c0_59 = arith.constant 0 : index
    %141 = vector.load %arg3[%c0_58, %c0_59] : memref<32x32xf32, #tpu.memory_space<vmem>>, vector<32x32xf32>
    %c0_60 = arith.constant 0 : index
    %c0_61 = arith.constant 0 : index
    %c0_62 = arith.constant 0 : index
    %142 = vector.load %arg13[%c0_60, %c0_61, %c0_62] : memref<1x32x32xf32, #tpu.memory_space<vmem>>, vector<1x32x32xf32>
    %143 = vector.shape_cast %142 : vector<1x32x32xf32> to vector<32x32xf32>
    %cst_63 = arith.constant dense<0.000000e+00> : vector<32x32xf32>
    %144 = tpu.matmul %141, %143, %cst_63 {dimension_numbers = #tpu.dot_dimension_numbers<[1], [0], [0], [1], [0, 0, 1, 1], [], []>} : vector<32x32xf32>, vector<32x32xf32>, vector<32x32xf32> -> vector<32x32xf32>
    %c0_64 = arith.constant 0 : index
    %c0_65 = arith.constant 0 : index
    %c0_66 = arith.constant 0 : index
    %145 = vector.load %arg14[%c0_64, %c0_65, %c0_66] : memref<1x1x32xf32, #tpu.memory_space<vmem>>, vector<1x1x32xf32>
    %146 = vector.shape_cast %145 : vector<1x1x32xf32> to vector<1x32xf32>
    %147 = vector.broadcast %146 : vector<1x32xf32> to vector<32x32xf32>
    %148 = arith.addf %144, %147 : vector<32x32xf32>
    %c0_67 = arith.constant 0 : index
    %c0_68 = arith.constant 0 : index
    %149 = vector.load %arg4[%c0_67, %c0_68] : memref<32x32xf32, #tpu.memory_space<vmem>>, vector<32x32xf32>
    %c0_69 = arith.constant 0 : index
    %c0_70 = arith.constant 0 : index
    %c0_71 = arith.constant 0 : index
    %150 = vector.load %arg15[%c0_69, %c0_70, %c0_71] : memref<1x32x32xf32, #tpu.memory_space<vmem>>, vector<1x32x32xf32>
    %151 = vector.shape_cast %150 : vector<1x32x32xf32> to vector<32x32xf32>
    %cst_72 = arith.constant dense<0.000000e+00> : vector<32x32xf32>
    %152 = tpu.matmul %149, %151, %cst_72 {dimension_numbers = #tpu.dot_dimension_numbers<[1], [0], [0], [1], [0, 0, 1, 1], [], []>} : vector<32x32xf32>, vector<32x32xf32>, vector<32x32xf32> -> vector<32x32xf32>
    %c0_73 = arith.constant 0 : index
    %c0_74 = arith.constant 0 : index
    %c0_75 = arith.constant 0 : index
    %153 = vector.load %arg16[%c0_73, %c0_74, %c0_75] : memref<1x1x32xf32, #tpu.memory_space<vmem>>, vector<1x1x32xf32>
    %154 = vector.shape_cast %153 : vector<1x1x32xf32> to vector<1x32xf32>
    %155 = vector.broadcast %154 : vector<1x32xf32> to vector<32x32xf32>
    %156 = arith.addf %152, %155 : vector<32x32xf32>
    %c0_76 = arith.constant 0 : index
    %c0_77 = arith.constant 0 : index
    %c0_78 = arith.constant 0 : index
    %157 = vector.load %arg17[%c0_76, %c0_77, %c0_78] : memref<1x32x32xf32, #tpu.memory_space<vmem>>, vector<1x32x32xf32>
    %158 = vector.shape_cast %157 : vector<1x32x32xf32> to vector<32x32xf32>
    %c0_79 = arith.constant 0 : index
    %c0_80 = arith.constant 0 : index
    %c0_81 = arith.constant 0 : index
    %159 = vector.load %arg18[%c0_79, %c0_80, %c0_81] : memref<1x1x32xf32, #tpu.memory_space<vmem>>, vector<1x1x32xf32>
    %160 = vector.shape_cast %159 : vector<1x1x32xf32> to vector<1x32xf32>
    %161 = vector.extract_strided_slice %140 {offsets = [0, 0], sizes = [16, 8], strides = [1, 1]} : vector<16x32xf32> to vector<16x8xf32>
    %162 = vector.shape_cast %161 : vector<16x8xf32> to vector<2x8x8xf32>
    %163 = vector.extract_strided_slice %148 {offsets = [0, 0], sizes = [32, 8], strides = [1, 1]} : vector<32x32xf32> to vector<32x8xf32>
    %164 = vector.shape_cast %163 : vector<32x8xf32> to vector<2x16x8xf32>
    %165 = vector.extract_strided_slice %156 {offsets = [0, 0], sizes = [32, 8], strides = [1, 1]} : vector<32x32xf32> to vector<32x8xf32>
    %166 = vector.shape_cast %165 : vector<32x8xf32> to vector<2x16x8xf32>
    "tpu.trace_start"() <{level = 10 : i32, message = "bqd,bkd->bqk"}> : () -> ()
    %cst_82 = arith.constant dense<0.000000e+00> : vector<2x8x16xf32>
    %167 = tpu.matmul %162, %164, %cst_82 {dimension_numbers = #tpu.dot_dimension_numbers<[2], [2], [1], [1], [0, 0, 0, 1, 1, 1], [0], [0]>} : vector<2x8x8xf32>, vector<2x16x8xf32>, vector<2x8x16xf32> -> vector<2x8x16xf32>
    "tpu.trace_stop"() : () -> ()
    %cst_83 = arith.constant dense<0xFF800000> : vector<2x8xf32>
    %168 = vector.multi_reduction <maximumf>, %167, %cst_83 [2] : vector<2x8x16xf32> to vector<2x8xf32>
    %169 = vector.shape_cast %168 : vector<2x8xf32> to vector<2x8x1xf32>
    %170 = vector.broadcast %169 : vector<2x8x1xf32> to vector<2x8x16xf32>
    %171 = arith.subf %167, %170 : vector<2x8x16xf32>
    %172 = math.exp %171 : vector<2x8x16xf32>
    %cst_84 = arith.constant dense<0.000000e+00> : vector<2x8xf32>
    %173 = vector.multi_reduction <add>, %172, %cst_84 [2] : vector<2x8x16xf32> to vector<2x8xf32>
    %174 = vector.shape_cast %173 : vector<2x8xf32> to vector<2x8x1xf32>
    %175 = tpu.reciprocal %174 {approx = true} : vector<2x8x1xf32> -> vector<2x8x1xf32>
    %176 = vector.broadcast %175 : vector<2x8x1xf32> to vector<2x8x16xf32>
    %177 = arith.mulf %172, %176 : vector<2x8x16xf32>
    "tpu.trace_start"() <{level = 10 : i32, message = "bqk,bkd->bqd"}> : () -> ()
    %cst_85 = arith.constant dense<0.000000e+00> : vector<2x8x8xf32>
    %178 = tpu.matmul %177, %166, %cst_85 {dimension_numbers = #tpu.dot_dimension_numbers<[2], [1], [1], [2], [0, 0, 0, 1, 1, 2], [0], [0]>} : vector<2x8x16xf32>, vector<2x16x8xf32>, vector<2x8x8xf32> -> vector<2x8x8xf32>
    "tpu.trace_stop"() : () -> ()
    %179 = vector.shape_cast %178 : vector<2x8x8xf32> to vector<16x8xf32>
    %180 = vector.extract_strided_slice %140 {offsets = [0, 8], sizes = [16, 8], strides = [1, 1]} : vector<16x32xf32> to vector<16x8xf32>
    %181 = vector.shape_cast %180 : vector<16x8xf32> to vector<2x8x8xf32>
    %182 = vector.extract_strided_slice %148 {offsets = [0, 8], sizes = [32, 8], strides = [1, 1]} : vector<32x32xf32> to vector<32x8xf32>
    %183 = vector.shape_cast %182 : vector<32x8xf32> to vector<2x16x8xf32>
    %184 = vector.extract_strided_slice %156 {offsets = [0, 8], sizes = [32, 8], strides = [1, 1]} : vector<32x32xf32> to vector<32x8xf32>
    %185 = vector.shape_cast %184 : vector<32x8xf32> to vector<2x16x8xf32>
    "tpu.trace_start"() <{level = 10 : i32, message = "bqd,bkd->bqk"}> : () -> ()
    %cst_86 = arith.constant dense<0.000000e+00> : vector<2x8x16xf32>
    %186 = tpu.matmul %181, %183, %cst_86 {dimension_numbers = #tpu.dot_dimension_numbers<[2], [2], [1], [1], [0, 0, 0, 1, 1, 1], [0], [0]>} : vector<2x8x8xf32>, vector<2x16x8xf32>, vector<2x8x16xf32> -> vector<2x8x16xf32>
    "tpu.trace_stop"() : () -> ()
    %cst_87 = arith.constant dense<0xFF800000> : vector<2x8xf32>
    %187 = vector.multi_reduction <maximumf>, %186, %cst_87 [2] : vector<2x8x16xf32> to vector<2x8xf32>
    %188 = vector.shape_cast %187 : vector<2x8xf32> to vector<2x8x1xf32>
    %189 = vector.broadcast %188 : vector<2x8x1xf32> to vector<2x8x16xf32>
    %190 = arith.subf %186, %189 : vector<2x8x16xf32>
    %191 = math.exp %190 : vector<2x8x16xf32>
    %cst_88 = arith.constant dense<0.000000e+00> : vector<2x8xf32>
    %192 = vector.multi_reduction <add>, %191, %cst_88 [2] : vector<2x8x16xf32> to vector<2x8xf32>
    %193 = vector.shape_cast %192 : vector<2x8xf32> to vector<2x8x1xf32>
    %194 = tpu.reciprocal %193 {approx = true} : vector<2x8x1xf32> -> vector<2x8x1xf32>
    %195 = vector.broadcast %194 : vector<2x8x1xf32> to vector<2x8x16xf32>
    %196 = arith.mulf %191, %195 : vector<2x8x16xf32>
    "tpu.trace_start"() <{level = 10 : i32, message = "bqk,bkd->bqd"}> : () -> ()
    %cst_89 = arith.constant dense<0.000000e+00> : vector<2x8x8xf32>
    %197 = tpu.matmul %196, %185, %cst_89 {dimension_numbers = #tpu.dot_dimension_numbers<[2], [1], [1], [2], [0, 0, 0, 1, 1, 2], [0], [0]>} : vector<2x8x16xf32>, vector<2x16x8xf32>, vector<2x8x8xf32> -> vector<2x8x8xf32>
    "tpu.trace_stop"() : () -> ()
    %198 = vector.shape_cast %197 : vector<2x8x8xf32> to vector<16x8xf32>
    %199 = vector.extract_strided_slice %140 {offsets = [0, 16], sizes = [16, 8], strides = [1, 1]} : vector<16x32xf32> to vector<16x8xf32>
    %200 = vector.shape_cast %199 : vector<16x8xf32> to vector<2x8x8xf32>
    %201 = vector.extract_strided_slice %148 {offsets = [0, 16], sizes = [32, 8], strides = [1, 1]} : vector<32x32xf32> to vector<32x8xf32>
    %202 = vector.shape_cast %201 : vector<32x8xf32> to vector<2x16x8xf32>
    %203 = vector.extract_strided_slice %156 {offsets = [0, 16], sizes = [32, 8], strides = [1, 1]} : vector<32x32xf32> to vector<32x8xf32>
    %204 = vector.shape_cast %203 : vector<32x8xf32> to vector<2x16x8xf32>
    "tpu.trace_start"() <{level = 10 : i32, message = "bqd,bkd->bqk"}> : () -> ()
    %cst_90 = arith.constant dense<0.000000e+00> : vector<2x8x16xf32>
    %205 = tpu.matmul %200, %202, %cst_90 {dimension_numbers = #tpu.dot_dimension_numbers<[2], [2], [1], [1], [0, 0, 0, 1, 1, 1], [0], [0]>} : vector<2x8x8xf32>, vector<2x16x8xf32>, vector<2x8x16xf32> -> vector<2x8x16xf32>
    "tpu.trace_stop"() : () -> ()
    %cst_91 = arith.constant dense<0xFF800000> : vector<2x8xf32>
    %206 = vector.multi_reduction <maximumf>, %205, %cst_91 [2] : vector<2x8x16xf32> to vector<2x8xf32>
    %207 = vector.shape_cast %206 : vector<2x8xf32> to vector<2x8x1xf32>
    %208 = vector.broadcast %207 : vector<2x8x1xf32> to vector<2x8x16xf32>
    %209 = arith.subf %205, %208 : vector<2x8x16xf32>
    %210 = math.exp %209 : vector<2x8x16xf32>
    %cst_92 = arith.constant dense<0.000000e+00> : vector<2x8xf32>
    %211 = vector.multi_reduction <add>, %210, %cst_92 [2] : vector<2x8x16xf32> to vector<2x8xf32>
    %212 = vector.shape_cast %211 : vector<2x8xf32> to vector<2x8x1xf32>
    %213 = tpu.reciprocal %212 {approx = true} : vector<2x8x1xf32> -> vector<2x8x1xf32>
    %214 = vector.broadcast %213 : vector<2x8x1xf32> to vector<2x8x16xf32>
    %215 = arith.mulf %210, %214 : vector<2x8x16xf32>
    "tpu.trace_start"() <{level = 10 : i32, message = "bqk,bkd->bqd"}> : () -> ()
    %cst_93 = arith.constant dense<0.000000e+00> : vector<2x8x8xf32>
    %216 = tpu.matmul %215, %204, %cst_93 {dimension_numbers = #tpu.dot_dimension_numbers<[2], [1], [1], [2], [0, 0, 0, 1, 1, 2], [0], [0]>} : vector<2x8x16xf32>, vector<2x16x8xf32>, vector<2x8x8xf32> -> vector<2x8x8xf32>
    "tpu.trace_stop"() : () -> ()
    %217 = vector.shape_cast %216 : vector<2x8x8xf32> to vector<16x8xf32>
    %218 = vector.extract_strided_slice %140 {offsets = [0, 24], sizes = [16, 8], strides = [1, 1]} : vector<16x32xf32> to vector<16x8xf32>
    %219 = vector.shape_cast %218 : vector<16x8xf32> to vector<2x8x8xf32>
    %220 = vector.extract_strided_slice %148 {offsets = [0, 24], sizes = [32, 8], strides = [1, 1]} : vector<32x32xf32> to vector<32x8xf32>
    %221 = vector.shape_cast %220 : vector<32x8xf32> to vector<2x16x8xf32>
    %222 = vector.extract_strided_slice %156 {offsets = [0, 24], sizes = [32, 8], strides = [1, 1]} : vector<32x32xf32> to vector<32x8xf32>
    %223 = vector.shape_cast %222 : vector<32x8xf32> to vector<2x16x8xf32>
    "tpu.trace_start"() <{level = 10 : i32, message = "bqd,bkd->bqk"}> : () -> ()
    %cst_94 = arith.constant dense<0.000000e+00> : vector<2x8x16xf32>
    %224 = tpu.matmul %219, %221, %cst_94 {dimension_numbers = #tpu.dot_dimension_numbers<[2], [2], [1], [1], [0, 0, 0, 1, 1, 1], [0], [0]>} : vector<2x8x8xf32>, vector<2x16x8xf32>, vector<2x8x16xf32> -> vector<2x8x16xf32>
    "tpu.trace_stop"() : () -> ()
    %cst_95 = arith.constant dense<0xFF800000> : vector<2x8xf32>
    %225 = vector.multi_reduction <maximumf>, %224, %cst_95 [2] : vector<2x8x16xf32> to vector<2x8xf32>
    %226 = vector.shape_cast %225 : vector<2x8xf32> to vector<2x8x1xf32>
    %227 = vector.broadcast %226 : vector<2x8x1xf32> to vector<2x8x16xf32>
    %228 = arith.subf %224, %227 : vector<2x8x16xf32>
    %229 = math.exp %228 : vector<2x8x16xf32>
    %cst_96 = arith.constant dense<0.000000e+00> : vector<2x8xf32>
    %230 = vector.multi_reduction <add>, %229, %cst_96 [2] : vector<2x8x16xf32> to vector<2x8xf32>
    %231 = vector.shape_cast %230 : vector<2x8xf32> to vector<2x8x1xf32>
    %232 = tpu.reciprocal %231 {approx = true} : vector<2x8x1xf32> -> vector<2x8x1xf32>
    %233 = vector.broadcast %232 : vector<2x8x1xf32> to vector<2x8x16xf32>
    %234 = arith.mulf %229, %233 : vector<2x8x16xf32>
    "tpu.trace_start"() <{level = 10 : i32, message = "bqk,bkd->bqd"}> : () -> ()
    %cst_97 = arith.constant dense<0.000000e+00> : vector<2x8x8xf32>
    %235 = tpu.matmul %234, %223, %cst_97 {dimension_numbers = #tpu.dot_dimension_numbers<[2], [1], [1], [2], [0, 0, 0, 1, 1, 2], [0], [0]>} : vector<2x8x16xf32>, vector<2x16x8xf32>, vector<2x8x8xf32> -> vector<2x8x8xf32>
    "tpu.trace_stop"() : () -> ()
    %236 = vector.shape_cast %235 : vector<2x8x8xf32> to vector<16x8xf32>
    %237 = tpu.concatenate %179, %198, %217, %236 in 1 : vector<16x8xf32>, vector<16x8xf32>, vector<16x8xf32>, vector<16x8xf32> -> vector<16x32xf32>
    %cst_98 = arith.constant dense<0.000000e+00> : vector<16x32xf32>
    %238 = tpu.matmul %237, %158, %cst_98 {dimension_numbers = #tpu.dot_dimension_numbers<[1], [0], [0], [1], [0, 0, 1, 1], [], []>} : vector<16x32xf32>, vector<32x32xf32>, vector<16x32xf32> -> vector<16x32xf32>
    %239 = vector.broadcast %160 : vector<1x32xf32> to vector<16x32xf32>
    %240 = arith.addf %238, %239 : vector<16x32xf32>
    %241 = arith.addf %132, %240 : vector<16x32xf32>
    %c0_99 = arith.constant 0 : index
    %c0_100 = arith.constant 0 : index
    %c0_101 = arith.constant 0 : index
    %242 = vector.load %arg25[%c0_99, %c0_100, %c0_101] : memref<1x1x32xf32, #tpu.memory_space<vmem>>, vector<1x1x32xf32>
    %243 = vector.shape_cast %242 : vector<1x1x32xf32> to vector<1x32xf32>
    %c0_102 = arith.constant 0 : index
    %c0_103 = arith.constant 0 : index
    %c0_104 = arith.constant 0 : index
    %244 = vector.load %arg26[%c0_102, %c0_103, %c0_104] : memref<1x1x32xf32, #tpu.memory_space<vmem>>, vector<1x1x32xf32>
    %245 = vector.shape_cast %244 : vector<1x1x32xf32> to vector<1x32xf32>
    %cst_105 = arith.constant dense<0.000000e+00> : vector<16xf32>
    %246 = vector.multi_reduction <add>, %241, %cst_105 [1] : vector<16x32xf32> to vector<16xf32>
    %247 = vector.shape_cast %246 : vector<16xf32> to vector<16x1xf32>
    %cst_106 = arith.constant 3.200000e+01 : f32
    %248 = vector.broadcast %cst_106 : f32 to vector<16x1xf32>
    %249 = arith.divf %247, %248 : vector<16x1xf32>
    %250 = vector.broadcast %249 : vector<16x1xf32> to vector<16x32xf32>
    %251 = arith.subf %241, %250 : vector<16x32xf32>
    %252 = arith.mulf %251, %251 : vector<16x32xf32>
    %cst_107 = arith.constant dense<0.000000e+00> : vector<16xf32>
    %253 = vector.multi_reduction <add>, %252, %cst_107 [1] : vector<16x32xf32> to vector<16xf32>
    %254 = vector.shape_cast %253 : vector<16xf32> to vector<16x1xf32>
    %cst_108 = arith.constant 3.200000e+01 : f32
    %255 = vector.broadcast %cst_108 : f32 to vector<16x1xf32>
    %256 = arith.divf %254, %255 : vector<16x1xf32>
    %257 = vector.broadcast %249 : vector<16x1xf32> to vector<16x32xf32>
    %258 = arith.subf %241, %257 : vector<16x32xf32>
    %cst_109 = arith.constant 9.99999974E-6 : f32
    %259 = vector.broadcast %cst_109 : f32 to vector<16x1xf32>
    %260 = arith.addf %256, %259 : vector<16x1xf32>
    %261 = math.rsqrt %260 : vector<16x1xf32>
    %262 = vector.broadcast %261 : vector<16x1xf32> to vector<16x32xf32>
    %263 = arith.mulf %258, %262 : vector<16x32xf32>
    %264 = vector.broadcast %243 : vector<1x32xf32> to vector<16x32xf32>
    %265 = arith.mulf %263, %264 : vector<16x32xf32>
    %266 = vector.broadcast %245 : vector<1x32xf32> to vector<16x32xf32>
    %267 = arith.addf %265, %266 : vector<16x32xf32>
    %c0_110 = arith.constant 0 : index
    %c0_111 = arith.constant 0 : index
    %c0_112 = arith.constant 0 : index
    %268 = vector.load %arg19[%c0_110, %c0_111, %c0_112] : memref<1x32x64xf32, #tpu.memory_space<vmem>>, vector<1x32x64xf32>
    %269 = vector.shape_cast %268 : vector<1x32x64xf32> to vector<32x64xf32>
    %cst_113 = arith.constant dense<0.000000e+00> : vector<16x64xf32>
    %270 = tpu.matmul %267, %269, %cst_113 {dimension_numbers = #tpu.dot_dimension_numbers<[1], [0], [0], [1], [0, 0, 1, 1], [], []>} : vector<16x32xf32>, vector<32x64xf32>, vector<16x64xf32> -> vector<16x64xf32>
    %c0_114 = arith.constant 0 : index
    %c0_115 = arith.constant 0 : index
    %c0_116 = arith.constant 0 : index
    %271 = vector.load %arg20[%c0_114, %c0_115, %c0_116] : memref<1x1x64xf32, #tpu.memory_space<vmem>>, vector<1x1x64xf32>
    %272 = vector.shape_cast %271 : vector<1x1x64xf32> to vector<1x64xf32>
    %273 = vector.broadcast %272 : vector<1x64xf32> to vector<16x64xf32>
    %274 = arith.addf %270, %273 : vector<16x64xf32>
    %cst_117 = arith.constant 0.000000e+00 : f32
    %275 = vector.broadcast %cst_117 : f32 to vector<16x64xf32>
    %276 = arith.maximumf %274, %275 : vector<16x64xf32>
    %c0_118 = arith.constant 0 : index
    %c0_119 = arith.constant 0 : index
    %c0_120 = arith.constant 0 : index
    %277 = vector.load %arg21[%c0_118, %c0_119, %c0_120] : memref<1x64x32xf32, #tpu.memory_space<vmem>>, vector<1x64x32xf32>
    %278 = vector.shape_cast %277 : vector<1x64x32xf32> to vector<64x32xf32>
    %cst_121 = arith.constant dense<0.000000e+00> : vector<16x32xf32>
    %279 = tpu.matmul %276, %278, %cst_121 {dimension_numbers = #tpu.dot_dimension_numbers<[1], [0], [0], [1], [0, 0, 1, 1], [], []>} : vector<16x64xf32>, vector<64x32xf32>, vector<16x32xf32> -> vector<16x32xf32>
    %c0_122 = arith.constant 0 : index
    %c0_123 = arith.constant 0 : index
    %c0_124 = arith.constant 0 : index
    %280 = vector.load %arg22[%c0_122, %c0_123, %c0_124] : memref<1x1x32xf32, #tpu.memory_space<vmem>>, vector<1x1x32xf32>
    %281 = vector.shape_cast %280 : vector<1x1x32xf32> to vector<1x32xf32>
    %282 = vector.broadcast %281 : vector<1x32xf32> to vector<16x32xf32>
    %283 = arith.addf %279, %282 : vector<16x32xf32>
    %284 = arith.addf %267, %283 : vector<16x32xf32>
    %c0_125 = arith.constant 0 : index
    %c0_126 = arith.constant 0 : index
    %c0_127 = arith.constant 0 : index
    %285 = vector.load %arg27[%c0_125, %c0_126, %c0_127] : memref<1x1x32xf32, #tpu.memory_space<vmem>>, vector<1x1x32xf32>
    %286 = vector.shape_cast %285 : vector<1x1x32xf32> to vector<1x32xf32>
    %c0_128 = arith.constant 0 : index
    %c0_129 = arith.constant 0 : index
    %c0_130 = arith.constant 0 : index
    %287 = vector.load %arg28[%c0_128, %c0_129, %c0_130] : memref<1x1x32xf32, #tpu.memory_space<vmem>>, vector<1x1x32xf32>
    %288 = vector.shape_cast %287 : vector<1x1x32xf32> to vector<1x32xf32>
    %cst_131 = arith.constant dense<0.000000e+00> : vector<16xf32>
    %289 = vector.multi_reduction <add>, %284, %cst_131 [1] : vector<16x32xf32> to vector<16xf32>
    %290 = vector.shape_cast %289 : vector<16xf32> to vector<16x1xf32>
    %cst_132 = arith.constant 3.200000e+01 : f32
    %291 = vector.broadcast %cst_132 : f32 to vector<16x1xf32>
    %292 = arith.divf %290, %291 : vector<16x1xf32>
    %293 = vector.broadcast %292 : vector<16x1xf32> to vector<16x32xf32>
    %294 = arith.subf %284, %293 : vector<16x32xf32>
    %295 = arith.mulf %294, %294 : vector<16x32xf32>
    %cst_133 = arith.constant dense<0.000000e+00> : vector<16xf32>
    %296 = vector.multi_reduction <add>, %295, %cst_133 [1] : vector<16x32xf32> to vector<16xf32>
    %297 = vector.shape_cast %296 : vector<16xf32> to vector<16x1xf32>
    %cst_134 = arith.constant 3.200000e+01 : f32
    %298 = vector.broadcast %cst_134 : f32 to vector<16x1xf32>
    %299 = arith.divf %297, %298 : vector<16x1xf32>
    %300 = vector.broadcast %292 : vector<16x1xf32> to vector<16x32xf32>
    %301 = arith.subf %284, %300 : vector<16x32xf32>
    %cst_135 = arith.constant 9.99999974E-6 : f32
    %302 = vector.broadcast %cst_135 : f32 to vector<16x1xf32>
    %303 = arith.addf %299, %302 : vector<16x1xf32>
    %304 = math.rsqrt %303 : vector<16x1xf32>
    %305 = vector.broadcast %304 : vector<16x1xf32> to vector<16x32xf32>
    %306 = arith.mulf %301, %305 : vector<16x32xf32>
    %307 = vector.broadcast %286 : vector<1x32xf32> to vector<16x32xf32>
    %308 = arith.mulf %306, %307 : vector<16x32xf32>
    %309 = vector.broadcast %288 : vector<1x32xf32> to vector<16x32xf32>
    %310 = arith.addf %308, %309 : vector<16x32xf32>
    %c0_136 = arith.constant 0 : index
    %c0_137 = arith.constant 0 : index
    %311 = vector.load %arg30[%c0_136, %c0_137] : memref<16x32xf32, #tpu.memory_space<vmem>>, vector<16x32xf32>
    tpu.vector_store %arg30[%c0_136, %c0_137], %310 {strides = array<i32>} : memref<16x32xf32, #tpu.memory_space<vmem>>, vector<16x32xf32>,
    %c0_138 = arith.constant 0 : index
    %c0_139 = arith.constant 0 : index
    %c0_140 = arith.constant 0 : index
    %312 = vector.load %arg29[%c0_138, %c0_139, %c0_140] : memref<1x16x32xf32, #tpu.memory_space<vmem>>, vector<1x16x32xf32>
    %313 = vector.shape_cast %312 : vector<1x16x32xf32> to vector<16x32xf32>
    %314 = vector.shape_cast %310 : vector<16x32xf32> to vector<1x16x32xf32>
    tpu.vector_store %arg29[%c0_138, %c0_139, %c0_140], %314 {strides = array<i32>} : memref<1x16x32xf32, #tpu.memory_space<vmem>>, vector<1x16x32xf32>,
    return
  }
  func.func @transform_0(%arg0: i32) -> (i32, i32) {
    %c0_i32 = arith.constant 0 : i32
    %c0_i32_0 = arith.constant 0 : i32
    %c0_i32_1 = arith.constant 0 : i32
    return %c0_i32, %c0_i32_0 : i32, i32
  }
  func.func @transform_1(%arg0: i32) -> (i32, i32) {
    %c0_i32 = arith.constant 0 : i32
    %c0_i32_0 = arith.constant 0 : i32
    %c0_i32_1 = arith.constant 0 : i32
    return %c0_i32, %c0_i32_0 : i32, i32
  }
  func.func @transform_2(%arg0: i32) -> (i32, i32) {
    %c0_i32 = arith.constant 0 : i32
    %c0_i32_0 = arith.constant 0 : i32
    %c0_i32_1 = arith.constant 0 : i32
    return %c0_i32, %c0_i32_0 : i32, i32
  }
  func.func @transform_3(%arg0: i32) -> (i32, i32) {
    %c0_i32 = arith.constant 0 : i32
    %c0_i32_0 = arith.constant 0 : i32
    %c0_i32_1 = arith.constant 0 : i32
    return %c0_i32, %c0_i32_0 : i32, i32
  }
  func.func @transform_4(%arg0: i32) -> (i32, i32, i32) {
    %c0_i32 = arith.constant 0 : i32
    %c0_i32_0 = arith.constant 0 : i32
    %c0_i32_1 = arith.constant 0 : i32
    return %arg0, %c0_i32, %c0_i32_0 : i32, i32, i32
  }
  func.func @transform_5(%arg0: i32) -> (i32, i32, i32) {
    %c0_i32 = arith.constant 0 : i32
    %c0_i32_0 = arith.constant 0 : i32
    %c0_i32_1 = arith.constant 0 : i32
    return %arg0, %c0_i32, %c0_i32_0 : i32, i32, i32
  }
  func.func @transform_6(%arg0: i32) -> (i32, i32, i32) {
    %c0_i32 = arith.constant 0 : i32
    %c0_i32_0 = arith.constant 0 : i32
    %c0_i32_1 = arith.constant 0 : i32
    return %arg0, %c0_i32, %c0_i32_0 : i32, i32, i32
  }
  func.func @transform_7(%arg0: i32) -> (i32, i32, i32) {
    %c0_i32 = arith.constant 0 : i32
    %c0_i32_0 = arith.constant 0 : i32
    %c0_i32_1 = arith.constant 0 : i32
    return %arg0, %c0_i32, %c0_i32_0 : i32, i32, i32
  }
  func.func @transform_8(%arg0: i32) -> (i32, i32, i32) {
    %c0_i32 = arith.constant 0 : i32
    %c0_i32_0 = arith.constant 0 : i32
    %c0_i32_1 = arith.constant 0 : i32
    return %arg0, %c0_i32, %c0_i32_0 : i32, i32, i32
  }
  func.func @transform_9(%arg0: i32) -> (i32, i32, i32) {
    %c0_i32 = arith.constant 0 : i32
    %c0_i32_0 = arith.constant 0 : i32
    %c0_i32_1 = arith.constant 0 : i32
    return %arg0, %c0_i32, %c0_i32_0 : i32, i32, i32
  }
  func.func @transform_10(%arg0: i32) -> (i32, i32, i32) {
    %c0_i32 = arith.constant 0 : i32
    %c0_i32_0 = arith.constant 0 : i32
    %c0_i32_1 = arith.constant 0 : i32
    return %arg0, %c0_i32, %c0_i32_0 : i32, i32, i32
  }
  func.func @transform_11(%arg0: i32) -> (i32, i32, i32) {
    %c0_i32 = arith.constant 0 : i32
    %c0_i32_0 = arith.constant 0 : i32
    %c0_i32_1 = arith.constant 0 : i32
    return %arg0, %c0_i32, %c0_i32_0 : i32, i32, i32
  }
  func.func @transform_12(%arg0: i32) -> (i32, i32, i32) {
    %c0_i32 = arith.constant 0 : i32
    %c0_i32_0 = arith.constant 0 : i32
    %c0_i32_1 = arith.constant 0 : i32
    return %arg0, %c0_i32, %c0_i32_0 : i32, i32, i32
  }
  func.func @transform_13(%arg0: i32) -> (i32, i32, i32) {
    %c0_i32 = arith.constant 0 : i32
    %c0_i32_0 = arith.constant 0 : i32
    %c0_i32_1 = arith.constant 0 : i32
    return %arg0, %c0_i32, %c0_i32_0 : i32, i32, i32
  }
  func.func @transform_14(%arg0: i32) -> (i32, i32, i32) {
    %c0_i32 = arith.constant 0 : i32
    %c0_i32_0 = arith.constant 0 : i32
    %c0_i32_1 = arith.constant 0 : i32
    return %arg0, %c0_i32, %c0_i32_0 : i32, i32, i32
  }
  func.func @transform_15(%arg0: i32) -> (i32, i32, i32) {
    %c0_i32 = arith.constant 0 : i32
    %c0_i32_0 = arith.constant 0 : i32
    %c0_i32_1 = arith.constant 0 : i32
    return %arg0, %c0_i32, %c0_i32_0 : i32, i32, i32
  }
  func.func @transform_16(%arg0: i32) -> (i32, i32, i32) {
    %c0_i32 = arith.constant 0 : i32
    %c0_i32_0 = arith.constant 0 : i32
    %c0_i32_1 = arith.constant 0 : i32
    return %arg0, %c0_i32, %c0_i32_0 : i32, i32, i32
  }
  func.func @transform_17(%arg0: i32) -> (i32, i32, i32) {
    %c0_i32 = arith.constant 0 : i32
    %c0_i32_0 = arith.constant 0 : i32
    %c0_i32_1 = arith.constant 0 : i32
    return %arg0, %c0_i32, %c0_i32_0 : i32, i32, i32
  }
  func.func @transform_18(%arg0: i32) -> (i32, i32, i32) {
    %c0_i32 = arith.constant 0 : i32
    %c0_i32_0 = arith.constant 0 : i32
    %c0_i32_1 = arith.constant 0 : i32
    return %arg0, %c0_i32, %c0_i32_0 : i32, i32, i32
  }
  func.func @transform_19(%arg0: i32) -> (i32, i32, i32) {
    %c0_i32 = arith.constant 0 : i32
    %c0_i32_0 = arith.constant 0 : i32
    %c0_i32_1 = arith.constant 0 : i32
    return %arg0, %c0_i32, %c0_i32_0 : i32, i32, i32
  }
  func.func @transform_20(%arg0: i32) -> (i32, i32, i32) {
    %c0_i32 = arith.constant 0 : i32
    %c0_i32_0 = arith.constant 0 : i32
    %c0_i32_1 = arith.constant 0 : i32
    return %arg0, %c0_i32, %c0_i32_0 : i32, i32, i32
  }
  func.func @transform_21(%arg0: i32) -> (i32, i32, i32) {
    %c0_i32 = arith.constant 0 : i32
    %c0_i32_0 = arith.constant 0 : i32
    %c0_i32_1 = arith.constant 0 : i32
    return %arg0, %c0_i32, %c0_i32_0 : i32, i32, i32
  }
  func.func @transform_22(%arg0: i32) -> (i32, i32, i32) {
    %c0_i32 = arith.constant 0 : i32
    %c0_i32_0 = arith.constant 0 : i32
    %c0_i32_1 = arith.constant 0 : i32
    return %arg0, %c0_i32, %c0_i32_0 : i32, i32, i32
  }
  func.func @transform_23(%arg0: i32) -> (i32, i32, i32) {
    %c0_i32 = arith.constant 0 : i32
    %c0_i32_0 = arith.constant 0 : i32
    %c0_i32_1 = arith.constant 0 : i32
    return %arg0, %c0_i32, %c0_i32_0 : i32, i32, i32
  }
  func.func @transform_24(%arg0: i32) -> (i32, i32, i32) {
    %c0_i32 = arith.constant 0 : i32
    %c0_i32_0 = arith.constant 0 : i32
    %c0_i32_1 = arith.constant 0 : i32
    return %arg0, %c0_i32, %c0_i32_0 : i32, i32, i32
  }
  func.func @transform_25(%arg0: i32) -> (i32, i32, i32) {
    %c0_i32 = arith.constant 0 : i32
    %c0_i32_0 = arith.constant 0 : i32
    %c0_i32_1 = arith.constant 0 : i32
    return %arg0, %c0_i32, %c0_i32_0 : i32, i32, i32
  }
  func.func @transform_26(%arg0: i32) -> (i32, i32, i32) {
    %c0_i32 = arith.constant 0 : i32
    %c0_i32_0 = arith.constant 0 : i32
    %c0_i32_1 = arith.constant 0 : i32
    return %arg0, %c0_i32, %c0_i32_0 : i32, i32, i32
  }
  func.func @transform_27(%arg0: i32) -> (i32, i32, i32) {
    %c0_i32 = arith.constant 0 : i32
    %c0_i32_0 = arith.constant 0 : i32
    %c0_i32_1 = arith.constant 0 : i32
    return %arg0, %c0_i32, %c0_i32_0 : i32, i32, i32
  }
  func.func @transform_28(%arg0: i32) -> (i32, i32, i32) {
    %c0_i32 = arith.constant 0 : i32
    %c0_i32_0 = arith.constant 0 : i32
    %c0_i32_1 = arith.constant 0 : i32
    return %arg0, %c0_i32, %c0_i32_0 : i32, i32, i32
  }
}

</mosaic_0001>

<llo_original>
// kernel: transformer_decoder.1
$region0: #{transformer_decoder.1}
  #allocation0 [shape = 'u32[]', space=smem, size = 0x4, offset = 0x4, fixed_abs, tag = 'smem constant byte address 0x4 - core index']
  #allocation1 [shape = 'u32[144,128]{1,0:T(1,128)}', space=vmem, size = 0x12000, scoped, tag = 'internal scratch']
  #allocation2 [shape = 'f32[16,32]{1,0:T(8,128)}', space=vmem, size = 0x2000, scoped, tag = 'scratch operand']
  %s0 = inlined_call_operand.vmem [shape: f32[16,32], index: 0, kind: input, shape index: {}]
  %s1 = inlined_call_operand.vmem [shape: f32[16,32], index: 1, kind: input, shape index: {}]
  %s2 = inlined_call_operand.vmem [shape: f32[32,32], index: 2, kind: input, shape index: {}]
  %s3 = inlined_call_operand.vmem [shape: f32[32,32], index: 3, kind: input, shape index: {}]
  %s4 = inlined_call_operand.vmem [shape: f32[2,32,64], index: 4, kind: input, shape index: {}]
  %s5 = inlined_call_operand.vmem [shape: f32[2,1,64], index: 5, kind: input, shape index: {}]
  %s6 = inlined_call_operand.vmem [shape: f32[2,32,32], index: 6, kind: input, shape index: {}]
  %s7 = inlined_call_operand.vmem [shape: f32[2,1,32], index: 7, kind: input, shape index: {}]
  %s8 = inlined_call_operand.vmem [shape: f32[2,32,32], index: 8, kind: input, shape index: {}]
  %s9 = inlined_call_operand.vmem [shape: f32[2,1,32], index: 9, kind: input, shape index: {}]
  %s10 = inlined_call_operand.vmem [shape: f32[2,32,32], index: 10, kind: input, shape index: {}]
  %s11 = inlined_call_operand.vmem [shape: f32[2,1,32], index: 11, kind: input, shape index: {}]
  %s12 = inlined_call_operand.vmem [shape: f32[2,32,32], index: 12, kind: input, shape index: {}]
  %s13 = inlined_call_operand.vmem [shape: f32[2,1,32], index: 13, kind: input, shape index: {}]
  %s14 = inlined_call_operand.vmem [shape: f32[2,32,32], index: 14, kind: input, shape index: {}]
  %s15 = inlined_call_operand.vmem [shape: f32[2,1,32], index: 15, kind: input, shape index: {}]
  %s16 = inlined_call_operand.vmem [shape: f32[2,32,32], index: 16, kind: input, shape index: {}]
  %s17 = inlined_call_operand.vmem [shape: f32[2,1,32], index: 17, kind: input, shape index: {}]
  %s18 = inlined_call_operand.vmem [shape: f32[2,32,64], index: 18, kind: input, shape index: {}]
  %s19 = inlined_call_operand.vmem [shape: f32[2,1,64], index: 19, kind: input, shape index: {}]
  %s20 = inlined_call_operand.vmem [shape: f32[2,64,32], index: 20, kind: input, shape index: {}]
  %s21 = inlined_call_operand.vmem [shape: f32[2,1,32], index: 21, kind: input, shape index: {}]
  %s22 = inlined_call_operand.vmem [shape: f32[2,1,32], index: 22, kind: input, shape index: {}]
  %s23 = inlined_call_operand.vmem [shape: f32[2,1,32], index: 23, kind: input, shape index: {}]
  %s24 = inlined_call_operand.vmem [shape: f32[2,1,32], index: 24, kind: input, shape index: {}]
  %s25 = inlined_call_operand.vmem [shape: f32[2,1,32], index: 25, kind: input, shape index: {}]
  %s26 = inlined_call_operand.vmem [shape: f32[2,1,32], index: 26, kind: input, shape index: {}]
  %s27 = inlined_call_operand.vmem [shape: f32[2,1,32], index: 27, kind: input, shape index: {}]
  %s28 = inlined_call_operand.vmem [shape: f32[2,16,32], index: 28, kind: output, shape index: {}]
  %s29 = sld [smem:[#allocation0]]
  $region149: #{transformer_decoder.1} parent=0
    _
  %s31 = ssub.s32 1, %s29
  %s32 = scalar_select 0, %s31, %s29
  loop: start=0, step=1, limit=4
  $region2: #{transformer_decoder.1} parent=0 // loop_pre_header
    _
  $region3: #{transformer_decoder.1} parent=0 // loop_header
    %s34 = sphi 0, %s38
    %p35 = scmp.ge.s32.totalorder %s34, 4
    %s42 = sphi 0, %s42
    %s44 = sphi 0, %s42
    %s45 = sphi 0, %s44
    %s59 = sphi 0, %s45
    %s63 = sphi 0, %s63
    %s65 = sphi 0, %s63
    %s66 = sphi 0, %s65
    %s80 = sphi 0, %s66
    %s84 = sphi 0, %s84
    %s86 = sphi 0, %s84
    %s87 = sphi 0, %s86
    %s101 = sphi 0, %s87
    %s105 = sphi 0, %s105
    %s107 = sphi 0, %s105
    %s108 = sphi 0, %s107
    %s122 = sphi 0, %s108
    %s128 = sphi 0, %s130
    %s131 = sphi 0, %s128
    %s132 = sphi 0, %s131
    %s148 = sphi 0, %s132
    %s154 = sphi 0, %s156
    %s157 = sphi 0, %s154
    %s158 = sphi 0, %s157
    %s174 = sphi 0, %s158
    %s180 = sphi 0, %s182
    %s183 = sphi 0, %s180
    %s184 = sphi 0, %s183
    %s200 = sphi 0, %s184
    %s206 = sphi 0, %s208
    %s209 = sphi 0, %s206
    %s210 = sphi 0, %s209
    %s226 = sphi 0, %s210
    %s232 = sphi 0, %s234
    %s235 = sphi 0, %s232
    %s236 = sphi 0, %s235
    %s252 = sphi 0, %s236
    %s258 = sphi 0, %s260
    %s261 = sphi 0, %s258
    %s262 = sphi 0, %s261
    %s278 = sphi 0, %s262
    %s284 = sphi 0, %s286
    %s287 = sphi 0, %s284
    %s288 = sphi 0, %s287
    %s304 = sphi 0, %s288
    %s310 = sphi 0, %s312
    %s313 = sphi 0, %s310
    %s314 = sphi 0, %s313
    %s330 = sphi 0, %s314
    %s336 = sphi 0, %s338
    %s339 = sphi 0, %s336
    %s340 = sphi 0, %s339
    %s356 = sphi 0, %s340
    %s362 = sphi 0, %s364
    %s365 = sphi 0, %s362
    %s366 = sphi 0, %s365
    %s382 = sphi 0, %s366
    %s388 = sphi 0, %s390
    %s391 = sphi 0, %s388
    %s392 = sphi 0, %s391
    %s408 = sphi 0, %s392
    %s414 = sphi 0, %s416
    %s417 = sphi 0, %s414
    %s418 = sphi 0, %s417
    %s434 = sphi 0, %s418
    %s440 = sphi 0, %s442
    %s443 = sphi 0, %s440
    %s444 = sphi 0, %s443
    %s460 = sphi 0, %s444
    %s466 = sphi 0, %s468
    %s469 = sphi 0, %s466
    %s470 = sphi 0, %s469
    %s486 = sphi 0, %s470
    %s492 = sphi 0, %s494
    %s495 = sphi 0, %s492
    %s496 = sphi 0, %s495
    %s512 = sphi 0, %s496
    %s518 = sphi 0, %s520
    %s521 = sphi 0, %s518
    %s522 = sphi 0, %s521
    %s538 = sphi 0, %s522
    %s544 = sphi 0, %s546
    %s547 = sphi 0, %s544
    %s548 = sphi 0, %s547
    %s564 = sphi 0, %s548
    %s570 = sphi 0, %s572
    %s573 = sphi 0, %s570
    %s574 = sphi 0, %s573
    %s590 = sphi 0, %s574
    %s596 = sphi 0, %s598
    %s599 = sphi 0, %s596
    %s600 = sphi 0, %s599
    %s616 = sphi 0, %s600
    %s622 = sphi 0, %s624
    %s625 = sphi 0, %s622
    %s626 = sphi 0, %s625
    %s642 = sphi 0, %s626
    %s648 = sphi 0, %s650
    %s651 = sphi 0, %s648
    %s652 = sphi 0, %s651
    %s668 = sphi 0, %s652
    %s674 = sphi 0, %s676
    %s677 = sphi 0, %s674
    %s678 = sphi 0, %s677
    %s694 = sphi 0, %s678
    %s700 = sphi 0, %s702
    %s703 = sphi 0, %s700
    %s704 = sphi 0, %s703
    %s720 = sphi 0, %s704
    %s726 = sphi 0, %s728
    %s729 = sphi 0, %s726
    %s730 = sphi 0, %s729
    %s746 = sphi 0, %s730
    %s752 = sphi 0, %s754
    %s755 = sphi 0, %s752
    %s756 = sphi 0, %s755
    %s772 = sphi 0, %s756
  $region4: #{transformer_decoder.1} parent=0 // loop_header_branch
    %37 = sbr.rel (%p35) target = $region8
  $region5: #{transformer_decoder.1} parent=0 // loop_body
    %s39 = ssub.s32 %s34, 1
    %s40 = ssub.s32 %s34, 2
    %s41 = sadd.s32 %s34, 1
    %s43 = sadd.s32 %s42, 1
    %p46 = scmp.eq.s32.totalorder %s34, 1
    %p47 = scmp.ne.s32.totalorder %s42, %s44
    %p48 = scmp.eq.s32.totalorder %s34, 0
    %p49 = por %p47, %p48
    %p50 = scmp.ne.s32.totalorder %s42, %s44
    %p51 = scmp.eq.s32.totalorder %s39, 1
    %p52 = por %p50, %p51
    %p53 = scmp.ne.s32.totalorder %s44, %s45
    %p54 = scmp.eq.s32.totalorder %s39, 0
    %p55 = por %p53, %p54
    %p56 = scmp.ne.s32.totalorder %s44, %s45
    %p57 = scmp.eq.s32.totalorder %s40, 1
    %p58 = por %p56, %p57
    %p60 = scmp.ne.s32.totalorder %s45, %s59
    %p61 = scmp.eq.s32.totalorder %s40, 0
    %p62 = por %p60, %p61
    %s64 = sadd.s32 %s63, 1
    %p67 = scmp.eq.s32.totalorder %s34, 1
    %p68 = scmp.ne.s32.totalorder %s63, %s65
    %p69 = scmp.eq.s32.totalorder %s34, 0
    %p70 = por %p68, %p69
    %p71 = scmp.ne.s32.totalorder %s63, %s65
    %p72 = scmp.eq.s32.totalorder %s39, 1
    %p73 = por %p71, %p72
    %p74 = scmp.ne.s32.totalorder %s65, %s66
    %p75 = scmp.eq.s32.totalorder %s39, 0
    %p76 = por %p74, %p75
    %p77 = scmp.ne.s32.totalorder %s65, %s66
    %p78 = scmp.eq.s32.totalorder %s40, 1
    %p79 = por %p77, %p78
    %p81 = scmp.ne.s32.totalorder %s66, %s80
    %p82 = scmp.eq.s32.totalorder %s40, 0
    %p83 = por %p81, %p82
    %s85 = sadd.s32 %s84, 1
    %p88 = scmp.eq.s32.totalorder %s34, 1
    %p89 = scmp.ne.s32.totalorder %s84, %s86
    %p90 = scmp.eq.s32.totalorder %s34, 0
    %p91 = por %p89, %p90
    %p92 = scmp.ne.s32.totalorder %s84, %s86
    %p93 = scmp.eq.s32.totalorder %s39, 1
    %p94 = por %p92, %p93
    %p95 = scmp.ne.s32.totalorder %s86, %s87
    %p96 = scmp.eq.s32.totalorder %s39, 0
    %p97 = por %p95, %p96
    %p98 = scmp.ne.s32.totalorder %s86, %s87
    %p99 = scmp.eq.s32.totalorder %s40, 1
    %p100 = por %p98, %p99
    %p102 = scmp.ne.s32.totalorder %s87, %s101
    %p103 = scmp.eq.s32.totalorder %s40, 0
    %p104 = por %p102, %p103
    %s106 = sadd.s32 %s105, 1
    %p109 = scmp.eq.s32.totalorder %s34, 1
    %p110 = scmp.ne.s32.totalorder %s105, %s107
    %p111 = scmp.eq.s32.totalorder %s34, 0
    %p112 = por %p110, %p111
    %p113 = scmp.ne.s32.totalorder %s105, %s107
    %p114 = scmp.eq.s32.totalorder %s39, 1
    %p115 = por %p113, %p114
    %p116 = scmp.ne.s32.totalorder %s107, %s108
    %p117 = scmp.eq.s32.totalorder %s39, 0
    %p118 = por %p116, %p117
    %p119 = scmp.ne.s32.totalorder %s107, %s108
    %p120 = scmp.eq.s32.totalorder %s40, 1
    %p121 = por %p119, %p120
    %p123 = scmp.ne.s32.totalorder %s108, %s122
    %p124 = scmp.eq.s32.totalorder %s40, 0
    %p125 = por %p123, %p124
    %s126 = ssub.s32 %s34, %s41
    %p127 = scmp.eq.s32.totalorder %s126, 0
    %s129 = sadd.s32 %s128, 1
    %s130 = scalar_select %p127, %s128, %s129
    %p133 = pneg %p127
    %p134 = scmp.eq.s32.totalorder %s34, 1
    %p135 = por %p133, %p134
    %p136 = scmp.ne.s32.totalorder %s128, %s131
    %p137 = scmp.eq.s32.totalorder %s34, 0
    %p138 = por %p136, %p137
    %p139 = scmp.ne.s32.totalorder %s128, %s131
    %p140 = scmp.eq.s32.totalorder %s39, 1
    %p141 = por %p139, %p140
    %p142 = scmp.ne.s32.totalorder %s131, %s132
    %p143 = scmp.eq.s32.totalorder %s39, 0
    %p144 = por %p142, %p143
    %p145 = scmp.ne.s32.totalorder %s131, %s132
    %p146 = scmp.eq.s32.totalorder %s40, 1
    %p147 = por %p145, %p146
    %p149 = scmp.ne.s32.totalorder %s132, %s148
    %p150 = scmp.eq.s32.totalorder %s40, 0
    %p151 = por %p149, %p150
    %s152 = ssub.s32 %s34, %s41
    %p153 = scmp.eq.s32.totalorder %s152, 0
    %s155 = sadd.s32 %s154, 1
    %s156 = scalar_select %p153, %s154, %s155
    %p159 = pneg %p153
    %p160 = scmp.eq.s32.totalorder %s34, 1
    %p161 = por %p159, %p160
    %p162 = scmp.ne.s32.totalorder %s154, %s157
    %p163 = scmp.eq.s32.totalorder %s34, 0
    %p164 = por %p162, %p163
    %p165 = scmp.ne.s32.totalorder %s154, %s157
    %p166 = scmp.eq.s32.totalorder %s39, 1
    %p167 = por %p165, %p166
    %p168 = scmp.ne.s32.totalorder %s157, %s158
    %p169 = scmp.eq.s32.totalorder %s39, 0
    %p170 = por %p168, %p169
    %p171 = scmp.ne.s32.totalorder %s157, %s158
    %p172 = scmp.eq.s32.totalorder %s40, 1
    %p173 = por %p171, %p172
    %p175 = scmp.ne.s32.totalorder %s158, %s174
    %p176 = scmp.eq.s32.totalorder %s40, 0
    %p177 = por %p175, %p176
    %s178 = ssub.s32 %s34, %s41
    %p179 = scmp.eq.s32.totalorder %s178, 0
    %s181 = sadd.s32 %s180, 1
    %s182 = scalar_select %p179, %s180, %s181
    %p185 = pneg %p179
    %p186 = scmp.eq.s32.totalorder %s34, 1
    %p187 = por %p185, %p186
    %p188 = scmp.ne.s32.totalorder %s180, %s183
    %p189 = scmp.eq.s32.totalorder %s34, 0
    %p190 = por %p188, %p189
    %p191 = scmp.ne.s32.totalorder %s180, %s183
    %p192 = scmp.eq.s32.totalorder %s39, 1
    %p193 = por %p191, %p192
    %p194 = scmp.ne.s32.totalorder %s183, %s184
    %p195 = scmp.eq.s32.totalorder %s39, 0
    %p196 = por %p194, %p195
    %p197 = scmp.ne.s32.totalorder %s183, %s184
    %p198 = scmp.eq.s32.totalorder %s40, 1
    %p199 = por %p197, %p198
    %p201 = scmp.ne.s32.totalorder %s184, %s200
    %p202 = scmp.eq.s32.totalorder %s40, 0
    %p203 = por %p201, %p202
    %s204 = ssub.s32 %s34, %s41
    %p205 = scmp.eq.s32.totalorder %s204, 0
    %s207 = sadd.s32 %s206, 1
    %s208 = scalar_select %p205, %s206, %s207
    %p211 = pneg %p205
    %p212 = scmp.eq.s32.totalorder %s34, 1
    %p213 = por %p211, %p212
    %p214 = scmp.ne.s32.totalorder %s206, %s209
    %p215 = scmp.eq.s32.totalorder %s34, 0
    %p216 = por %p214, %p215
    %p217 = scmp.ne.s32.totalorder %s206, %s209
    %p218 = scmp.eq.s32.totalorder %s39, 1
    %p219 = por %p217, %p218
    %p220 = scmp.ne.s32.totalorder %s209, %s210
    %p221 = scmp.eq.s32.totalorder %s39, 0
    %p222 = por %p220, %p221
    %p223 = scmp.ne.s32.totalorder %s209, %s210
    %p224 = scmp.eq.s32.totalorder %s40, 1
    %p225 = por %p223, %p224
    %p227 = scmp.ne.s32.totalorder %s210, %s226
    %p228 = scmp.eq.s32.totalorder %s40, 0
    %p229 = por %p227, %p228
    %s230 = ssub.s32 %s34, %s41
    %p231 = scmp.eq.s32.totalorder %s230, 0
    %s233 = sadd.s32 %s232, 1
    %s234 = scalar_select %p231, %s232, %s233
    %p237 = pneg %p231
    %p238 = scmp.eq.s32.totalorder %s34, 1
    %p239 = por %p237, %p238
    %p240 = scmp.ne.s32.totalorder %s232, %s235
    %p241 = scmp.eq.s32.totalorder %s34, 0
    %p242 = por %p240, %p241
    %p243 = scmp.ne.s32.totalorder %s232, %s235
    %p244 = scmp.eq.s32.totalorder %s39, 1
    %p245 = por %p243, %p244
    %p246 = scmp.ne.s32.totalorder %s235, %s236
    %p247 = scmp.eq.s32.totalorder %s39, 0
    %p248 = por %p246, %p247
    %p249 = scmp.ne.s32.totalorder %s235, %s236
    %p250 = scmp.eq.s32.totalorder %s40, 1
    %p251 = por %p249, %p250
    %p253 = scmp.ne.s32.totalorder %s236, %s252
    %p254 = scmp.eq.s32.totalorder %s40, 0
    %p255 = por %p253, %p254
    %s256 = ssub.s32 %s34, %s41
    %p257 = scmp.eq.s32.totalorder %s256, 0
    %s259 = sadd.s32 %s258, 1
    %s260 = scalar_select %p257, %s258, %s259
    %p263 = pneg %p257
    %p264 = scmp.eq.s32.totalorder %s34, 1
    %p265 = por %p263, %p264
    %p266 = scmp.ne.s32.totalorder %s258, %s261
    %p267 = scmp.eq.s32.totalorder %s34, 0
    %p268 = por %p266, %p267
    %p269 = scmp.ne.s32.totalorder %s258, %s261
    %p270 = scmp.eq.s32.totalorder %s39, 1
    %p271 = por %p269, %p270
    %p272 = scmp.ne.s32.totalorder %s261, %s262
    %p273 = scmp.eq.s32.totalorder %s39, 0
    %p274 = por %p272, %p273
    %p275 = scmp.ne.s32.totalorder %s261, %s262
    %p276 = scmp.eq.s32.totalorder %s40, 1
    %p277 = por %p275, %p276
    %p279 = scmp.ne.s32.totalorder %s262, %s278
    %p280 = scmp.eq.s32.totalorder %s40, 0
    %p281 = por %p279, %p280
    %s282 = ssub.s32 %s34, %s41
    %p283 = scmp.eq.s32.totalorder %s282, 0
    %s285 = sadd.s32 %s284, 1
    %s286 = scalar_select %p283, %s284, %s285
    %p289 = pneg %p283
    %p290 = scmp.eq.s32.totalorder %s34, 1
    %p291 = por %p289, %p290
    %p292 = scmp.ne.s32.totalorder %s284, %s287
    %p293 = scmp.eq.s32.totalorder %s34, 0
    %p294 = por %p292, %p293
    %p295 = scmp.ne.s32.totalorder %s284, %s287
    %p296 = scmp.eq.s32.totalorder %s39, 1
    %p297 = por %p295, %p296
    %p298 = scmp.ne.s32.totalorder %s287, %s288
    %p299 = scmp.eq.s32.totalorder %s39, 0
    %p300 = por %p298, %p299
    %p301 = scmp.ne.s32.totalorder %s287, %s288
    %p302 = scmp.eq.s32.totalorder %s40, 1
    %p303 = por %p301, %p302
    %p305 = scmp.ne.s32.totalorder %s288, %s304
    %p306 = scmp.eq.s32.totalorder %s40, 0
    %p307 = por %p305, %p306
    %s308 = ssub.s32 %s34, %s41
    %p309 = scmp.eq.s32.totalorder %s308, 0
    %s311 = sadd.s32 %s310, 1
    %s312 = scalar_select %p309, %s310, %s311
    %p315 = pneg %p309
    %p316 = scmp.eq.s32.totalorder %s34, 1
    %p317 = por %p315, %p316
    %p318 = scmp.ne.s32.totalorder %s310, %s313
    %p319 = scmp.eq.s32.totalorder %s34, 0
    %p320 = por %p318, %p319
    %p321 = scmp.ne.s32.totalorder %s310, %s313
    %p322 = scmp.eq.s32.totalorder %s39, 1
    %p323 = por %p321, %p322
    %p324 = scmp.ne.s32.totalorder %s313, %s314
    %p325 = scmp.eq.s32.totalorder %s39, 0
    %p326 = por %p324, %p325
    %p327 = scmp.ne.s32.totalorder %s313, %s314
    %p328 = scmp.eq.s32.totalorder %s40, 1
    %p329 = por %p327, %p328
    %p331 = scmp.ne.s32.totalorder %s314, %s330
    %p332 = scmp.eq.s32.totalorder %s40, 0
    %p333 = por %p331, %p332
    %s334 = ssub.s32 %s34, %s41
    %p335 = scmp.eq.s32.totalorder %s334, 0
    %s337 = sadd.s32 %s336, 1
    %s338 = scalar_select %p335, %s336, %s337
    %p341 = pneg %p335
    %p342 = scmp.eq.s32.totalorder %s34, 1
    %p343 = por %p341, %p342
    %p344 = scmp.ne.s32.totalorder %s336, %s339
    %p345 = scmp.eq.s32.totalorder %s34, 0
    %p346 = por %p344, %p345
    %p347 = scmp.ne.s32.totalorder %s336, %s339
    %p348 = scmp.eq.s32.totalorder %s39, 1
    %p349 = por %p347, %p348
    %p350 = scmp.ne.s32.totalorder %s339, %s340
    %p351 = scmp.eq.s32.totalorder %s39, 0
    %p352 = por %p350, %p351
    %p353 = scmp.ne.s32.totalorder %s339, %s340
    %p354 = scmp.eq.s32.totalorder %s40, 1
    %p355 = por %p353, %p354
    %p357 = scmp.ne.s32.totalorder %s340, %s356
    %p358 = scmp.eq.s32.totalorder %s40, 0
    %p359 = por %p357, %p358
    %s360 = ssub.s32 %s34, %s41
    %p361 = scmp.eq.s32.totalorder %s360, 0
    %s363 = sadd.s32 %s362, 1
    %s364 = scalar_select %p361, %s362, %s363
    %p367 = pneg %p361
    %p368 = scmp.eq.s32.totalorder %s34, 1
    %p369 = por %p367, %p368
    %p370 = scmp.ne.s32.totalorder %s362, %s365
    %p371 = scmp.eq.s32.totalorder %s34, 0
    %p372 = por %p370, %p371
    %p373 = scmp.ne.s32.totalorder %s362, %s365
    %p374 = scmp.eq.s32.totalorder %s39, 1
    %p375 = por %p373, %p374
    %p376 = scmp.ne.s32.totalorder %s365, %s366
    %p377 = scmp.eq.s32.totalorder %s39, 0
    %p378 = por %p376, %p377
    %p379 = scmp.ne.s32.totalorder %s365, %s366
    %p380 = scmp.eq.s32.totalorder %s40, 1
    %p381 = por %p379, %p380
    %p383 = scmp.ne.s32.totalorder %s366, %s382
    %p384 = scmp.eq.s32.totalorder %s40, 0
    %p385 = por %p383, %p384
    %s386 = ssub.s32 %s34, %s41
    %p387 = scmp.eq.s32.totalorder %s386, 0
    %s389 = sadd.s32 %s388, 1
    %s390 = scalar_select %p387, %s388, %s389
    %p393 = pneg %p387
    %p394 = scmp.eq.s32.totalorder %s34, 1
    %p395 = por %p393, %p394
    %p396 = scmp.ne.s32.totalorder %s388, %s391
    %p397 = scmp.eq.s32.totalorder %s34, 0
    %p398 = por %p396, %p397
    %p399 = scmp.ne.s32.totalorder %s388, %s391
    %p400 = scmp.eq.s32.totalorder %s39, 1
    %p401 = por %p399, %p400
    %p402 = scmp.ne.s32.totalorder %s391, %s392
    %p403 = scmp.eq.s32.totalorder %s39, 0
    %p404 = por %p402, %p403
    %p405 = scmp.ne.s32.totalorder %s391, %s392
    %p406 = scmp.eq.s32.totalorder %s40, 1
    %p407 = por %p405, %p406
    %p409 = scmp.ne.s32.totalorder %s392, %s408
    %p410 = scmp.eq.s32.totalorder %s40, 0
    %p411 = por %p409, %p410
    %s412 = ssub.s32 %s34, %s41
    %p413 = scmp.eq.s32.totalorder %s412, 0
    %s415 = sadd.s32 %s414, 1
    %s416 = scalar_select %p413, %s414, %s415
    %p419 = pneg %p413
    %p420 = scmp.eq.s32.totalorder %s34, 1
    %p421 = por %p419, %p420
    %p422 = scmp.ne.s32.totalorder %s414, %s417
    %p423 = scmp.eq.s32.totalorder %s34, 0
    %p424 = por %p422, %p423
    %p425 = scmp.ne.s32.totalorder %s414, %s417
    %p426 = scmp.eq.s32.totalorder %s39, 1
    %p427 = por %p425, %p426
    %p428 = scmp.ne.s32.totalorder %s417, %s418
    %p429 = scmp.eq.s32.totalorder %s39, 0
    %p430 = por %p428, %p429
    %p431 = scmp.ne.s32.totalorder %s417, %s418
    %p432 = scmp.eq.s32.totalorder %s40, 1
    %p433 = por %p431, %p432
    %p435 = scmp.ne.s32.totalorder %s418, %s434
    %p436 = scmp.eq.s32.totalorder %s40, 0
    %p437 = por %p435, %p436
    %s438 = ssub.s32 %s34, %s41
    %p439 = scmp.eq.s32.totalorder %s438, 0
    %s441 = sadd.s32 %s440, 1
    %s442 = scalar_select %p439, %s440, %s441
    %p445 = pneg %p439
    %p446 = scmp.eq.s32.totalorder %s34, 1
    %p447 = por %p445, %p446
    %p448 = scmp.ne.s32.totalorder %s440, %s443
    %p449 = scmp.eq.s32.totalorder %s34, 0
    %p450 = por %p448, %p449
    %p451 = scmp.ne.s32.totalorder %s440, %s443
    %p452 = scmp.eq.s32.totalorder %s39, 1
    %p453 = por %p451, %p452
    %p454 = scmp.ne.s32.totalorder %s443, %s444
    %p455 = scmp.eq.s32.totalorder %s39, 0
    %p456 = por %p454, %p455
    %p457 = scmp.ne.s32.totalorder %s443, %s444
    %p458 = scmp.eq.s32.totalorder %s40, 1
    %p459 = por %p457, %p458
    %p461 = scmp.ne.s32.totalorder %s444, %s460
    %p462 = scmp.eq.s32.totalorder %s40, 0
    %p463 = por %p461, %p462
    %s464 = ssub.s32 %s34, %s41
    %p465 = scmp.eq.s32.totalorder %s464, 0
    %s467 = sadd.s32 %s466, 1
    %s468 = scalar_select %p465, %s466, %s467
    %p471 = pneg %p465
    %p472 = scmp.eq.s32.totalorder %s34, 1
    %p473 = por %p471, %p472
    %p474 = scmp.ne.s32.totalorder %s466, %s469
    %p475 = scmp.eq.s32.totalorder %s34, 0
    %p476 = por %p474, %p475
    %p477 = scmp.ne.s32.totalorder %s466, %s469
    %p478 = scmp.eq.s32.totalorder %s39, 1
    %p479 = por %p477, %p478
    %p480 = scmp.ne.s32.totalorder %s469, %s470
    %p481 = scmp.eq.s32.totalorder %s39, 0
    %p482 = por %p480, %p481
    %p483 = scmp.ne.s32.totalorder %s469, %s470
    %p484 = scmp.eq.s32.totalorder %s40, 1
    %p485 = por %p483, %p484
    %p487 = scmp.ne.s32.totalorder %s470, %s486
    %p488 = scmp.eq.s32.totalorder %s40, 0
    %p489 = por %p487, %p488
    %s490 = ssub.s32 %s34, %s41
    %p491 = scmp.eq.s32.totalorder %s490, 0
    %s493 = sadd.s32 %s492, 1
    %s494 = scalar_select %p491, %s492, %s493
    %p497 = pneg %p491
    %p498 = scmp.eq.s32.totalorder %s34, 1
    %p499 = por %p497, %p498
    %p500 = scmp.ne.s32.totalorder %s492, %s495
    %p501 = scmp.eq.s32.totalorder %s34, 0
    %p502 = por %p500, %p501
    %p503 = scmp.ne.s32.totalorder %s492, %s495
    %p504 = scmp.eq.s32.totalorder %s39, 1
    %p505 = por %p503, %p504
    %p506 = scmp.ne.s32.totalorder %s495, %s496
    %p507 = scmp.eq.s32.totalorder %s39, 0
    %p508 = por %p506, %p507
    %p509 = scmp.ne.s32.totalorder %s495, %s496
    %p510 = scmp.eq.s32.totalorder %s40, 1
    %p511 = por %p509, %p510
    %p513 = scmp.ne.s32.totalorder %s496, %s512
    %p514 = scmp.eq.s32.totalorder %s40, 0
    %p515 = por %p513, %p514
    %s516 = ssub.s32 %s34, %s41
    %p517 = scmp.eq.s32.totalorder %s516, 0
    %s519 = sadd.s32 %s518, 1
    %s520 = scalar_select %p517, %s518, %s519
    %p523 = pneg %p517
    %p524 = scmp.eq.s32.totalorder %s34, 1
    %p525 = por %p523, %p524
    %p526 = scmp.ne.s32.totalorder %s518, %s521
    %p527 = scmp.eq.s32.totalorder %s34, 0
    %p528 = por %p526, %p527
    %p529 = scmp.ne.s32.totalorder %s518, %s521
    %p530 = scmp.eq.s32.totalorder %s39, 1
    %p531 = por %p529, %p530
    %p532 = scmp.ne.s32.totalorder %s521, %s522
    %p533 = scmp.eq.s32.totalorder %s39, 0
    %p534 = por %p532, %p533
    %p535 = scmp.ne.s32.totalorder %s521, %s522
    %p536 = scmp.eq.s32.totalorder %s40, 1
    %p537 = por %p535, %p536
    %p539 = scmp.ne.s32.totalorder %s522, %s538
    %p540 = scmp.eq.s32.totalorder %s40, 0
    %p541 = por %p539, %p540
    %s542 = ssub.s32 %s34, %s41
    %p543 = scmp.eq.s32.totalorder %s542, 0
    %s545 = sadd.s32 %s544, 1
    %s546 = scalar_select %p543, %s544, %s545
    %p549 = pneg %p543
    %p550 = scmp.eq.s32.totalorder %s34, 1
    %p551 = por %p549, %p550
    %p552 = scmp.ne.s32.totalorder %s544, %s547
    %p553 = scmp.eq.s32.totalorder %s34, 0
    %p554 = por %p552, %p553
    %p555 = scmp.ne.s32.totalorder %s544, %s547
    %p556 = scmp.eq.s32.totalorder %s39, 1
    %p557 = por %p555, %p556
    %p558 = scmp.ne.s32.totalorder %s547, %s548
    %p559 = scmp.eq.s32.totalorder %s39, 0
    %p560 = por %p558, %p559
    %p561 = scmp.ne.s32.totalorder %s547, %s548
    %p562 = scmp.eq.s32.totalorder %s40, 1
    %p563 = por %p561, %p562
    %p565 = scmp.ne.s32.totalorder %s548, %s564
    %p566 = scmp.eq.s32.totalorder %s40, 0
    %p567 = por %p565, %p566
    %s568 = ssub.s32 %s34, %s41
    %p569 = scmp.eq.s32.totalorder %s568, 0
    %s571 = sadd.s32 %s570, 1
    %s572 = scalar_select %p569, %s570, %s571
    %p575 = pneg %p569
    %p576 = scmp.eq.s32.totalorder %s34, 1
    %p577 = por %p575, %p576
    %p578 = scmp.ne.s32.totalorder %s570, %s573
    %p579 = scmp.eq.s32.totalorder %s34, 0
    %p580 = por %p578, %p579
    %p581 = scmp.ne.s32.totalorder %s570, %s573
    %p582 = scmp.eq.s32.totalorder %s39, 1
    %p583 = por %p581, %p582
    %p584 = scmp.ne.s32.totalorder %s573, %s574
    %p585 = scmp.eq.s32.totalorder %s39, 0
    %p586 = por %p584, %p585
    %p587 = scmp.ne.s32.totalorder %s573, %s574
    %p588 = scmp.eq.s32.totalorder %s40, 1
    %p589 = por %p587, %p588
    %p591 = scmp.ne.s32.totalorder %s574, %s590
    %p592 = scmp.eq.s32.totalorder %s40, 0
    %p593 = por %p591, %p592
    %s594 = ssub.s32 %s34, %s41
    %p595 = scmp.eq.s32.totalorder %s594, 0
    %s597 = sadd.s32 %s596, 1
    %s598 = scalar_select %p595, %s596, %s597
    %p601 = pneg %p595
    %p602 = scmp.eq.s32.totalorder %s34, 1
    %p603 = por %p601, %p602
    %p604 = scmp.ne.s32.totalorder %s596, %s599
    %p605 = scmp.eq.s32.totalorder %s34, 0
    %p606 = por %p604, %p605
    %p607 = scmp.ne.s32.totalorder %s596, %s599
    %p608 = scmp.eq.s32.totalorder %s39, 1
    %p609 = por %p607, %p608
    %p610 = scmp.ne.s32.totalorder %s599, %s600
    %p611 = scmp.eq.s32.totalorder %s39, 0
    %p612 = por %p610, %p611
    %p613 = scmp.ne.s32.totalorder %s599, %s600
    %p614 = scmp.eq.s32.totalorder %s40, 1
    %p615 = por %p613, %p614
    %p617 = scmp.ne.s32.totalorder %s600, %s616
    %p618 = scmp.eq.s32.totalorder %s40, 0
    %p619 = por %p617, %p618
    %s620 = ssub.s32 %s34, %s41
    %p621 = scmp.eq.s32.totalorder %s620, 0
    %s623 = sadd.s32 %s622, 1
    %s624 = scalar_select %p621, %s622, %s623
    %p627 = pneg %p621
    %p628 = scmp.eq.s32.totalorder %s34, 1
    %p629 = por %p627, %p628
    %p630 = scmp.ne.s32.totalorder %s622, %s625
    %p631 = scmp.eq.s32.totalorder %s34, 0
    %p632 = por %p630, %p631
    %p633 = scmp.ne.s32.totalorder %s622, %s625
    %p634 = scmp.eq.s32.totalorder %s39, 1
    %p635 = por %p633, %p634
    %p636 = scmp.ne.s32.totalorder %s625, %s626
    %p637 = scmp.eq.s32.totalorder %s39, 0
    %p638 = por %p636, %p637
    %p639 = scmp.ne.s32.totalorder %s625, %s626
    %p640 = scmp.eq.s32.totalorder %s40, 1
    %p641 = por %p639, %p640
    %p643 = scmp.ne.s32.totalorder %s626, %s642
    %p644 = scmp.eq.s32.totalorder %s40, 0
    %p645 = por %p643, %p644
    %s646 = ssub.s32 %s34, %s41
    %p647 = scmp.eq.s32.totalorder %s646, 0
    %s649 = sadd.s32 %s648, 1
    %s650 = scalar_select %p647, %s648, %s649
    %p653 = pneg %p647
    %p654 = scmp.eq.s32.totalorder %s34, 1
    %p655 = por %p653, %p654
    %p656 = scmp.ne.s32.totalorder %s648, %s651
    %p657 = scmp.eq.s32.totalorder %s34, 0
    %p658 = por %p656, %p657
    %p659 = scmp.ne.s32.totalorder %s648, %s651
    %p660 = scmp.eq.s32.totalorder %s39, 1
    %p661 = por %p659, %p660
    %p662 = scmp.ne.s32.totalorder %s651, %s652
    %p663 = scmp.eq.s32.totalorder %s39, 0
    %p664 = por %p662, %p663
    %p665 = scmp.ne.s32.totalorder %s651, %s652
    %p666 = scmp.eq.s32.totalorder %s40, 1
    %p667 = por %p665, %p666
    %p669 = scmp.ne.s32.totalorder %s652, %s668
    %p670 = scmp.eq.s32.totalorder %s40, 0
    %p671 = por %p669, %p670
    %s672 = ssub.s32 %s34, %s41
    %p673 = scmp.eq.s32.totalorder %s672, 0
    %s675 = sadd.s32 %s674, 1
    %s676 = scalar_select %p673, %s674, %s675
    %p679 = pneg %p673
    %p680 = scmp.eq.s32.totalorder %s34, 1
    %p681 = por %p679, %p680
    %p682 = scmp.ne.s32.totalorder %s674, %s677
    %p683 = scmp.eq.s32.totalorder %s34, 0
    %p684 = por %p682, %p683
    %p685 = scmp.ne.s32.totalorder %s674, %s677
    %p686 = scmp.eq.s32.totalorder %s39, 1
    %p687 = por %p685, %p686
    %p688 = scmp.ne.s32.totalorder %s677, %s678
    %p689 = scmp.eq.s32.totalorder %s39, 0
    %p690 = por %p688, %p689
    %p691 = scmp.ne.s32.totalorder %s677, %s678
    %p692 = scmp.eq.s32.totalorder %s40, 1
    %p693 = por %p691, %p692
    %p695 = scmp.ne.s32.totalorder %s678, %s694
    %p696 = scmp.eq.s32.totalorder %s40, 0
    %p697 = por %p695, %p696
    %s698 = ssub.s32 %s34, %s41
    %p699 = scmp.eq.s32.totalorder %s698, 0
    %s701 = sadd.s32 %s700, 1
    %s702 = scalar_select %p699, %s700, %s701
    %p705 = pneg %p699
    %p706 = scmp.eq.s32.totalorder %s34, 1
    %p707 = por %p705, %p706
    %p708 = scmp.ne.s32.totalorder %s700, %s703
    %p709 = scmp.eq.s32.totalorder %s34, 0
    %p710 = por %p708, %p709
    %p711 = scmp.ne.s32.totalorder %s700, %s703
    %p712 = scmp.eq.s32.totalorder %s39, 1
    %p713 = por %p711, %p712
    %p714 = scmp.ne.s32.totalorder %s703, %s704
    %p715 = scmp.eq.s32.totalorder %s39, 0
    %p716 = por %p714, %p715
    %p717 = scmp.ne.s32.totalorder %s703, %s704
    %p718 = scmp.eq.s32.totalorder %s40, 1
    %p719 = por %p717, %p718
    %p721 = scmp.ne.s32.totalorder %s704, %s720
    %p722 = scmp.eq.s32.totalorder %s40, 0
    %p723 = por %p721, %p722
    %s724 = ssub.s32 %s34, %s41
    %p725 = scmp.eq.s32.totalorder %s724, 0
    %s727 = sadd.s32 %s726, 1
    %s728 = scalar_select %p725, %s726, %s727
    %p731 = pneg %p725
    %p732 = scmp.eq.s32.totalorder %s34, 1
    %p733 = por %p731, %p732
    %p734 = scmp.ne.s32.totalorder %s726, %s729
    %p735 = scmp.eq.s32.totalorder %s34, 0
    %p736 = por %p734, %p735
    %p737 = scmp.ne.s32.totalorder %s726, %s729
    %p738 = scmp.eq.s32.totalorder %s39, 1
    %p739 = por %p737, %p738
    %p740 = scmp.ne.s32.totalorder %s729, %s730
    %p741 = scmp.eq.s32.totalorder %s39, 0
    %p742 = por %p740, %p741
    %p743 = scmp.ne.s32.totalorder %s729, %s730
    %p744 = scmp.eq.s32.totalorder %s40, 1
    %p745 = por %p743, %p744
    %p747 = scmp.ne.s32.totalorder %s730, %s746
    %p748 = scmp.eq.s32.totalorder %s40, 0
    %p749 = por %p747, %p748
    %s750 = ssub.s32 %s34, %s41
    %p751 = scmp.eq.s32.totalorder %s750, 0
    %s753 = sadd.s32 %s752, 1
    %s754 = scalar_select %p751, %s752, %s753
    %p757 = pneg %p751
    %p758 = scmp.eq.s32.totalorder %s34, 1
    %p759 = por %p757, %p758
    %p760 = scmp.ne.s32.totalorder %s752, %s755
    %p761 = scmp.eq.s32.totalorder %s34, 0
    %p762 = por %p760, %p761
    %p763 = scmp.ne.s32.totalorder %s752, %s755
    %p764 = scmp.eq.s32.totalorder %s39, 1
    %p765 = por %p763, %p764
    %p766 = scmp.ne.s32.totalorder %s755, %s756
    %p767 = scmp.eq.s32.totalorder %s39, 0
    %p768 = por %p766, %p767
    %p769 = scmp.ne.s32.totalorder %s755, %s756
    %p770 = scmp.eq.s32.totalorder %s40, 1
    %p771 = por %p769, %p770
    %p773 = scmp.ne.s32.totalorder %s756, %s772
    %p774 = scmp.eq.s32.totalorder %s40, 0
    %p775 = por %p773, %p774
    %p776 = scmp.le.s32.totalorder 1, %s34
    %p777 = scmp.lt.s32.totalorder %s34, 3
    %p778 = pnand %p776, %p777
    %p779 = pneg %p778
    // Predicated region
    $region9: #{transformer_decoder.1} parent=5 // pred_check
      _
    $region10: #{transformer_decoder.1} parent=5 // pred_check_branch
      %781 = sbr.rel (%p778) target = $region12
    $region11: #{transformer_decoder.1} parent=5 // pred_region
      %s782 = ssub.s32 %s34, 1
      // Predicated region
      $region13: #{transformer_decoder.1} parent=11 // pred_check
        %p783 = pneg %p55
      $region14: #{transformer_decoder.1} parent=11 // pred_check_branch
        %785 = sbr.rel (%p783) target = $region16
      $region15: #{transformer_decoder.1} parent=11 // pred_region
        _
      $region16: #{transformer_decoder.1} parent=11 // pred_fallthru
        _
      // Predicated region
      $region17: #{transformer_decoder.1} parent=11 // pred_check
        %p786 = pneg %p76
      $region18: #{transformer_decoder.1} parent=11 // pred_check_branch
        %788 = sbr.rel (%p786) target = $region20
      $region19: #{transformer_decoder.1} parent=11 // pred_region
        _
      $region20: #{transformer_decoder.1} parent=11 // pred_fallthru
        _
      // Predicated region
      $region21: #{transformer_decoder.1} parent=11 // pred_check
        %p789 = pneg %p97
      $region22: #{transformer_decoder.1} parent=11 // pred_check_branch
        %791 = sbr.rel (%p789) target = $region24
      $region23: #{transformer_decoder.1} parent=11 // pred_region
        _
      $region24: #{transformer_decoder.1} parent=11 // pred_fallthru
        _
      // Predicated region
      $region25: #{transformer_decoder.1} parent=11 // pred_check
        %p792 = pneg %p118
      $region26: #{transformer_decoder.1} parent=11 // pred_check_branch
        %794 = sbr.rel (%p792) target = $region28
      $region27: #{transformer_decoder.1} parent=11 // pred_region
        _
      $region28: #{transformer_decoder.1} parent=11 // pred_fallthru
        _
    $region12: #{transformer_decoder.1} parent=5 // pred_fallthru
      _
    %p795 = scmp.lt.s32.totalorder %s34, 2
    // Predicated region
    $region29: #{transformer_decoder.1} parent=5 // pred_check
      %p796 = pneg %p795
    $region30: #{transformer_decoder.1} parent=5 // pred_check_branch
      %798 = sbr.rel (%p796) target = $region32
    $region31: #{transformer_decoder.1} parent=5 // pred_region
      // Predicated region
      $region33: #{transformer_decoder.1} parent=31 // pred_check
        %p799 = pneg %p138
      $region34: #{transformer_decoder.1} parent=31 // pred_check_branch
        %801 = sbr.rel (%p799) target = $region36
      $region35: #{transformer_decoder.1} parent=31 // pred_region
        %p802 = scmp.lt.s32.totalorder %s34, 1
        %s803 = scalar_select %p802, %s34, 1
        %s804 = smul.addr %s803, 4
        %s805 = smul.addr %s804, 8
        %s806 = scalar_lea.vmem %s4, %s805
      $region36: #{transformer_decoder.1} parent=31 // pred_fallthru
        _
      // Predicated region
      $region37: #{transformer_decoder.1} parent=31 // pred_check
        %p807 = pneg %p164
      $region38: #{transformer_decoder.1} parent=31 // pred_check_branch
        %809 = sbr.rel (%p807) target = $region40
      $region39: #{transformer_decoder.1} parent=31 // pred_region
        %p810 = scmp.lt.s32.totalorder %s34, 1
        %s811 = scalar_select %p810, %s34, 1
        %s812 = scalar_lea.vmem %s5, %s811
      $region40: #{transformer_decoder.1} parent=31 // pred_fallthru
        _
      // Predicated region
      $region41: #{transformer_decoder.1} parent=31 // pred_check
        %p813 = pneg %p190
      $region42: #{transformer_decoder.1} parent=31 // pred_check_branch
        %815 = sbr.rel (%p813) target = $region44
      $region43: #{transformer_decoder.1} parent=31 // pred_region
        %p816 = scmp.lt.s32.totalorder %s34, 1
        %s817 = scalar_select %p816, %s34, 1
        %s818 = smul.addr %s817, 4
        %s819 = smul.addr %s818, 8
        %s820 = scalar_lea.vmem %s6, %s819
      $region44: #{transformer_decoder.1} parent=31 // pred_fallthru
        _
      // Predicated region
      $region45: #{transformer_decoder.1} parent=31 // pred_check
        %p821 = pneg %p216
      $region46: #{transformer_decoder.1} parent=31 // pred_check_branch
        %823 = sbr.rel (%p821) target = $region48
      $region47: #{transformer_decoder.1} parent=31 // pred_region
        %p824 = scmp.lt.s32.totalorder %s34, 1
        %s825 = scalar_select %p824, %s34, 1
        %s826 = scalar_lea.vmem %s7, %s825
      $region48: #{transformer_decoder.1} parent=31 // pred_fallthru
        _
      // Predicated region
      $region49: #{transformer_decoder.1} parent=31 // pred_check
        %p827 = pneg %p242
      $region50: #{transformer_decoder.1} parent=31 // pred_check_branch
        %829 = sbr.rel (%p827) target = $region52
      $region51: #{transformer_decoder.1} parent=31 // pred_region
        %p830 = scmp.lt.s32.totalorder %s34, 1
        %s831 = scalar_select %p830, %s34, 1
        %s832 = smul.addr %s831, 4
        %s833 = smul.addr %s832, 8
        %s834 = scalar_lea.vmem %s8, %s833
      $region52: #{transformer_decoder.1} parent=31 // pred_fallthru
        _
      // Predicated region
      $region53: #{transformer_decoder.1} parent=31 // pred_check
        %p835 = pneg %p268
      $region54: #{transformer_decoder.1} parent=31 // pred_check_branch
        %837 = sbr.rel (%p835) target = $region56
      $region55: #{transformer_decoder.1} parent=31 // pred_region
        %p838 = scmp.lt.s32.totalorder %s34, 1
        %s839 = scalar_select %p838, %s34, 1
        %s840 = scalar_lea.vmem %s9, %s839
      $region56: #{transformer_decoder.1} parent=31 // pred_fallthru
        _
      // Predicated region
      $region57: #{transformer_decoder.1} parent=31 // pred_check
        %p841 = pneg %p294
      $region58: #{transformer_decoder.1} parent=31 // pred_check_branch
        %843 = sbr.rel (%p841) target = $region60
      $region59: #{transformer_decoder.1} parent=31 // pred_region
        %p844 = scmp.lt.s32.totalorder %s34, 1
        %s845 = scalar_select %p844, %s34, 1
        %s846 = smul.addr %s845, 4
        %s847 = smul.addr %s846, 8
        %s848 = scalar_lea.vmem %s10, %s847
      $region60: #{transformer_decoder.1} parent=31 // pred_fallthru
        _
      // Predicated region
      $region61: #{transformer_decoder.1} parent=31 // pred_check
        %p849 = pneg %p320
      $region62: #{transformer_decoder.1} parent=31 // pred_check_branch
        %851 = sbr.rel (%p849) target = $region64
      $region63: #{transformer_decoder.1} parent=31 // pred_region
        %p852 = scmp.lt.s32.totalorder %s34, 1
        %s853 = scalar_select %p852, %s34, 1
        %s854 = scalar_lea.vmem %s11, %s853
      $region64: #{transformer_decoder.1} parent=31 // pred_fallthru
        _
      // Predicated region
      $region65: #{transformer_decoder.1} parent=31 // pred_check
        %p855 = pneg %p346
      $region66: #{transformer_decoder.1} parent=31 // pred_check_branch
        %857 = sbr.rel (%p855) target = $region68
      $region67: #{transformer_decoder.1} parent=31 // pred_region
        %p858 = scmp.lt.s32.totalorder %s34, 1
        %s859 = scalar_select %p858, %s34, 1
        %s860 = smul.addr %s859, 4
        %s861 = smul.addr %s860, 8
        %s862 = scalar_lea.vmem %s12, %s861
      $region68: #{transformer_decoder.1} parent=31 // pred_fallthru
        _
      // Predicated region
      $region69: #{transformer_decoder.1} parent=31 // pred_check
        %p863 = pneg %p372
      $region70: #{transformer_decoder.1} parent=31 // pred_check_branch
        %865 = sbr.rel (%p863) target = $region72
      $region71: #{transformer_decoder.1} parent=31 // pred_region
        %p866 = scmp.lt.s32.totalorder %s34, 1
        %s867 = scalar_select %p866, %s34, 1
        %s868 = scalar_lea.vmem %s13, %s867
      $region72: #{transformer_decoder.1} parent=31 // pred_fallthru
        _
      // Predicated region
      $region73: #{transformer_decoder.1} parent=31 // pred_check
        %p869 = pneg %p398
      $region74: #{transformer_decoder.1} parent=31 // pred_check_branch
        %871 = sbr.rel (%p869) target = $region76
      $region75: #{transformer_decoder.1} parent=31 // pred_region
        %p872 = scmp.lt.s32.totalorder %s34, 1
        %s873 = scalar_select %p872, %s34, 1
        %s874 = smul.addr %s873, 4
        %s875 = smul.addr %s874, 8
        %s876 = scalar_lea.vmem %s14, %s875
      $region76: #{transformer_decoder.1} parent=31 // pred_fallthru
        _
      // Predicated region
      $region77: #{transformer_decoder.1} parent=31 // pred_check
        %p877 = pneg %p424
      $region78: #{transformer_decoder.1} parent=31 // pred_check_branch
        %879 = sbr.rel (%p877) target = $region80
      $region79: #{transformer_decoder.1} parent=31 // pred_region
        %p880 = scmp.lt.s32.totalorder %s34, 1
        %s881 = scalar_select %p880, %s34, 1
        %s882 = scalar_lea.vmem %s15, %s881
      $region80: #{transformer_decoder.1} parent=31 // pred_fallthru
        _
      // Predicated region
      $region81: #{transformer_decoder.1} parent=31 // pred_check
        %p883 = pneg %p450
      $region82: #{transformer_decoder.1} parent=31 // pred_check_branch
        %885 = sbr.rel (%p883) target = $region84
      $region83: #{transformer_decoder.1} parent=31 // pred_region
        %p886 = scmp.lt.s32.totalorder %s34, 1
        %s887 = scalar_select %p886, %s34, 1
        %s888 = smul.addr %s887, 4
        %s889 = smul.addr %s888, 8
        %s890 = scalar_lea.vmem %s16, %s889
      $region84: #{transformer_decoder.1} parent=31 // pred_fallthru
        _
      // Predicated region
      $region85: #{transformer_decoder.1} parent=31 // pred_check
        %p891 = pneg %p476
      $region86: #{transformer_decoder.1} parent=31 // pred_check_branch
        %893 = sbr.rel (%p891) target = $region88
      $region87: #{transformer_decoder.1} parent=31 // pred_region
        %p894 = scmp.lt.s32.totalorder %s34, 1
        %s895 = scalar_select %p894, %s34, 1
        %s896 = scalar_lea.vmem %s17, %s895
      $region88: #{transformer_decoder.1} parent=31 // pred_fallthru
        _
      // Predicated region
      $region89: #{transformer_decoder.1} parent=31 // pred_check
        %p897 = pneg %p502
      $region90: #{transformer_decoder.1} parent=31 // pred_check_branch
        %899 = sbr.rel (%p897) target = $region92
      $region91: #{transformer_decoder.1} parent=31 // pred_region
        %p900 = scmp.lt.s32.totalorder %s34, 1
        %s901 = scalar_select %p900, %s34, 1
        %s902 = smul.addr %s901, 4
        %s903 = smul.addr %s902, 8
        %s904 = scalar_lea.vmem %s18, %s903
      $region92: #{transformer_decoder.1} parent=31 // pred_fallthru
        _
      // Predicated region
      $region93: #{transformer_decoder.1} parent=31 // pred_check
        %p905 = pneg %p528
      $region94: #{transformer_decoder.1} parent=31 // pred_check_branch
        %907 = sbr.rel (%p905) target = $region96
      $region95: #{transformer_decoder.1} parent=31 // pred_region
        %p908 = scmp.lt.s32.totalorder %s34, 1
        %s909 = scalar_select %p908, %s34, 1
        %s910 = scalar_lea.vmem %s19, %s909
      $region96: #{transformer_decoder.1} parent=31 // pred_fallthru
        _
      // Predicated region
      $region97: #{transformer_decoder.1} parent=31 // pred_check
        %p911 = pneg %p554
      $region98: #{transformer_decoder.1} parent=31 // pred_check_branch
        %913 = sbr.rel (%p911) target = $region100
      $region99: #{transformer_decoder.1} parent=31 // pred_region
        %p914 = scmp.lt.s32.totalorder %s34, 1
        %s915 = scalar_select %p914, %s34, 1
        %s916 = smul.addr %s915, 8
        %s917 = smul.addr %s916, 8
        %s918 = scalar_lea.vmem %s20, %s917
      $region100: #{transformer_decoder.1} parent=31 // pred_fallthru
        _
      // Predicated region
      $region101: #{transformer_decoder.1} parent=31 // pred_check
        %p919 = pneg %p580
      $region102: #{transformer_decoder.1} parent=31 // pred_check_branch
        %921 = sbr.rel (%p919) target = $region104
      $region103: #{transformer_decoder.1} parent=31 // pred_region
        %p922 = scmp.lt.s32.totalorder %s34, 1
        %s923 = scalar_select %p922, %s34, 1
        %s924 = scalar_lea.vmem %s21, %s923
      $region104: #{transformer_decoder.1} parent=31 // pred_fallthru
        _
      // Predicated region
      $region105: #{transformer_decoder.1} parent=31 // pred_check
        %p925 = pneg %p606
      $region106: #{transformer_decoder.1} parent=31 // pred_check_branch
        %927 = sbr.rel (%p925) target = $region108
      $region107: #{transformer_decoder.1} parent=31 // pred_region
        %p928 = scmp.lt.s32.totalorder %s34, 1
        %s929 = scalar_select %p928, %s34, 1
        %s930 = scalar_lea.vmem %s22, %s929
      $region108: #{transformer_decoder.1} parent=31 // pred_fallthru
        _
      // Predicated region
      $region109: #{transformer_decoder.1} parent=31 // pred_check
        %p931 = pneg %p632
      $region110: #{transformer_decoder.1} parent=31 // pred_check_branch
        %933 = sbr.rel (%p931) target = $region112
      $region111: #{transformer_decoder.1} parent=31 // pred_region
        %p934 = scmp.lt.s32.totalorder %s34, 1
        %s935 = scalar_select %p934, %s34, 1
        %s936 = scalar_lea.vmem %s23, %s935
      $region112: #{transformer_decoder.1} parent=31 // pred_fallthru
        _
      // Predicated region
      $region113: #{transformer_decoder.1} parent=31 // pred_check
        %p937 = pneg %p658
      $region114: #{transformer_decoder.1} parent=31 // pred_check_branch
        %939 = sbr.rel (%p937) target = $region116
      $region115: #{transformer_decoder.1} parent=31 // pred_region
        %p940 = scmp.lt.s32.totalorder %s34, 1
        %s941 = scalar_select %p940, %s34, 1
        %s942 = scalar_lea.vmem %s24, %s941
      $region116: #{transformer_decoder.1} parent=31 // pred_fallthru
        _
      // Predicated region
      $region117: #{transformer_decoder.1} parent=31 // pred_check
        %p943 = pneg %p684
      $region118: #{transformer_decoder.1} parent=31 // pred_check_branch
        %945 = sbr.rel (%p943) target = $region120
      $region119: #{transformer_decoder.1} parent=31 // pred_region
        %p946 = scmp.lt.s32.totalorder %s34, 1
        %s947 = scalar_select %p946, %s34, 1
        %s948 = scalar_lea.vmem %s25, %s947
      $region120: #{transformer_decoder.1} parent=31 // pred_fallthru
        _
      // Predicated region
      $region121: #{transformer_decoder.1} parent=31 // pred_check
        %p949 = pneg %p710
      $region122: #{transformer_decoder.1} parent=31 // pred_check_branch
        %951 = sbr.rel (%p949) target = $region124
      $region123: #{transformer_decoder.1} parent=31 // pred_region
        %p952 = scmp.lt.s32.totalorder %s34, 1
        %s953 = scalar_select %p952, %s34, 1
        %s954 = scalar_lea.vmem %s26, %s953
      $region124: #{transformer_decoder.1} parent=31 // pred_fallthru
        _
      // Predicated region
      $region125: #{transformer_decoder.1} parent=31 // pred_check
        %p955 = pneg %p736
      $region126: #{transformer_decoder.1} parent=31 // pred_check_branch
        %957 = sbr.rel (%p955) target = $region128
      $region127: #{transformer_decoder.1} parent=31 // pred_region
        %p958 = scmp.lt.s32.totalorder %s34, 1
        %s959 = scalar_select %p958, %s34, 1
        %s960 = scalar_lea.vmem %s27, %s959
      $region128: #{transformer_decoder.1} parent=31 // pred_fallthru
        _
    $region32: #{transformer_decoder.1} parent=5 // pred_fallthru
      _
    %p961 = scmp.le.s32.totalorder 1, %s34
    %p962 = scmp.lt.s32.totalorder %s34, 3
    %p963 = pnand %p961, %p962
    %p964 = pneg %p963
    // Predicated region
    $region129: #{transformer_decoder.1} parent=5 // pred_check
      _
    $region130: #{transformer_decoder.1} parent=5 // pred_check_branch
      %966 = sbr.rel (%p963) target = $region132
    $region131: #{transformer_decoder.1} parent=5 // pred_region
      %s967 = ssub.s32 %s34, 1
      %p968 = pneg %p55
      %p969 = pneg %p52
      %p970 = pneg %p76
      %p971 = pneg %p73
      %p972 = pneg %p97
      %p973 = pneg %p94
      %p974 = pneg %p118
      %p975 = pneg %p115
      %p976 = scmp.lt.s32.totalorder %s39, 1
      %s977 = scalar_select %p976, %s39, 1
      %s978 = smul.addr %s977, 4
      %s979 = smul.addr %s978, 8
      %s980 = scalar_lea.vmem %s4, %s979
      %p981 = pneg %p144
      %p982 = pneg %p141
      %p983 = scmp.lt.s32.totalorder %s39, 1
      %s984 = scalar_select %p983, %s39, 1
      %s985 = scalar_lea.vmem %s5, %s984
      %p986 = pneg %p170
      %p987 = pneg %p167
      %p988 = scmp.lt.s32.totalorder %s39, 1
      %s989 = scalar_select %p988, %s39, 1
      %s990 = smul.addr %s989, 4
      %s991 = smul.addr %s990, 8
      %s992 = scalar_lea.vmem %s6, %s991
      %p993 = pneg %p196
      %p994 = pneg %p193
      %p995 = scmp.lt.s32.totalorder %s39, 1
      %s996 = scalar_select %p995, %s39, 1
      %s997 = scalar_lea.vmem %s7, %s996
      %p998 = pneg %p222
      %p999 = pneg %p219
      %p1000 = scmp.lt.s32.totalorder %s39, 1
      %s1001 = scalar_select %p1000, %s39, 1
      %s1002 = smul.addr %s1001, 4
      %s1003 = smul.addr %s1002, 8
      %s1004 = scalar_lea.vmem %s8, %s1003
      %p1005 = pneg %p248
      %p1006 = pneg %p245
      %p1007 = scmp.lt.s32.totalorder %s39, 1
      %s1008 = scalar_select %p1007, %s39, 1
      %s1009 = scalar_lea.vmem %s9, %s1008
      %p1010 = pneg %p274
      %p1011 = pneg %p271
      %p1012 = scmp.lt.s32.totalorder %s39, 1
      %s1013 = scalar_select %p1012, %s39, 1
      %s1014 = smul.addr %s1013, 4
      %s1015 = smul.addr %s1014, 8
      %s1016 = scalar_lea.vmem %s10, %s1015
      %p1017 = pneg %p300
      %p1018 = pneg %p297
      %p1019 = scmp.lt.s32.totalorder %s39, 1
      %s1020 = scalar_select %p1019, %s39, 1
      %s1021 = scalar_lea.vmem %s11, %s1020
      %p1022 = pneg %p326
      %p1023 = pneg %p323
      %p1024 = scmp.lt.s32.totalorder %s39, 1
      %s1025 = scalar_select %p1024, %s39, 1
      %s1026 = smul.addr %s1025, 4
      %s1027 = smul.addr %s1026, 8
      %s1028 = scalar_lea.vmem %s12, %s1027
      %p1029 = pneg %p352
      %p1030 = pneg %p349
      %p1031 = scmp.lt.s32.totalorder %s39, 1
      %s1032 = scalar_select %p1031, %s39, 1
      %s1033 = scalar_lea.vmem %s13, %s1032
      %p1034 = pneg %p378
      %p1035 = pneg %p375
      %p1036 = scmp.lt.s32.totalorder %s39, 1
      %s1037 = scalar_select %p1036, %s39, 1
      %s1038 = smul.addr %s1037, 4
      %s1039 = smul.addr %s1038, 8
      %s1040 = scalar_lea.vmem %s14, %s1039
      %p1041 = pneg %p404
      %p1042 = pneg %p401
      %p1043 = scmp.lt.s32.totalorder %s39, 1
      %s1044 = scalar_select %p1043, %s39, 1
      %s1045 = scalar_lea.vmem %s15, %s1044
      %p1046 = pneg %p430
      %p1047 = pneg %p427
      %p1048 = scmp.lt.s32.totalorder %s39, 1
      %s1049 = scalar_select %p1048, %s39, 1
      %s1050 = smul.addr %s1049, 4
      %s1051 = smul.addr %s1050, 8
      %s1052 = scalar_lea.vmem %s16, %s1051
      %p1053 = pneg %p456
      %p1054 = pneg %p453
      %p1055 = scmp.lt.s32.totalorder %s39, 1
      %s1056 = scalar_select %p1055, %s39, 1
      %s1057 = scalar_lea.vmem %s17, %s1056
      %p1058 = pneg %p482
      %p1059 = pneg %p479
      %p1060 = scmp.lt.s32.totalorder %s39, 1
      %s1061 = scalar_select %p1060, %s39, 1
      %s1062 = smul.addr %s1061, 4
      %s1063 = smul.addr %s1062, 8
      %s1064 = scalar_lea.vmem %s18, %s1063
      %p1065 = pneg %p508
      %p1066 = pneg %p505
      %p1067 = scmp.lt.s32.totalorder %s39, 1
      %s1068 = scalar_select %p1067, %s39, 1
      %s1069 = scalar_lea.vmem %s19, %s1068
      %p1070 = pneg %p534
      %p1071 = pneg %p531
      %p1072 = scmp.lt.s32.totalorder %s39, 1
      %s1073 = scalar_select %p1072, %s39, 1
      %s1074 = smul.addr %s1073, 8
      %s1075 = smul.addr %s1074, 8
      %s1076 = scalar_lea.vmem %s20, %s1075
      %p1077 = pneg %p560
      %p1078 = pneg %p557
      %p1079 = scmp.lt.s32.totalorder %s39, 1
      %s1080 = scalar_select %p1079, %s39, 1
      %s1081 = scalar_lea.vmem %s21, %s1080
      %p1082 = pneg %p586
      %p1083 = pneg %p583
      %p1084 = scmp.lt.s32.totalorder %s39, 1
      %s1085 = scalar_select %p1084, %s39, 1
      %s1086 = scalar_lea.vmem %s22, %s1085
      %p1087 = pneg %p612
      %p1088 = pneg %p609
      %p1089 = scmp.lt.s32.totalorder %s39, 1
      %s1090 = scalar_select %p1089, %s39, 1
      %s1091 = scalar_lea.vmem %s23, %s1090
      %p1092 = pneg %p638
      %p1093 = pneg %p635
      %p1094 = scmp.lt.s32.totalorder %s39, 1
      %s1095 = scalar_select %p1094, %s39, 1
      %s1096 = scalar_lea.vmem %s24, %s1095
      %p1097 = pneg %p664
      %p1098 = pneg %p661
      %p1099 = scmp.lt.s32.totalorder %s39, 1
      %s1100 = scalar_select %p1099, %s39, 1
      %s1101 = scalar_lea.vmem %s25, %s1100
      %p1102 = pneg %p690
      %p1103 = pneg %p687
      %p1104 = scmp.lt.s32.totalorder %s39, 1
      %s1105 = scalar_select %p1104, %s39, 1
      %s1106 = scalar_lea.vmem %s26, %s1105
      %p1107 = pneg %p716
      %p1108 = pneg %p713
      %p1109 = scmp.lt.s32.totalorder %s39, 1
      %s1110 = scalar_select %p1109, %s39, 1
      %s1111 = scalar_lea.vmem %s27, %s1110
      %p1112 = pneg %p742
      %p1113 = pneg %p739
      %p1114 = pneg %p768
      %p1115 = pneg %p765
      %p1116 = scmp.lt.s32.totalorder %s39, 1
      %s1117 = scalar_select %p1116, %s39, 1
      %s1118 = smul.addr %s1117, 2
      %s1119 = smul.addr %s1118, 8
      %s1120 = scalar_lea.vmem %s28, %s1119
      %p1121 = scmp.lt.s32.totalorder %s39, 1
      %s1122 = scalar_select %p1121, %s39, 1
      %s1123 = smul.addr %s1122, 4
      %s1124 = smul.addr %s1123, 8
      %s1125 = scalar_lea.vmem %s4, %s1124
      %p1126 = scmp.lt.s32.totalorder %s39, 1
      %s1127 = scalar_select %p1126, %s39, 1
      %s1128 = scalar_lea.vmem %s5, %s1127
      %p1129 = scmp.lt.s32.totalorder %s39, 1
      %s1130 = scalar_select %p1129, %s39, 1
      %s1131 = smul.addr %s1130, 4
      %s1132 = smul.addr %s1131, 8
      %s1133 = scalar_lea.vmem %s6, %s1132
      %p1134 = scmp.lt.s32.totalorder %s39, 1
      %s1135 = scalar_select %p1134, %s39, 1
      %s1136 = scalar_lea.vmem %s7, %s1135
      %p1137 = scmp.lt.s32.totalorder %s39, 1
      %s1138 = scalar_select %p1137, %s39, 1
      %s1139 = smul.addr %s1138, 4
      %s1140 = smul.addr %s1139, 8
      %s1141 = scalar_lea.vmem %s8, %s1140
      %p1142 = scmp.lt.s32.totalorder %s39, 1
      %s1143 = scalar_select %p1142, %s39, 1
      %s1144 = scalar_lea.vmem %s9, %s1143
      %p1145 = scmp.lt.s32.totalorder %s39, 1
      %s1146 = scalar_select %p1145, %s39, 1
      %s1147 = smul.addr %s1146, 4
      %s1148 = smul.addr %s1147, 8
      %s1149 = scalar_lea.vmem %s10, %s1148
      %p1150 = scmp.lt.s32.totalorder %s39, 1
      %s1151 = scalar_select %p1150, %s39, 1
      %s1152 = scalar_lea.vmem %s11, %s1151
      %p1153 = scmp.lt.s32.totalorder %s39, 1
      %s1154 = scalar_select %p1153, %s39, 1
      %s1155 = smul.addr %s1154, 4
      %s1156 = smul.addr %s1155, 8
      %s1157 = scalar_lea.vmem %s12, %s1156
      %p1158 = scmp.lt.s32.totalorder %s39, 1
      %s1159 = scalar_select %p1158, %s39, 1
      %s1160 = scalar_lea.vmem %s13, %s1159
      %p1161 = scmp.lt.s32.totalorder %s39, 1
      %s1162 = scalar_select %p1161, %s39, 1
      %s1163 = smul.addr %s1162, 4
      %s1164 = smul.addr %s1163, 8
      %s1165 = scalar_lea.vmem %s14, %s1164
      %p1166 = scmp.lt.s32.totalorder %s39, 1
      %s1167 = scalar_select %p1166, %s39, 1
      %s1168 = scalar_lea.vmem %s15, %s1167
      %p1169 = scmp.lt.s32.totalorder %s39, 1
      %s1170 = scalar_select %p1169, %s39, 1
      %s1171 = smul.addr %s1170, 4
      %s1172 = smul.addr %s1171, 8
      %s1173 = scalar_lea.vmem %s16, %s1172
      %p1174 = scmp.lt.s32.totalorder %s39, 1
      %s1175 = scalar_select %p1174, %s39, 1
      %s1176 = scalar_lea.vmem %s17, %s1175
      %p1177 = scmp.lt.s32.totalorder %s39, 1
      %s1178 = scalar_select %p1177, %s39, 1
      %s1179 = smul.addr %s1178, 4
      %s1180 = smul.addr %s1179, 8
      %s1181 = scalar_lea.vmem %s18, %s1180
      %p1182 = scmp.lt.s32.totalorder %s39, 1
      %s1183 = scalar_select %p1182, %s39, 1
      %s1184 = scalar_lea.vmem %s19, %s1183
      %p1185 = scmp.lt.s32.totalorder %s39, 1
      %s1186 = scalar_select %p1185, %s39, 1
      %s1187 = smul.addr %s1186, 8
      %s1188 = smul.addr %s1187, 8
      %s1189 = scalar_lea.vmem %s20, %s1188
      %p1190 = scmp.lt.s32.totalorder %s39, 1
      %s1191 = scalar_select %p1190, %s39, 1
      %s1192 = scalar_lea.vmem %s21, %s1191
      %p1193 = scmp.lt.s32.totalorder %s39, 1
      %s1194 = scalar_select %p1193, %s39, 1
      %s1195 = scalar_lea.vmem %s22, %s1194
      %p1196 = scmp.lt.s32.totalorder %s39, 1
      %s1197 = scalar_select %p1196, %s39, 1
      %s1198 = scalar_lea.vmem %s23, %s1197
      %p1199 = scmp.lt.s32.totalorder %s39, 1
      %s1200 = scalar_select %p1199, %s39, 1
      %s1201 = scalar_lea.vmem %s24, %s1200
      %p1202 = scmp.lt.s32.totalorder %s39, 1
      %s1203 = scalar_select %p1202, %s39, 1
      %s1204 = scalar_lea.vmem %s25, %s1203
      %p1205 = scmp.lt.s32.totalorder %s39, 1
      %s1206 = scalar_select %p1205, %s39, 1
      %s1207 = scalar_lea.vmem %s26, %s1206
      %p1208 = scmp.lt.s32.totalorder %s39, 1
      %s1209 = scalar_select %p1208, %s39, 1
      %s1210 = scalar_lea.vmem %s27, %s1209
      %p1211 = scmp.lt.s32.totalorder %s39, 1
      %s1212 = scalar_select %p1211, %s39, 1
      %s1213 = smul.addr %s1212, 2
      %s1214 = smul.addr %s1213, 8
      %s1215 = scalar_lea.vmem %s28, %s1214
      %p1216 = scmp.eq.s32.totalorder %s39, 0
      // Predicated region
      $region133: #{transformer_decoder.1} parent=131 // pred_check
        %p1217 = pneg %p1216
      $region134: #{transformer_decoder.1} parent=131 // pred_check_branch
        %1219 = sbr.rel (%p1217) target = $region136
      $region135: #{transformer_decoder.1} parent=131 // pred_region
        %v1220 = vld [vmem:[%s0] sm:$0xff]
        %v1221 = vld [vmem:[%s0 + $0x8] sm:$0xff]
        %vm1222 = vcmask 261120
        %1223 = vst.msk [vmem:[#allocation2] sm:$0xff] %vm1222, %v1220
        %1224 = vst.msk [vmem:[#allocation2 + $0x8] sm:$0xff] %vm1222, %v1221
      $region136: #{transformer_decoder.1} parent=131 // pred_fallthru
        _
      %v1225 = vld [vmem:[#allocation2] sm:$0xff]
      %v1226 = vld [vmem:[#allocation2 + $0x8] sm:$0xff]
      %v1227 = vld [vmem:[%s1] sm:$0xff]
      %v1228 = vld [vmem:[%s1 + $0x8] sm:$0xff]
      %v1229 = vadd.f32 %v1225, %v1227
      %v1230 = vadd.f32 %v1226, %v1228
      %v1231 = vld [vmem:[%s1125] sm:$0xff]
      %v1232 = vld [vmem:[%s1125 + $0x8] sm:$0xff]
      %v1233 = vld [vmem:[%s1125 + $0x10] sm:$0xff]
      %v1234 = vld [vmem:[%s1125 + $0x18] sm:$0xff]
      %v1235 = vld [vmem:[%s1128] sm:$0x1]
      %v1237 = vlaneseq
      %v1238 = vshrl.u32 %v1237, 7
      %v1239 = vsub.s32 0, %v1238
      %v1240 = vrot.slane %v1235, %v1239
      %vm1242 = vcmask 261120
      %v1244 = vsel %vm1242, %v1229, 0
      %v1247 = vsel %vm1242, %v1230, 0
      %1249 = vmatprep.subr.mxu0 0.0
      %1250 = vmatpush1.msra.mxu0 %v1231
      %1251 = vmatprep.subr.mxu0 0.0
      %1252 = vmatpush1.msra.mxu0 %v1232
      %1253 = vmatprep.subr.mxu0 0.0
      %1254 = vmatpush1.msra.mxu0 %v1233
      %1255 = vmatprep.subr.mxu0 0.0
      %1256 = vmatpush1.msra.mxu0 %v1234
      %1257 = vmatprep.subr.mxu0 0.0
      %1258 = vmatpush1.msra.mxu0 0.0
      %1259 = vmatprep.subr.mxu0 0.0
      %1260 = vmatpush1.msra.mxu0 0.0
      %1261 = vmatprep.subr.mxu0 0.0
      %1262 = vmatpush1.msra.mxu0 0.0
      %1263 = vmatprep.subr.mxu0 0.0
      %1264 = vmatpush1.msra.mxu0 0.0
      %1265 = vmatprep.subr.mxu0 0.0
      %1266 = vmatpush1.msra.mxu0 0.0
      %1267 = vmatprep.subr.mxu0 0.0
      %1268 = vmatpush1.msra.mxu0 0.0
      %1269 = vmatprep.subr.mxu0 0.0
      %1270 = vmatpush1.msra.mxu0 0.0
      %1271 = vmatprep.subr.mxu0 0.0
      %1272 = vmatpush1.msra.mxu0 0.0
      %1273 = vmatprep.subr.mxu0 0.0
      %1274 = vmatpush1.msra.mxu0 0.0
      %1275 = vmatprep.subr.mxu0 0.0
      %1276 = vmatpush1.msra.mxu0 0.0
      %1277 = vmatprep.subr.mxu0 0.0
      %1278 = vmatpush1.msra.mxu0 0.0
      %1279 = vmatprep.subr.mxu0 0.0
      %1280 = vmatpush1.msra.mxu0 0.0
      %1281 = vmatprep.subr.mxu0 0.0
      %1282 = vmatpush1.msra.mxu0 0.0
      %1283 = vmatprep.subr.mxu0 0.0
      %1284 = vmatpush1.msra.mxu0 0.0
      %1285 = vmatprep.subr.mxu0 0.0
      %1286 = vmatpush1.msra.mxu0 0.0
      %1287 = vmatprep.subr.mxu0 0.0
      %1288 = vmatpush1.msra.mxu0 0.0
      %1289 = vmatprep.subr.mxu0 0.0
      %1290 = vmatpush1.msra.mxu0 0.0
      %1291 = vmatprep.subr.mxu0 0.0
      %1292 = vmatpush1.msra.mxu0 0.0
      %1293 = vmatprep.subr.mxu0 0.0
      %1294 = vmatpush1.msra.mxu0 0.0
      %1295 = vmatprep.subr.mxu0 0.0
      %1296 = vmatpush1.msra.mxu0 0.0
      %1297 = vmatprep.subr.mxu0 0.0
      %1298 = vmatpush1.msra.mxu0 0.0
      %1299 = vmatprep.subr.mxu0 0.0
      %1300 = vmatpush1.msra.mxu0 0.0
      %1301 = vmatprep.subr.mxu0 0.0
      %1302 = vmatpush1.msra.mxu0 0.0
      %1303 = vmatprep.subr.mxu0 0.0
      %1304 = vmatpush1.msra.mxu0 0.0
      %1305 = vmatprep.subr.mxu0 0.0
      %1306 = vmatpush1.msra.mxu0 0.0
      %1307 = vmatprep.subr.mxu0 0.0
      %1308 = vmatpush1.msra.mxu0 0.0
      %1309 = vmatprep.subr.mxu0 0.0
      %1310 = vmatpush1.msra.mxu0 0.0
      %1311 = vmatprep.subr.mxu0 0.0
      %1312 = vmatpush1.msra.mxu0 0.0
      %1313 = vmatprep.mubr.f32.mxu0 0.0
      %1314 = vmatmul.mubr.f32.gmra.mrb[0].mxu0 %v1244
      %v1315 = vpop.f32.mrb[0].mxu0
      %v1316 = vadd.f32 %v1240, %v1315
      %v1317 = vpop.f32.mrb[0].mxu0
      %1318 = vmatprep.mubr.f32.mxu0 0.0
      %1319 = vmatmul.mubr.f32.gmra.mrb[0].mxu0 %v1247
      %v1320 = vpop.f32.mrb[0].mxu0
      %v1321 = vadd.f32 %v1240, %v1320
      %v1322 = vpop.f32.mrb[0].mxu0
      %1323 = vdwg.mxu0
      %v1324 = vld [vmem:[%s1133] sm:$0xff]
      %v1325 = vld [vmem:[%s1133 + $0x8] sm:$0xff]
      %v1326 = vld [vmem:[%s1133 + $0x10] sm:$0xff]
      %v1327 = vld [vmem:[%s1133 + $0x18] sm:$0xff]
      %v1328 = vld [vmem:[%s1136] sm:$0x1]
      %v1330 = vlaneseq
      %v1331 = vshrl.u32 %v1330, 7
      %v1332 = vsub.s32 0, %v1331
      %v1333 = vrot.slane %v1328, %v1332
      %v1336 = vsel %vm1242, %v1225, 0
      %v1339 = vsel %vm1242, %v1226, 0
      %1341 = vmatprep.subr.mxu0 0.0
      %1342 = vmatpush1.msra.mxu0 %v1324
      %1343 = vmatprep.subr.mxu0 0.0
      %1344 = vmatpush1.msra.mxu0 %v1325
      %1345 = vmatprep.subr.mxu0 0.0
      %1346 = vmatpush1.msra.mxu0 %v1326
      %1347 = vmatprep.subr.mxu0 0.0
      %1348 = vmatpush1.msra.mxu0 %v1327
      %1349 = vmatprep.subr.mxu0 0.0
      %1350 = vmatpush1.msra.mxu0 0.0
      %1351 = vmatprep.subr.mxu0 0.0
      %1352 = vmatpush1.msra.mxu0 0.0
      %1353 = vmatprep.subr.mxu0 0.0
      %1354 = vmatpush1.msra.mxu0 0.0
      %1355 = vmatprep.subr.mxu0 0.0
      %1356 = vmatpush1.msra.mxu0 0.0
      %1357 = vmatprep.subr.mxu0 0.0
      %1358 = vmatpush1.msra.mxu0 0.0
      %1359 = vmatprep.subr.mxu0 0.0
      %1360 = vmatpush1.msra.mxu0 0.0
      %1361 = vmatprep.subr.mxu0 0.0
      %1362 = vmatpush1.msra.mxu0 0.0
      %1363 = vmatprep.subr.mxu0 0.0
      %1364 = vmatpush1.msra.mxu0 0.0
      %1365 = vmatprep.subr.mxu0 0.0
      %1366 = vmatpush1.msra.mxu0 0.0
      %1367 = vmatprep.subr.mxu0 0.0
      %1368 = vmatpush1.msra.mxu0 0.0
      %1369 = vmatprep.subr.mxu0 0.0
      %1370 = vmatpush1.msra.mxu0 0.0
      %1371 = vmatprep.subr.mxu0 0.0
      %1372 = vmatpush1.msra.mxu0 0.0
      %1373 = vmatprep.subr.mxu0 0.0
      %1374 = vmatpush1.msra.mxu0 0.0
      %1375 = vmatprep.subr.mxu0 0.0
      %1376 = vmatpush1.msra.mxu0 0.0
      %1377 = vmatprep.subr.mxu0 0.0
      %1378 = vmatpush1.msra.mxu0 0.0
      %1379 = vmatprep.subr.mxu0 0.0
      %1380 = vmatpush1.msra.mxu0 0.0
      %1381 = vmatprep.subr.mxu0 0.0
      %1382 = vmatpush1.msra.mxu0 0.0
      %1383 = vmatprep.subr.mxu0 0.0
      %1384 = vmatpush1.msra.mxu0 0.0
      %1385 = vmatprep.subr.mxu0 0.0
      %1386 = vmatpush1.msra.mxu0 0.0
      %1387 = vmatprep.subr.mxu0 0.0
      %1388 = vmatpush1.msra.mxu0 0.0
      %1389 = vmatprep.subr.mxu0 0.0
      %1390 = vmatpush1.msra.mxu0 0.0
      %1391 = vmatprep.subr.mxu0 0.0
      %1392 = vmatpush1.msra.mxu0 0.0
      %1393 = vmatprep.subr.mxu0 0.0
      %1394 = vmatpush1.msra.mxu0 0.0
      %1395 = vmatprep.subr.mxu0 0.0
      %1396 = vmatpush1.msra.mxu0 0.0
      %1397 = vmatprep.subr.mxu0 0.0
      %1398 = vmatpush1.msra.mxu0 0.0
      %1399 = vmatprep.subr.mxu0 0.0
      %1400 = vmatpush1.msra.mxu0 0.0
      %1401 = vmatprep.subr.mxu0 0.0
      %1402 = vmatpush1.msra.mxu0 0.0
      %1403 = vmatprep.subr.mxu0 0.0
      %1404 = vmatpush1.msra.mxu0 0.0
      %1405 = vmatprep.mubr.f32.mxu0 0.0
      %1406 = vmatmul.mubr.f32.gmra.mrb[0].mxu0 %v1336
      %v1407 = vpop.f32.mrb[0].mxu0
      %v1408 = vadd.f32 %v1333, %v1407
      %v1409 = vpop.f32.mrb[0].mxu0
      %1410 = vmatprep.mubr.f32.mxu0 0.0
      %1411 = vmatmul.mubr.f32.gmra.mrb[0].mxu0 %v1339
      %v1412 = vpop.f32.mrb[0].mxu0
      %v1413 = vadd.f32 %v1333, %v1412
      %v1414 = vpop.f32.mrb[0].mxu0
      %1415 = vdwg.mxu0
      %v1416 = vld [vmem:[%s1141] sm:$0xff]
      %v1417 = vld [vmem:[%s1141 + $0x8] sm:$0xff]
      %v1418 = vld [vmem:[%s1141 + $0x10] sm:$0xff]
      %v1419 = vld [vmem:[%s1141 + $0x18] sm:$0xff]
      %v1420 = vld [vmem:[%s1144] sm:$0x1]
      %1422 = vrot.lane.b32.xlu0 %v1316, 96
      %v1423 = vpop.permute.xlu0 %1422
      %vm1424 = vcmask 64512
      %v1425 = vsel %vm1424, %v1316, 0
      %v1427 = vsel %vm1424, %v1423, 0
      %1429 = vmatprep.subr.mxu0 0.0
      %1430 = vmatpush1.xpose.msra.mxu0 %v1427
      %1431 = vmatprep.subr.mxu0 0.0
      %1432 = vmatpush1.xpose.msra.mxu0 0.0
      %1433 = vmatprep.subr.mxu0 0.0
      %1434 = vmatpush1.xpose.msra.mxu0 0.0
      %1435 = vmatprep.subr.mxu0 0.0
      %1436 = vmatpush1.xpose.msra.mxu0 0.0
      %1437 = vmatprep.subr.mxu0 0.0
      %1438 = vmatpush1.xpose.msra.mxu0 0.0
      %1439 = vmatprep.subr.mxu0 0.0
      %1440 = vmatpush1.xpose.msra.mxu0 0.0
      %1441 = vmatprep.subr.mxu0 0.0
      %1442 = vmatpush1.xpose.msra.mxu0 0.0
      %1443 = vmatprep.subr.mxu0 0.0
      %1444 = vmatpush1.xpose.msra.mxu0 0.0
      %1445 = vmatprep.subr.mxu0 0.0
      %1446 = vmatpush1.xpose.msra.mxu0 0.0
      %1447 = vmatprep.subr.mxu0 0.0
      %1448 = vmatpush1.xpose.msra.mxu0 0.0
      %1449 = vmatprep.subr.mxu0 0.0
      %1450 = vmatpush1.xpose.msra.mxu0 0.0
      %1451 = vmatprep.subr.mxu0 0.0
      %1452 = vmatpush1.xpose.msra.mxu0 0.0
      %1453 = vmatprep.subr.mxu0 0.0
      %1454 = vmatpush1.xpose.msra.mxu0 0.0
      %1455 = vmatprep.subr.mxu0 0.0
      %1456 = vmatpush1.xpose.msra.mxu0 0.0
      %1457 = vmatprep.subr.mxu0 0.0
      %1458 = vmatpush1.xpose.msra.mxu0 0.0
      %1459 = vmatprep.subr.mxu0 0.0
      %1460 = vmatpush1.xpose.msra.mxu0 0.0
      %1461 = vmatprep.subr.mxu0 0.0
      %1462 = vmatpush1.xpose.msra.mxu0 0.0
      %1463 = vmatprep.subr.mxu0 0.0
      %1464 = vmatpush1.xpose.msra.mxu0 0.0
      %1465 = vmatprep.subr.mxu0 0.0
      %1466 = vmatpush1.xpose.msra.mxu0 0.0
      %1467 = vmatprep.subr.mxu0 0.0
      %1468 = vmatpush1.xpose.msra.mxu0 0.0
      %1469 = vmatprep.subr.mxu0 0.0
      %1470 = vmatpush1.xpose.msra.mxu0 0.0
      %1471 = vmatprep.subr.mxu0 0.0
      %1472 = vmatpush1.xpose.msra.mxu0 0.0
      %1473 = vmatprep.subr.mxu0 0.0
      %1474 = vmatpush1.xpose.msra.mxu0 0.0
      %1475 = vmatprep.subr.mxu0 0.0
      %1476 = vmatpush1.xpose.msra.mxu0 0.0
      %1477 = vmatprep.subr.mxu0 0.0
      %1478 = vmatpush1.xpose.msra.mxu0 0.0
      %1479 = vmatprep.subr.mxu0 0.0
      %1480 = vmatpush1.xpose.msra.mxu0 0.0
      %1481 = vmatprep.subr.mxu0 0.0
      %1482 = vmatpush1.xpose.msra.mxu0 0.0
      %1483 = vmatprep.subr.mxu0 0.0
      %1484 = vmatpush1.xpose.msra.mxu0 0.0
      %1485 = vmatprep.subr.mxu0 0.0
      %1486 = vmatpush1.xpose.msra.mxu0 0.0
      %1487 = vmatprep.subr.mxu0 0.0
      %1488 = vmatpush1.xpose.msra.mxu0 0.0
      %1489 = vmatprep.subr.mxu0 0.0
      %1490 = vmatpush1.xpose.msra.mxu0 0.0
      %1491 = vmatprep.subr.mxu0 0.0
      %1492 = vmatpush1.xpose.msra.mxu0 0.0
      %1493 = vmatprep.mubr.f32.mxu0 0.0
      %1494 = vmatmul.mubr.f32.gmra.mrb[0].mxu0 %v1425
      %v1495 = vpop.f32.mrb[0].mxu0
      %v1496 = vadd.f32 0.0, %v1495
      %v1497 = vpop.f32.mrb[0].mxu0
      %1498 = vdwg.mxu0
      %1500 = vrot.lane.b32.xlu0 %v1321, 96
      %v1501 = vpop.permute.xlu0 %1500
      %v1502 = vsel %vm1424, %v1321, 0
      %v1504 = vsel %vm1424, %v1501, 0
      %1506 = vmatprep.subr.mxu0 0.0
      %1507 = vmatpush1.xpose.msra.mxu0 %v1504
      %1508 = vmatprep.subr.mxu0 0.0
      %1509 = vmatpush1.xpose.msra.mxu0 0.0
      %1510 = vmatprep.subr.mxu0 0.0
      %1511 = vmatpush1.xpose.msra.mxu0 0.0
      %1512 = vmatprep.subr.mxu0 0.0
      %1513 = vmatpush1.xpose.msra.mxu0 0.0
      %1514 = vmatprep.subr.mxu0 0.0
      %1515 = vmatpush1.xpose.msra.mxu0 0.0
      %1516 = vmatprep.subr.mxu0 0.0
      %1517 = vmatpush1.xpose.msra.mxu0 0.0
      %1518 = vmatprep.subr.mxu0 0.0
      %1519 = vmatpush1.xpose.msra.mxu0 0.0
      %1520 = vmatprep.subr.mxu0 0.0
      %1521 = vmatpush1.xpose.msra.mxu0 0.0
      %1522 = vmatprep.subr.mxu0 0.0
      %1523 = vmatpush1.xpose.msra.mxu0 0.0
      %1524 = vmatprep.subr.mxu0 0.0
      %1525 = vmatpush1.xpose.msra.mxu0 0.0
      %1526 = vmatprep.subr.mxu0 0.0
      %1527 = vmatpush1.xpose.msra.mxu0 0.0
      %1528 = vmatprep.subr.mxu0 0.0
      %1529 = vmatpush1.xpose.msra.mxu0 0.0
      %1530 = vmatprep.subr.mxu0 0.0
      %1531 = vmatpush1.xpose.msra.mxu0 0.0
      %1532 = vmatprep.subr.mxu0 0.0
      %1533 = vmatpush1.xpose.msra.mxu0 0.0
      %1534 = vmatprep.subr.mxu0 0.0
      %1535 = vmatpush1.xpose.msra.mxu0 0.0
      %1536 = vmatprep.subr.mxu0 0.0
      %1537 = vmatpush1.xpose.msra.mxu0 0.0
      %1538 = vmatprep.subr.mxu0 0.0
      %1539 = vmatpush1.xpose.msra.mxu0 0.0
      %1540 = vmatprep.subr.mxu0 0.0
      %1541 = vmatpush1.xpose.msra.mxu0 0.0
      %1542 = vmatprep.subr.mxu0 0.0
      %1543 = vmatpush1.xpose.msra.mxu0 0.0
      %1544 = vmatprep.subr.mxu0 0.0
      %1545 = vmatpush1.xpose.msra.mxu0 0.0
      %1546 = vmatprep.subr.mxu0 0.0
      %1547 = vmatpush1.xpose.msra.mxu0 0.0
      %1548 = vmatprep.subr.mxu0 0.0
      %1549 = vmatpush1.xpose.msra.mxu0 0.0
      %1550 = vmatprep.subr.mxu0 0.0
      %1551 = vmatpush1.xpose.msra.mxu0 0.0
      %1552 = vmatprep.subr.mxu0 0.0
      %1553 = vmatpush1.xpose.msra.mxu0 0.0
      %1554 = vmatprep.subr.mxu0 0.0
      %1555 = vmatpush1.xpose.msra.mxu0 0.0
      %1556 = vmatprep.subr.mxu0 0.0
      %1557 = vmatpush1.xpose.msra.mxu0 0.0
      %1558 = vmatprep.subr.mxu0 0.0
      %1559 = vmatpush1.xpose.msra.mxu0 0.0
      %1560 = vmatprep.subr.mxu0 0.0
      %1561 = vmatpush1.xpose.msra.mxu0 0.0
      %1562 = vmatprep.subr.mxu0 0.0
      %1563 = vmatpush1.xpose.msra.mxu0 0.0
      %1564 = vmatprep.subr.mxu0 0.0
      %1565 = vmatpush1.xpose.msra.mxu0 0.0
      %1566 = vmatprep.subr.mxu0 0.0
      %1567 = vmatpush1.xpose.msra.mxu0 0.0
      %1568 = vmatprep.subr.mxu0 0.0
      %1569 = vmatpush1.xpose.msra.mxu0 0.0
      %1570 = vmatprep.mubr.f32.mxu0 0.0
      %1571 = vmatmul.mubr.f32.gmra.mrb[0].mxu0 %v1502
      %v1572 = vpop.f32.mrb[0].mxu0
      %v1573 = vadd.f32 0.0, %v1572
      %v1574 = vpop.f32.mrb[0].mxu0
      %1575 = vdwg.mxu0
      %v1576 = vsel %vm1424, %v1496, -inf
      %1577 = vmax.xlane.f32.xlu0 %v1576
      %v1578 = vpop.xlane.xlu0 %1577
      %v1579 = vsel %vm1424, %v1573, -inf
      %1580 = vmax.xlane.f32.xlu0 %v1579
      %v1581 = vpop.xlane.xlu0 %1580
      %v1582 = vsub.f32 %v1496, %v1578
      %v1583 = vsub.f32 %v1573, %v1581
      %v1584 = vmul.f32 %v1582, 1.442695
      %v1585 = vpow.pop %v1584
      %v1586 = vmul.f32 %v1583, 1.442695
      %v1587 = vpow.pop %v1586
      %v1588 = vsel %vm1424, %v1585, 0.0
      %1589 = vadd.xlane.f32.xlu0 %v1588
      %v1590 = vpop.xlane.xlu0 %1589
      %v1591 = vsel %vm1424, %v1587, 0.0
      %1592 = vadd.xlane.f32.xlu0 %v1591
      %v1593 = vpop.xlane.xlu0 %1592
      %v1594 = vrcp.pop %v1590
      %v1595 = vrcp.pop %v1593
      %v1596 = vmul.f32 %v1585, %v1594
      %v1597 = vmul.f32 %v1587, %v1595
      %v1599 = vsel %vm1424, %v1596, 0
      %1601 = vmatprep.subr.mxu0 0.0
      %1602 = vmatpush1.msra.mxu0 %v1408
      %1603 = vmatprep.subr.mxu0 0.0
      %1604 = vmatpush1.msra.mxu0 0.0
      %1605 = vmatprep.subr.mxu0 0.0
      %1606 = vmatpush1.msra.mxu0 0.0
      %1607 = vmatprep.subr.mxu0 0.0
      %1608 = vmatpush1.msra.mxu0 0.0
      %1609 = vmatprep.subr.mxu0 0.0
      %1610 = vmatpush1.msra.mxu0 0.0
      %1611 = vmatprep.subr.mxu0 0.0
      %1612 = vmatpush1.msra.mxu0 0.0
      %1613 = vmatprep.subr.mxu0 0.0
      %1614 = vmatpush1.msra.mxu0 0.0
      %1615 = vmatprep.subr.mxu0 0.0
      %1616 = vmatpush1.msra.mxu0 0.0
      %1617 = vmatprep.subr.mxu0 0.0
      %1618 = vmatpush1.msra.mxu0 0.0
      %1619 = vmatprep.subr.mxu0 0.0
      %1620 = vmatpush1.msra.mxu0 0.0
      %1621 = vmatprep.subr.mxu0 0.0
      %1622 = vmatpush1.msra.mxu0 0.0
      %1623 = vmatprep.subr.mxu0 0.0
      %1624 = vmatpush1.msra.mxu0 0.0
      %1625 = vmatprep.subr.mxu0 0.0
      %1626 = vmatpush1.msra.mxu0 0.0
      %1627 = vmatprep.subr.mxu0 0.0
      %1628 = vmatpush1.msra.mxu0 0.0
      %1629 = vmatprep.subr.mxu0 0.0
      %1630 = vmatpush1.msra.mxu0 0.0
      %1631 = vmatprep.subr.mxu0 0.0
      %1632 = vmatpush1.msra.mxu0 0.0
      %1633 = vmatprep.subr.mxu0 0.0
      %1634 = vmatpush1.msra.mxu0 0.0
      %1635 = vmatprep.subr.mxu0 0.0
      %1636 = vmatpush1.msra.mxu0 0.0
      %1637 = vmatprep.subr.mxu0 0.0
      %1638 = vmatpush1.msra.mxu0 0.0
      %1639 = vmatprep.subr.mxu0 0.0
      %1640 = vmatpush1.msra.mxu0 0.0
      %1641 = vmatprep.subr.mxu0 0.0
      %1642 = vmatpush1.msra.mxu0 0.0
      %1643 = vmatprep.subr.mxu0 0.0
      %1644 = vmatpush1.msra.mxu0 0.0
      %1645 = vmatprep.subr.mxu0 0.0
      %1646 = vmatpush1.msra.mxu0 0.0
      %1647 = vmatprep.subr.mxu0 0.0
      %1648 = vmatpush1.msra.mxu0 0.0
      %1649 = vmatprep.subr.mxu0 0.0
      %1650 = vmatpush1.msra.mxu0 0.0
      %1651 = vmatprep.subr.mxu0 0.0
      %1652 = vmatpush1.msra.mxu0 0.0
      %1653 = vmatprep.subr.mxu0 0.0
      %1654 = vmatpush1.msra.mxu0 0.0
      %1655 = vmatprep.subr.mxu0 0.0
      %1656 = vmatpush1.msra.mxu0 0.0
      %1657 = vmatprep.subr.mxu0 0.0
      %1658 = vmatpush1.msra.mxu0 0.0
      %1659 = vmatprep.subr.mxu0 0.0
      %1660 = vmatpush1.msra.mxu0 0.0
      %1661 = vmatprep.subr.mxu0 0.0
      %1662 = vmatpush1.msra.mxu0 0.0
      %1663 = vmatprep.subr.mxu0 0.0
      %1664 = vmatpush1.msra.mxu0 0.0
      %1665 = vmatprep.mubr.f32.mxu0 0.0
      %1666 = vmatmul.mubr.f32.gmra.mrb[0].mxu0 %v1599
      %v1667 = vpop.f32.mrb[0].mxu0
      %v1668 = vadd.f32 0.0, %v1667
      %v1669 = vpop.f32.mrb[0].mxu0
      %1670 = vdwg.mxu0
      %v1672 = vsel %vm1424, %v1597, 0
      %1674 = vmatprep.subr.mxu0 0.0
      %1675 = vmatpush1.msra.mxu0 %v1413
      %1676 = vmatprep.subr.mxu0 0.0
      %1677 = vmatpush1.msra.mxu0 0.0
      %1678 = vmatprep.subr.mxu0 0.0
      %1679 = vmatpush1.msra.mxu0 0.0
      %1680 = vmatprep.subr.mxu0 0.0
      %1681 = vmatpush1.msra.mxu0 0.0
      %1682 = vmatprep.subr.mxu0 0.0
      %1683 = vmatpush1.msra.mxu0 0.0
      %1684 = vmatprep.subr.mxu0 0.0
      %1685 = vmatpush1.msra.mxu0 0.0
      %1686 = vmatprep.subr.mxu0 0.0
      %1687 = vmatpush1.msra.mxu0 0.0
      %1688 = vmatprep.subr.mxu0 0.0
      %1689 = vmatpush1.msra.mxu0 0.0
      %1690 = vmatprep.subr.mxu0 0.0
      %1691 = vmatpush1.msra.mxu0 0.0
      %1692 = vmatprep.subr.mxu0 0.0
      %1693 = vmatpush1.msra.mxu0 0.0
      %1694 = vmatprep.subr.mxu0 0.0
      %1695 = vmatpush1.msra.mxu0 0.0
      %1696 = vmatprep.subr.mxu0 0.0
      %1697 = vmatpush1.msra.mxu0 0.0
      %1698 = vmatprep.subr.mxu0 0.0
      %1699 = vmatpush1.msra.mxu0 0.0
      %1700 = vmatprep.subr.mxu0 0.0
      %1701 = vmatpush1.msra.mxu0 0.0
      %1702 = vmatprep.subr.mxu0 0.0
      %1703 = vmatpush1.msra.mxu0 0.0
      %1704 = vmatprep.subr.mxu0 0.0
      %1705 = vmatpush1.msra.mxu0 0.0
      %1706 = vmatprep.subr.mxu0 0.0
      %1707 = vmatpush1.msra.mxu0 0.0
      %1708 = vmatprep.subr.mxu0 0.0
      %1709 = vmatpush1.msra.mxu0 0.0
      %1710 = vmatprep.subr.mxu0 0.0
      %1711 = vmatpush1.msra.mxu0 0.0
      %1712 = vmatprep.subr.mxu0 0.0
      %1713 = vmatpush1.msra.mxu0 0.0
      %1714 = vmatprep.subr.mxu0 0.0
      %1715 = vmatpush1.msra.mxu0 0.0
      %1716 = vmatprep.subr.mxu0 0.0
      %1717 = vmatpush1.msra.mxu0 0.0
      %1718 = vmatprep.subr.mxu0 0.0
      %1719 = vmatpush1.msra.mxu0 0.0
      %1720 = vmatprep.subr.mxu0 0.0
      %1721 = vmatpush1.msra.mxu0 0.0
      %1722 = vmatprep.subr.mxu0 0.0
      %1723 = vmatpush1.msra.mxu0 0.0
      %1724 = vmatprep.subr.mxu0 0.0
      %1725 = vmatpush1.msra.mxu0 0.0
      %1726 = vmatprep.subr.mxu0 0.0
      %1727 = vmatpush1.msra.mxu0 0.0
      %1728 = vmatprep.subr.mxu0 0.0
      %1729 = vmatpush1.msra.mxu0 0.0
      %1730 = vmatprep.subr.mxu0 0.0
      %1731 = vmatpush1.msra.mxu0 0.0
      %1732 = vmatprep.subr.mxu0 0.0
      %1733 = vmatpush1.msra.mxu0 0.0
      %1734 = vmatprep.subr.mxu0 0.0
      %1735 = vmatpush1.msra.mxu0 0.0
      %1736 = vmatprep.subr.mxu0 0.0
      %1737 = vmatpush1.msra.mxu0 0.0
      %1738 = vmatprep.mubr.f32.mxu0 0.0
      %1739 = vmatmul.mubr.f32.gmra.mrb[0].mxu0 %v1672
      %v1740 = vpop.f32.mrb[0].mxu0
      %v1741 = vadd.f32 0.0, %v1740
      %v1742 = vpop.f32.mrb[0].mxu0
      %1743 = vdwg.mxu0
      %1744 = vrot.lane.b32.xlu0 %v1316, 120
      %v1745 = vpop.permute.xlu0 %1744
      %1746 = vrot.lane.b32.xlu0 %v1316, 88
      %v1747 = vpop.permute.xlu0 %1746
      %v1748 = vsel %vm1424, %v1745, 0
      %v1750 = vsel %vm1424, %v1747, 0
      %1752 = vmatprep.subr.mxu0 0.0
      %1753 = vmatpush1.xpose.msra.mxu0 %v1750
      %1754 = vmatprep.subr.mxu0 0.0
      %1755 = vmatpush1.xpose.msra.mxu0 0.0
      %1756 = vmatprep.subr.mxu0 0.0
      %1757 = vmatpush1.xpose.msra.mxu0 0.0
      %1758 = vmatprep.subr.mxu0 0.0
      %1759 = vmatpush1.xpose.msra.mxu0 0.0
      %1760 = vmatprep.subr.mxu0 0.0
      %1761 = vmatpush1.xpose.msra.mxu0 0.0
      %1762 = vmatprep.subr.mxu0 0.0
      %1763 = vmatpush1.xpose.msra.mxu0 0.0
      %1764 = vmatprep.subr.mxu0 0.0
      %1765 = vmatpush1.xpose.msra.mxu0 0.0
      %1766 = vmatprep.subr.mxu0 0.0
      %1767 = vmatpush1.xpose.msra.mxu0 0.0
      %1768 = vmatprep.subr.mxu0 0.0
      %1769 = vmatpush1.xpose.msra.mxu0 0.0
      %1770 = vmatprep.subr.mxu0 0.0
      %1771 = vmatpush1.xpose.msra.mxu0 0.0
      %1772 = vmatprep.subr.mxu0 0.0
      %1773 = vmatpush1.xpose.msra.mxu0 0.0
      %1774 = vmatprep.subr.mxu0 0.0
      %1775 = vmatpush1.xpose.msra.mxu0 0.0
      %1776 = vmatprep.subr.mxu0 0.0
      %1777 = vmatpush1.xpose.msra.mxu0 0.0
      %1778 = vmatprep.subr.mxu0 0.0
      %1779 = vmatpush1.xpose.msra.mxu0 0.0
      %1780 = vmatprep.subr.mxu0 0.0
      %1781 = vmatpush1.xpose.msra.mxu0 0.0
      %1782 = vmatprep.subr.mxu0 0.0
      %1783 = vmatpush1.xpose.msra.mxu0 0.0
      %1784 = vmatprep.subr.mxu0 0.0
      %1785 = vmatpush1.xpose.msra.mxu0 0.0
      %1786 = vmatprep.subr.mxu0 0.0
      %1787 = vmatpush1.xpose.msra.mxu0 0.0
      %1788 = vmatprep.subr.mxu0 0.0
      %1789 = vmatpush1.xpose.msra.mxu0 0.0
      %1790 = vmatprep.subr.mxu0 0.0
      %1791 = vmatpush1.xpose.msra.mxu0 0.0
      %1792 = vmatprep.subr.mxu0 0.0
      %1793 = vmatpush1.xpose.msra.mxu0 0.0
      %1794 = vmatprep.subr.mxu0 0.0
      %1795 = vmatpush1.xpose.msra.mxu0 0.0
      %1796 = vmatprep.subr.mxu0 0.0
      %1797 = vmatpush1.xpose.msra.mxu0 0.0
      %1798 = vmatprep.subr.mxu0 0.0
      %1799 = vmatpush1.xpose.msra.mxu0 0.0
      %1800 = vmatprep.subr.mxu0 0.0
      %1801 = vmatpush1.xpose.msra.mxu0 0.0
      %1802 = vmatprep.subr.mxu0 0.0
      %1803 = vmatpush1.xpose.msra.mxu0 0.0
      %1804 = vmatprep.subr.mxu0 0.0
      %1805 = vmatpush1.xpose.msra.mxu0 0.0
      %1806 = vmatprep.subr.mxu0 0.0
      %1807 = vmatpush1.xpose.msra.mxu0 0.0
      %1808 = vmatprep.subr.mxu0 0.0
      %1809 = vmatpush1.xpose.msra.mxu0 0.0
      %1810 = vmatprep.subr.mxu0 0.0
      %1811 = vmatpush1.xpose.msra.mxu0 0.0
      %1812 = vmatprep.subr.mxu0 0.0
      %1813 = vmatpush1.xpose.msra.mxu0 0.0
      %1814 = vmatprep.subr.mxu0 0.0
      %1815 = vmatpush1.xpose.msra.mxu0 0.0
      %1816 = vmatprep.mubr.f32.mxu0 0.0
      %1817 = vmatmul.mubr.f32.gmra.mrb[0].mxu0 %v1748
      %v1818 = vpop.f32.mrb[0].mxu0
      %v1819 = vadd.f32 0.0, %v1818
      %v1820 = vpop.f32.mrb[0].mxu0
      %1821 = vdwg.mxu0
      %1822 = vrot.lane.b32.xlu0 %v1321, 120
      %v1823 = vpop.permute.xlu0 %1822
      %1824 = vrot.lane.b32.xlu0 %v1321, 88
      %v1825 = vpop.permute.xlu0 %1824
      %v1826 = vsel %vm1424, %v1823, 0
      %v1828 = vsel %vm1424, %v1825, 0
      %1830 = vmatprep.subr.mxu0 0.0
      %1831 = vmatpush1.xpose.msra.mxu0 %v1828
      %1832 = vmatprep.subr.mxu0 0.0
      %1833 = vmatpush1.xpose.msra.mxu0 0.0
      %1834 = vmatprep.subr.mxu0 0.0
      %1835 = vmatpush1.xpose.msra.mxu0 0.0
      %1836 = vmatprep.subr.mxu0 0.0
      %1837 = vmatpush1.xpose.msra.mxu0 0.0
      %1838 = vmatprep.subr.mxu0 0.0
      %1839 = vmatpush1.xpose.msra.mxu0 0.0
      %1840 = vmatprep.subr.mxu0 0.0
      %1841 = vmatpush1.xpose.msra.mxu0 0.0
      %1842 = vmatprep.subr.mxu0 0.0
      %1843 = vmatpush1.xpose.msra.mxu0 0.0
      %1844 = vmatprep.subr.mxu0 0.0
      %1845 = vmatpush1.xpose.msra.mxu0 0.0
      %1846 = vmatprep.subr.mxu0 0.0
      %1847 = vmatpush1.xpose.msra.mxu0 0.0
      %1848 = vmatprep.subr.mxu0 0.0
      %1849 = vmatpush1.xpose.msra.mxu0 0.0
      %1850 = vmatprep.subr.mxu0 0.0
      %1851 = vmatpush1.xpose.msra.mxu0 0.0
      %1852 = vmatprep.subr.mxu0 0.0
      %1853 = vmatpush1.xpose.msra.mxu0 0.0
      %1854 = vmatprep.subr.mxu0 0.0
      %1855 = vmatpush1.xpose.msra.mxu0 0.0
      %1856 = vmatprep.subr.mxu0 0.0
      %1857 = vmatpush1.xpose.msra.mxu0 0.0
      %1858 = vmatprep.subr.mxu0 0.0
      %1859 = vmatpush1.xpose.msra.mxu0 0.0
      %1860 = vmatprep.subr.mxu0 0.0
      %1861 = vmatpush1.xpose.msra.mxu0 0.0
      %1862 = vmatprep.subr.mxu0 0.0
      %1863 = vmatpush1.xpose.msra.mxu0 0.0
      %1864 = vmatprep.subr.mxu0 0.0
      %1865 = vmatpush1.xpose.msra.mxu0 0.0
      %1866 = vmatprep.subr.mxu0 0.0
      %1867 = vmatpush1.xpose.msra.mxu0 0.0
      %1868 = vmatprep.subr.mxu0 0.0
      %1869 = vmatpush1.xpose.msra.mxu0 0.0
      %1870 = vmatprep.subr.mxu0 0.0
      %1871 = vmatpush1.xpose.msra.mxu0 0.0
      %1872 = vmatprep.subr.mxu0 0.0
      %1873 = vmatpush1.xpose.msra.mxu0 0.0
      %1874 = vmatprep.subr.mxu0 0.0
      %1875 = vmatpush1.xpose.msra.mxu0 0.0
      %1876 = vmatprep.subr.mxu0 0.0
      %1877 = vmatpush1.xpose.msra.mxu0 0.0
      %1878 = vmatprep.subr.mxu0 0.0
      %1879 = vmatpush1.xpose.msra.mxu0 0.0
      %1880 = vmatprep.subr.mxu0 0.0
      %1881 = vmatpush1.xpose.msra.mxu0 0.0
      %1882 = vmatprep.subr.mxu0 0.0
      %1883 = vmatpush1.xpose.msra.mxu0 0.0
      %1884 = vmatprep.subr.mxu0 0.0
      %1885 = vmatpush1.xpose.msra.mxu0 0.0
      %1886 = vmatprep.subr.mxu0 0.0
      %1887 = vmatpush1.xpose.msra.mxu0 0.0
      %1888 = vmatprep.subr.mxu0 0.0
      %1889 = vmatpush1.xpose.msra.mxu0 0.0
      %1890 = vmatprep.subr.mxu0 0.0
      %1891 = vmatpush1.xpose.msra.mxu0 0.0
      %1892 = vmatprep.subr.mxu0 0.0
      %1893 = vmatpush1.xpose.msra.mxu0 0.0
      %1894 = vmatprep.mubr.f32.mxu0 0.0
      %1895 = vmatmul.mubr.f32.gmra.mrb[0].mxu0 %v1826
      %v1896 = vpop.f32.mrb[0].mxu0
      %v1897 = vadd.f32 0.0, %v1896
      %v1898 = vpop.f32.mrb[0].mxu0
      %1899 = vdwg.mxu0
      %v1900 = vsel %vm1424, %v1819, -inf
      %1901 = vmax.xlane.f32.xlu0 %v1900
      %v1902 = vpop.xlane.xlu0 %1901
      %v1903 = vsel %vm1424, %v1897, -inf
      %1904 = vmax.xlane.f32.xlu0 %v1903
      %v1905 = vpop.xlane.xlu0 %1904
      %v1906 = vsub.f32 %v1819, %v1902
      %v1907 = vsub.f32 %v1897, %v1905
      %v1908 = vmul.f32 %v1906, 1.442695
      %v1909 = vpow.pop %v1908
      %v1910 = vmul.f32 %v1907, 1.442695
      %v1911 = vpow.pop %v1910
      %v1912 = vsel %vm1424, %v1909, 0.0
      %1913 = vadd.xlane.f32.xlu0 %v1912
      %v1914 = vpop.xlane.xlu0 %1913
      %v1915 = vsel %vm1424, %v1911, 0.0
      %1916 = vadd.xlane.f32.xlu0 %v1915
      %v1917 = vpop.xlane.xlu0 %1916
      %v1918 = vrcp.pop %v1914
      %v1919 = vrcp.pop %v1917
      %v1920 = vmul.f32 %v1909, %v1918
      %v1921 = vmul.f32 %v1911, %v1919
      %1923 = vrot.lane.b32.xlu0 %v1408, 120
      %v1924 = vpop.permute.xlu0 %1923
      %v1927 = vsel %vm1424, %v1920, 0
      %1929 = vmatprep.subr.mxu0 0.0
      %1930 = vmatpush1.msra.mxu0 %v1924
      %1931 = vmatprep.subr.mxu0 0.0
      %1932 = vmatpush1.msra.mxu0 0.0
      %1933 = vmatprep.subr.mxu0 0.0
      %1934 = vmatpush1.msra.mxu0 0.0
      %1935 = vmatprep.subr.mxu0 0.0
      %1936 = vmatpush1.msra.mxu0 0.0
      %1937 = vmatprep.subr.mxu0 0.0
      %1938 = vmatpush1.msra.mxu0 0.0
      %1939 = vmatprep.subr.mxu0 0.0
      %1940 = vmatpush1.msra.mxu0 0.0
      %1941 = vmatprep.subr.mxu0 0.0
      %1942 = vmatpush1.msra.mxu0 0.0
      %1943 = vmatprep.subr.mxu0 0.0
      %1944 = vmatpush1.msra.mxu0 0.0
      %1945 = vmatprep.subr.mxu0 0.0
      %1946 = vmatpush1.msra.mxu0 0.0
      %1947 = vmatprep.subr.mxu0 0.0
      %1948 = vmatpush1.msra.mxu0 0.0
      %1949 = vmatprep.subr.mxu0 0.0
      %1950 = vmatpush1.msra.mxu0 0.0
      %1951 = vmatprep.subr.mxu0 0.0
      %1952 = vmatpush1.msra.mxu0 0.0
      %1953 = vmatprep.subr.mxu0 0.0
      %1954 = vmatpush1.msra.mxu0 0.0
      %1955 = vmatprep.subr.mxu0 0.0
      %1956 = vmatpush1.msra.mxu0 0.0
      %1957 = vmatprep.subr.mxu0 0.0
      %1958 = vmatpush1.msra.mxu0 0.0
      %1959 = vmatprep.subr.mxu0 0.0
      %1960 = vmatpush1.msra.mxu0 0.0
      %1961 = vmatprep.subr.mxu0 0.0
      %1962 = vmatpush1.msra.mxu0 0.0
      %1963 = vmatprep.subr.mxu0 0.0
      %1964 = vmatpush1.msra.mxu0 0.0
      %1965 = vmatprep.subr.mxu0 0.0
      %1966 = vmatpush1.msra.mxu0 0.0
      %1967 = vmatprep.subr.mxu0 0.0
      %1968 = vmatpush1.msra.mxu0 0.0
      %1969 = vmatprep.subr.mxu0 0.0
      %1970 = vmatpush1.msra.mxu0 0.0
      %1971 = vmatprep.subr.mxu0 0.0
      %1972 = vmatpush1.msra.mxu0 0.0
      %1973 = vmatprep.subr.mxu0 0.0
      %1974 = vmatpush1.msra.mxu0 0.0
      %1975 = vmatprep.subr.mxu0 0.0
      %1976 = vmatpush1.msra.mxu0 0.0
      %1977 = vmatprep.subr.mxu0 0.0
      %1978 = vmatpush1.msra.mxu0 0.0
      %1979 = vmatprep.subr.mxu0 0.0
      %1980 = vmatpush1.msra.mxu0 0.0
      %1981 = vmatprep.subr.mxu0 0.0
      %1982 = vmatpush1.msra.mxu0 0.0
      %1983 = vmatprep.subr.mxu0 0.0
      %1984 = vmatpush1.msra.mxu0 0.0
      %1985 = vmatprep.subr.mxu0 0.0
      %1986 = vmatpush1.msra.mxu0 0.0
      %1987 = vmatprep.subr.mxu0 0.0
      %1988 = vmatpush1.msra.mxu0 0.0
      %1989 = vmatprep.subr.mxu0 0.0
      %1990 = vmatpush1.msra.mxu0 0.0
      %1991 = vmatprep.subr.mxu0 0.0
      %1992 = vmatpush1.msra.mxu0 0.0
      %1993 = vmatprep.mubr.f32.mxu0 0.0
      %1994 = vmatmul.mubr.f32.gmra.mrb[0].mxu0 %v1927
      %v1995 = vpop.f32.mrb[0].mxu0
      %v1996 = vadd.f32 0.0, %v1995
      %v1997 = vpop.f32.mrb[0].mxu0
      %1998 = vdwg.mxu0
      %2000 = vrot.lane.b32.xlu0 %v1413, 120
      %v2001 = vpop.permute.xlu0 %2000
      %v2004 = vsel %vm1424, %v1921, 0
      %2006 = vmatprep.subr.mxu0 0.0
      %2007 = vmatpush1.msra.mxu0 %v2001
      %2008 = vmatprep.subr.mxu0 0.0
      %2009 = vmatpush1.msra.mxu0 0.0
      %2010 = vmatprep.subr.mxu0 0.0
      %2011 = vmatpush1.msra.mxu0 0.0
      %2012 = vmatprep.subr.mxu0 0.0
      %2013 = vmatpush1.msra.mxu0 0.0
      %2014 = vmatprep.subr.mxu0 0.0
      %2015 = vmatpush1.msra.mxu0 0.0
      %2016 = vmatprep.subr.mxu0 0.0
      %2017 = vmatpush1.msra.mxu0 0.0
      %2018 = vmatprep.subr.mxu0 0.0
      %2019 = vmatpush1.msra.mxu0 0.0
      %2020 = vmatprep.subr.mxu0 0.0
      %2021 = vmatpush1.msra.mxu0 0.0
      %2022 = vmatprep.subr.mxu0 0.0
      %2023 = vmatpush1.msra.mxu0 0.0
      %2024 = vmatprep.subr.mxu0 0.0
      %2025 = vmatpush1.msra.mxu0 0.0
      %2026 = vmatprep.subr.mxu0 0.0
      %2027 = vmatpush1.msra.mxu0 0.0
      %2028 = vmatprep.subr.mxu0 0.0
      %2029 = vmatpush1.msra.mxu0 0.0
      %2030 = vmatprep.subr.mxu0 0.0
      %2031 = vmatpush1.msra.mxu0 0.0
      %2032 = vmatprep.subr.mxu0 0.0
      %2033 = vmatpush1.msra.mxu0 0.0
      %2034 = vmatprep.subr.mxu0 0.0
      %2035 = vmatpush1.msra.mxu0 0.0
      %2036 = vmatprep.subr.mxu0 0.0
      %2037 = vmatpush1.msra.mxu0 0.0
      %2038 = vmatprep.subr.mxu0 0.0
      %2039 = vmatpush1.msra.mxu0 0.0
      %2040 = vmatprep.subr.mxu0 0.0
      %2041 = vmatpush1.msra.mxu0 0.0
      %2042 = vmatprep.subr.mxu0 0.0
      %2043 = vmatpush1.msra.mxu0 0.0
      %2044 = vmatprep.subr.mxu0 0.0
      %2045 = vmatpush1.msra.mxu0 0.0
      %2046 = vmatprep.subr.mxu0 0.0
      %2047 = vmatpush1.msra.mxu0 0.0
      %2048 = vmatprep.subr.mxu0 0.0
      %2049 = vmatpush1.msra.mxu0 0.0
      %2050 = vmatprep.subr.mxu0 0.0
      %2051 = vmatpush1.msra.mxu0 0.0
      %2052 = vmatprep.subr.mxu0 0.0
      %2053 = vmatpush1.msra.mxu0 0.0
      %2054 = vmatprep.subr.mxu0 0.0
      %2055 = vmatpush1.msra.mxu0 0.0
      %2056 = vmatprep.subr.mxu0 0.0
      %2057 = vmatpush1.msra.mxu0 0.0
      %2058 = vmatprep.subr.mxu0 0.0
      %2059 = vmatpush1.msra.mxu0 0.0
      %2060 = vmatprep.subr.mxu0 0.0
      %2061 = vmatpush1.msra.mxu0 0.0
      %2062 = vmatprep.subr.mxu0 0.0
      %2063 = vmatpush1.msra.mxu0 0.0
      %2064 = vmatprep.subr.mxu0 0.0
      %2065 = vmatpush1.msra.mxu0 0.0
      %2066 = vmatprep.subr.mxu0 0.0
      %2067 = vmatpush1.msra.mxu0 0.0
      %2068 = vmatprep.subr.mxu0 0.0
      %2069 = vmatpush1.msra.mxu0 0.0
      %2070 = vmatprep.mubr.f32.mxu0 0.0
      %2071 = vmatmul.mubr.f32.gmra.mrb[0].mxu0 %v2004
      %v2072 = vpop.f32.mrb[0].mxu0
      %v2073 = vadd.f32 0.0, %v2072
      %v2074 = vpop.f32.mrb[0].mxu0
      %2075 = vdwg.mxu0
      %2076 = vrot.lane.b32.xlu0 %v1316, 112
      %v2077 = vpop.permute.xlu0 %2076
      %2078 = vrot.lane.b32.xlu0 %v1316, 80
      %v2079 = vpop.permute.xlu0 %2078
      %v2080 = vsel %vm1424, %v2077, 0
      %v2082 = vsel %vm1424, %v2079, 0
      %2084 = vmatprep.subr.mxu0 0.0
      %2085 = vmatpush1.xpose.msra.mxu0 %v2082
      %2086 = vmatprep.subr.mxu0 0.0
      %2087 = vmatpush1.xpose.msra.mxu0 0.0
      %2088 = vmatprep.subr.mxu0 0.0
      %2089 = vmatpush1.xpose.msra.mxu0 0.0
      %2090 = vmatprep.subr.mxu0 0.0
      %2091 = vmatpush1.xpose.msra.mxu0 0.0
      %2092 = vmatprep.subr.mxu0 0.0
      %2093 = vmatpush1.xpose.msra.mxu0 0.0
      %2094 = vmatprep.subr.mxu0 0.0
      %2095 = vmatpush1.xpose.msra.mxu0 0.0
      %2096 = vmatprep.subr.mxu0 0.0
      %2097 = vmatpush1.xpose.msra.mxu0 0.0
      %2098 = vmatprep.subr.mxu0 0.0
      %2099 = vmatpush1.xpose.msra.mxu0 0.0
      %2100 = vmatprep.subr.mxu0 0.0
      %2101 = vmatpush1.xpose.msra.mxu0 0.0
      %2102 = vmatprep.subr.mxu0 0.0
      %2103 = vmatpush1.xpose.msra.mxu0 0.0
      %2104 = vmatprep.subr.mxu0 0.0
      %2105 = vmatpush1.xpose.msra.mxu0 0.0
      %2106 = vmatprep.subr.mxu0 0.0
      %2107 = vmatpush1.xpose.msra.mxu0 0.0
      %2108 = vmatprep.subr.mxu0 0.0
      %2109 = vmatpush1.xpose.msra.mxu0 0.0
      %2110 = vmatprep.subr.mxu0 0.0
      %2111 = vmatpush1.xpose.msra.mxu0 0.0
      %2112 = vmatprep.subr.mxu0 0.0
      %2113 = vmatpush1.xpose.msra.mxu0 0.0
      %2114 = vmatprep.subr.mxu0 0.0
      %2115 = vmatpush1.xpose.msra.mxu0 0.0
      %2116 = vmatprep.subr.mxu0 0.0
      %2117 = vmatpush1.xpose.msra.mxu0 0.0
      %2118 = vmatprep.subr.mxu0 0.0
      %2119 = vmatpush1.xpose.msra.mxu0 0.0
      %2120 = vmatprep.subr.mxu0 0.0
      %2121 = vmatpush1.xpose.msra.mxu0 0.0
      %2122 = vmatprep.subr.mxu0 0.0
      %2123 = vmatpush1.xpose.msra.mxu0 0.0
      %2124 = vmatprep.subr.mxu0 0.0
      %2125 = vmatpush1.xpose.msra.mxu0 0.0
      %2126 = vmatprep.subr.mxu0 0.0
      %2127 = vmatpush1.xpose.msra.mxu0 0.0
      %2128 = vmatprep.subr.mxu0 0.0
      %2129 = vmatpush1.xpose.msra.mxu0 0.0
      %2130 = vmatprep.subr.mxu0 0.0
      %2131 = vmatpush1.xpose.msra.mxu0 0.0
      %2132 = vmatprep.subr.mxu0 0.0
      %2133 = vmatpush1.xpose.msra.mxu0 0.0
      %2134 = vmatprep.subr.mxu0 0.0
      %2135 = vmatpush1.xpose.msra.mxu0 0.0
      %2136 = vmatprep.subr.mxu0 0.0
      %2137 = vmatpush1.xpose.msra.mxu0 0.0
      %2138 = vmatprep.subr.mxu0 0.0
      %2139 = vmatpush1.xpose.msra.mxu0 0.0
      %2140 = vmatprep.subr.mxu0 0.0
      %2141 = vmatpush1.xpose.msra.mxu0 0.0
      %2142 = vmatprep.subr.mxu0 0.0
      %2143 = vmatpush1.xpose.msra.mxu0 0.0
      %2144 = vmatprep.subr.mxu0 0.0
      %2145 = vmatpush1.xpose.msra.mxu0 0.0
      %2146 = vmatprep.subr.mxu0 0.0
      %2147 = vmatpush1.xpose.msra.mxu0 0.0
      %2148 = vmatprep.mubr.f32.mxu0 0.0
      %2149 = vmatmul.mubr.f32.gmra.mrb[0].mxu0 %v2080
      %v2150 = vpop.f32.mrb[0].mxu0
      %v2151 = vadd.f32 0.0, %v2150
      %v2152 = vpop.f32.mrb[0].mxu0
      %2153 = vdwg.mxu0
      %2154 = vrot.lane.b32.xlu0 %v1321, 112
      %v2155 = vpop.permute.xlu0 %2154
      %2156 = vrot.lane.b32.xlu0 %v1321, 80
      %v2157 = vpop.permute.xlu0 %2156
      %v2158 = vsel %vm1424, %v2155, 0
      %v2160 = vsel %vm1424, %v2157, 0
      %2162 = vmatprep.subr.mxu0 0.0
      %2163 = vmatpush1.xpose.msra.mxu0 %v2160
      %2164 = vmatprep.subr.mxu0 0.0
      %2165 = vmatpush1.xpose.msra.mxu0 0.0
      %2166 = vmatprep.subr.mxu0 0.0
      %2167 = vmatpush1.xpose.msra.mxu0 0.0
      %2168 = vmatprep.subr.mxu0 0.0
      %2169 = vmatpush1.xpose.msra.mxu0 0.0
      %2170 = vmatprep.subr.mxu0 0.0
      %2171 = vmatpush1.xpose.msra.mxu0 0.0
      %2172 = vmatprep.subr.mxu0 0.0
      %2173 = vmatpush1.xpose.msra.mxu0 0.0
      %2174 = vmatprep.subr.mxu0 0.0
      %2175 = vmatpush1.xpose.msra.mxu0 0.0
      %2176 = vmatprep.subr.mxu0 0.0
      %2177 = vmatpush1.xpose.msra.mxu0 0.0
      %2178 = vmatprep.subr.mxu0 0.0
      %2179 = vmatpush1.xpose.msra.mxu0 0.0
      %2180 = vmatprep.subr.mxu0 0.0
      %2181 = vmatpush1.xpose.msra.mxu0 0.0
      %2182 = vmatprep.subr.mxu0 0.0
      %2183 = vmatpush1.xpose.msra.mxu0 0.0
      %2184 = vmatprep.subr.mxu0 0.0
      %2185 = vmatpush1.xpose.msra.mxu0 0.0
      %2186 = vmatprep.subr.mxu0 0.0
      %2187 = vmatpush1.xpose.msra.mxu0 0.0
      %2188 = vmatprep.subr.mxu0 0.0
      %2189 = vmatpush1.xpose.msra.mxu0 0.0
      %2190 = vmatprep.subr.mxu0 0.0
      %2191 = vmatpush1.xpose.msra.mxu0 0.0
      %2192 = vmatprep.subr.mxu0 0.0
      %2193 = vmatpush1.xpose.msra.mxu0 0.0
      %2194 = vmatprep.subr.mxu0 0.0
      %2195 = vmatpush1.xpose.msra.mxu0 0.0
      %2196 = vmatprep.subr.mxu0 0.0
      %2197 = vmatpush1.xpose.msra.mxu0 0.0
      %2198 = vmatprep.subr.mxu0 0.0
      %2199 = vmatpush1.xpose.msra.mxu0 0.0
      %2200 = vmatprep.subr.mxu0 0.0
      %2201 = vmatpush1.xpose.msra.mxu0 0.0
      %2202 = vmatprep.subr.mxu0 0.0
      %2203 = vmatpush1.xpose.msra.mxu0 0.0
      %2204 = vmatprep.subr.mxu0 0.0
      %2205 = vmatpush1.xpose.msra.mxu0 0.0
      %2206 = vmatprep.subr.mxu0 0.0
      %2207 = vmatpush1.xpose.msra.mxu0 0.0
      %2208 = vmatprep.subr.mxu0 0.0
      %2209 = vmatpush1.xpose.msra.mxu0 0.0
      %2210 = vmatprep.subr.mxu0 0.0
      %2211 = vmatpush1.xpose.msra.mxu0 0.0
      %2212 = vmatprep.subr.mxu0 0.0
      %2213 = vmatpush1.xpose.msra.mxu0 0.0
      %2214 = vmatprep.subr.mxu0 0.0
      %2215 = vmatpush1.xpose.msra.mxu0 0.0
      %2216 = vmatprep.subr.mxu0 0.0
      %2217 = vmatpush1.xpose.msra.mxu0 0.0
      %2218 = vmatprep.subr.mxu0 0.0
      %2219 = vmatpush1.xpose.msra.mxu0 0.0
      %2220 = vmatprep.subr.mxu0 0.0
      %2221 = vmatpush1.xpose.msra.mxu0 0.0
      %2222 = vmatprep.subr.mxu0 0.0
      %2223 = vmatpush1.xpose.msra.mxu0 0.0
      %2224 = vmatprep.subr.mxu0 0.0
      %2225 = vmatpush1.xpose.msra.mxu0 0.0
      %2226 = vmatprep.mubr.f32.mxu0 0.0
      %2227 = vmatmul.mubr.f32.gmra.mrb[0].mxu0 %v2158
      %v2228 = vpop.f32.mrb[0].mxu0
      %v2229 = vadd.f32 0.0, %v2228
      %v2230 = vpop.f32.mrb[0].mxu0
      %2231 = vdwg.mxu0
      %v2232 = vsel %vm1424, %v2151, -inf
      %2233 = vmax.xlane.f32.xlu0 %v2232
      %v2234 = vpop.xlane.xlu0 %2233
      %v2235 = vsel %vm1424, %v2229, -inf
      %2236 = vmax.xlane.f32.xlu0 %v2235
      %v2237 = vpop.xlane.xlu0 %2236
      %v2238 = vsub.f32 %v2151, %v2234
      %v2239 = vsub.f32 %v2229, %v2237
      %v2240 = vmul.f32 %v2238, 1.442695
      %v2241 = vpow.pop %v2240
      %v2242 = vmul.f32 %v2239, 1.442695
      %v2243 = vpow.pop %v2242
      %v2244 = vsel %vm1424, %v2241, 0.0
      %2245 = vadd.xlane.f32.xlu0 %v2244
      %v2246 = vpop.xlane.xlu0 %2245
      %v2247 = vsel %vm1424, %v2243, 0.0
      %2248 = vadd.xlane.f32.xlu0 %v2247
      %v2249 = vpop.xlane.xlu0 %2248
      %v2250 = vrcp.pop %v2246
      %v2251 = vrcp.pop %v2249
      %v2252 = vmul.f32 %v2241, %v2250
      %v2253 = vmul.f32 %v2243, %v2251
      %2254 = vrot.lane.b32.xlu0 %v1408, 112
      %v2255 = vpop.permute.xlu0 %2254
      %v2258 = vsel %vm1424, %v2252, 0
      %2260 = vmatprep.subr.mxu0 0.0
      %2261 = vmatpush1.msra.mxu0 %v2255
      %2262 = vmatprep.subr.mxu0 0.0
      %2263 = vmatpush1.msra.mxu0 0.0
      %2264 = vmatprep.subr.mxu0 0.0
      %2265 = vmatpush1.msra.mxu0 0.0
      %2266 = vmatprep.subr.mxu0 0.0
      %2267 = vmatpush1.msra.mxu0 0.0
      %2268 = vmatprep.subr.mxu0 0.0
      %2269 = vmatpush1.msra.mxu0 0.0
      %2270 = vmatprep.subr.mxu0 0.0
      %2271 = vmatpush1.msra.mxu0 0.0
      %2272 = vmatprep.subr.mxu0 0.0
      %2273 = vmatpush1.msra.mxu0 0.0
      %2274 = vmatprep.subr.mxu0 0.0
      %2275 = vmatpush1.msra.mxu0 0.0
      %2276 = vmatprep.subr.mxu0 0.0
      %2277 = vmatpush1.msra.mxu0 0.0
      %2278 = vmatprep.subr.mxu0 0.0
      %2279 = vmatpush1.msra.mxu0 0.0
      %2280 = vmatprep.subr.mxu0 0.0
      %2281 = vmatpush1.msra.mxu0 0.0
      %2282 = vmatprep.subr.mxu0 0.0
      %2283 = vmatpush1.msra.mxu0 0.0
      %2284 = vmatprep.subr.mxu0 0.0
      %2285 = vmatpush1.msra.mxu0 0.0
      %2286 = vmatprep.subr.mxu0 0.0
      %2287 = vmatpush1.msra.mxu0 0.0
      %2288 = vmatprep.subr.mxu0 0.0
      %2289 = vmatpush1.msra.mxu0 0.0
      %2290 = vmatprep.subr.mxu0 0.0
      %2291 = vmatpush1.msra.mxu0 0.0
      %2292 = vmatprep.subr.mxu0 0.0
      %2293 = vmatpush1.msra.mxu0 0.0
      %2294 = vmatprep.subr.mxu0 0.0
      %2295 = vmatpush1.msra.mxu0 0.0
      %2296 = vmatprep.subr.mxu0 0.0
      %2297 = vmatpush1.msra.mxu0 0.0
      %2298 = vmatprep.subr.mxu0 0.0
      %2299 = vmatpush1.msra.mxu0 0.0
      %2300 = vmatprep.subr.mxu0 0.0
      %2301 = vmatpush1.msra.mxu0 0.0
      %2302 = vmatprep.subr.mxu0 0.0
      %2303 = vmatpush1.msra.mxu0 0.0
      %2304 = vmatprep.subr.mxu0 0.0
      %2305 = vmatpush1.msra.mxu0 0.0
      %2306 = vmatprep.subr.mxu0 0.0
      %2307 = vmatpush1.msra.mxu0 0.0
      %2308 = vmatprep.subr.mxu0 0.0
      %2309 = vmatpush1.msra.mxu0 0.0
      %2310 = vmatprep.subr.mxu0 0.0
      %2311 = vmatpush1.msra.mxu0 0.0
      %2312 = vmatprep.subr.mxu0 0.0
      %2313 = vmatpush1.msra.mxu0 0.0
      %2314 = vmatprep.subr.mxu0 0.0
      %2315 = vmatpush1.msra.mxu0 0.0
      %2316 = vmatprep.subr.mxu0 0.0
      %2317 = vmatpush1.msra.mxu0 0.0
      %2318 = vmatprep.subr.mxu0 0.0
      %2319 = vmatpush1.msra.mxu0 0.0
      %2320 = vmatprep.subr.mxu0 0.0
      %2321 = vmatpush1.msra.mxu0 0.0
      %2322 = vmatprep.subr.mxu0 0.0
      %2323 = vmatpush1.msra.mxu0 0.0
      %2324 = vmatprep.mubr.f32.mxu0 0.0
      %2325 = vmatmul.mubr.f32.gmra.mrb[0].mxu0 %v2258
      %v2326 = vpop.f32.mrb[0].mxu0
      %v2327 = vadd.f32 0.0, %v2326
      %v2328 = vpop.f32.mrb[0].mxu0
      %2329 = vdwg.mxu0
      %2330 = vrot.lane.b32.xlu0 %v1413, 112
      %v2331 = vpop.permute.xlu0 %2330
      %v2334 = vsel %vm1424, %v2253, 0
      %2336 = vmatprep.subr.mxu0 0.0
      %2337 = vmatpush1.msra.mxu0 %v2331
      %2338 = vmatprep.subr.mxu0 0.0
      %2339 = vmatpush1.msra.mxu0 0.0
      %2340 = vmatprep.subr.mxu0 0.0
      %2341 = vmatpush1.msra.mxu0 0.0
      %2342 = vmatprep.subr.mxu0 0.0
      %2343 = vmatpush1.msra.mxu0 0.0
      %2344 = vmatprep.subr.mxu0 0.0
      %2345 = vmatpush1.msra.mxu0 0.0
      %2346 = vmatprep.subr.mxu0 0.0
      %2347 = vmatpush1.msra.mxu0 0.0
      %2348 = vmatprep.subr.mxu0 0.0
      %2349 = vmatpush1.msra.mxu0 0.0
      %2350 = vmatprep.subr.mxu0 0.0
      %2351 = vmatpush1.msra.mxu0 0.0
      %2352 = vmatprep.subr.mxu0 0.0
      %2353 = vmatpush1.msra.mxu0 0.0
      %2354 = vmatprep.subr.mxu0 0.0
      %2355 = vmatpush1.msra.mxu0 0.0
      %2356 = vmatprep.subr.mxu0 0.0
      %2357 = vmatpush1.msra.mxu0 0.0
      %2358 = vmatprep.subr.mxu0 0.0
      %2359 = vmatpush1.msra.mxu0 0.0
      %2360 = vmatprep.subr.mxu0 0.0
      %2361 = vmatpush1.msra.mxu0 0.0
      %2362 = vmatprep.subr.mxu0 0.0
      %2363 = vmatpush1.msra.mxu0 0.0
      %2364 = vmatprep.subr.mxu0 0.0
      %2365 = vmatpush1.msra.mxu0 0.0
      %2366 = vmatprep.subr.mxu0 0.0
      %2367 = vmatpush1.msra.mxu0 0.0
      %2368 = vmatprep.subr.mxu0 0.0
      %2369 = vmatpush1.msra.mxu0 0.0
      %2370 = vmatprep.subr.mxu0 0.0
      %2371 = vmatpush1.msra.mxu0 0.0
      %2372 = vmatprep.subr.mxu0 0.0
      %2373 = vmatpush1.msra.mxu0 0.0
      %2374 = vmatprep.subr.mxu0 0.0
      %2375 = vmatpush1.msra.mxu0 0.0
      %2376 = vmatprep.subr.mxu0 0.0
      %2377 = vmatpush1.msra.mxu0 0.0
      %2378 = vmatprep.subr.mxu0 0.0
      %2379 = vmatpush1.msra.mxu0 0.0
      %2380 = vmatprep.subr.mxu0 0.0
      %2381 = vmatpush1.msra.mxu0 0.0
      %2382 = vmatprep.subr.mxu0 0.0
      %2383 = vmatpush1.msra.mxu0 0.0
      %2384 = vmatprep.subr.mxu0 0.0
      %2385 = vmatpush1.msra.mxu0 0.0
      %2386 = vmatprep.subr.mxu0 0.0
      %2387 = vmatpush1.msra.mxu0 0.0
      %2388 = vmatprep.subr.mxu0 0.0
      %2389 = vmatpush1.msra.mxu0 0.0
      %2390 = vmatprep.subr.mxu0 0.0
      %2391 = vmatpush1.msra.mxu0 0.0
      %2392 = vmatprep.subr.mxu0 0.0
      %2393 = vmatpush1.msra.mxu0 0.0
      %2394 = vmatprep.subr.mxu0 0.0
      %2395 = vmatpush1.msra.mxu0 0.0
      %2396 = vmatprep.subr.mxu0 0.0
      %2397 = vmatpush1.msra.mxu0 0.0
      %2398 = vmatprep.subr.mxu0 0.0
      %2399 = vmatpush1.msra.mxu0 0.0
      %2400 = vmatprep.mubr.f32.mxu0 0.0
      %2401 = vmatmul.mubr.f32.gmra.mrb[0].mxu0 %v2334
      %v2402 = vpop.f32.mrb[0].mxu0
      %v2403 = vadd.f32 0.0, %v2402
      %v2404 = vpop.f32.mrb[0].mxu0
      %2405 = vdwg.mxu0
      %2406 = vrot.lane.b32.xlu0 %v1316, 104
      %v2407 = vpop.permute.xlu0 %2406
      %2408 = vrot.lane.b32.xlu0 %v1316, 72
      %v2409 = vpop.permute.xlu0 %2408
      %v2410 = vsel %vm1424, %v2407, 0
      %v2412 = vsel %vm1424, %v2409, 0
      %2414 = vmatprep.subr.mxu0 0.0
      %2415 = vmatpush1.xpose.msra.mxu0 %v2412
      %2416 = vmatprep.subr.mxu0 0.0
      %2417 = vmatpush1.xpose.msra.mxu0 0.0
      %2418 = vmatprep.subr.mxu0 0.0
      %2419 = vmatpush1.xpose.msra.mxu0 0.0
      %2420 = vmatprep.subr.mxu0 0.0
      %2421 = vmatpush1.xpose.msra.mxu0 0.0
      %2422 = vmatprep.subr.mxu0 0.0
      %2423 = vmatpush1.xpose.msra.mxu0 0.0
      %2424 = vmatprep.subr.mxu0 0.0
      %2425 = vmatpush1.xpose.msra.mxu0 0.0
      %2426 = vmatprep.subr.mxu0 0.0
      %2427 = vmatpush1.xpose.msra.mxu0 0.0
      %2428 = vmatprep.subr.mxu0 0.0
      %2429 = vmatpush1.xpose.msra.mxu0 0.0
      %2430 = vmatprep.subr.mxu0 0.0
      %2431 = vmatpush1.xpose.msra.mxu0 0.0
      %2432 = vmatprep.subr.mxu0 0.0
      %2433 = vmatpush1.xpose.msra.mxu0 0.0
      %2434 = vmatprep.subr.mxu0 0.0
      %2435 = vmatpush1.xpose.msra.mxu0 0.0
      %2436 = vmatprep.subr.mxu0 0.0
      %2437 = vmatpush1.xpose.msra.mxu0 0.0
      %2438 = vmatprep.subr.mxu0 0.0
      %2439 = vmatpush1.xpose.msra.mxu0 0.0
      %2440 = vmatprep.subr.mxu0 0.0
      %2441 = vmatpush1.xpose.msra.mxu0 0.0
      %2442 = vmatprep.subr.mxu0 0.0
      %2443 = vmatpush1.xpose.msra.mxu0 0.0
      %2444 = vmatprep.subr.mxu0 0.0
      %2445 = vmatpush1.xpose.msra.mxu0 0.0
      %2446 = vmatprep.subr.mxu0 0.0
      %2447 = vmatpush1.xpose.msra.mxu0 0.0
      %2448 = vmatprep.subr.mxu0 0.0
      %2449 = vmatpush1.xpose.msra.mxu0 0.0
      %2450 = vmatprep.subr.mxu0 0.0
      %2451 = vmatpush1.xpose.msra.mxu0 0.0
      %2452 = vmatprep.subr.mxu0 0.0
      %2453 = vmatpush1.xpose.msra.mxu0 0.0
      %2454 = vmatprep.subr.mxu0 0.0
      %2455 = vmatpush1.xpose.msra.mxu0 0.0
      %2456 = vmatprep.subr.mxu0 0.0
      %2457 = vmatpush1.xpose.msra.mxu0 0.0
      %2458 = vmatprep.subr.mxu0 0.0
      %2459 = vmatpush1.xpose.msra.mxu0 0.0
      %2460 = vmatprep.subr.mxu0 0.0
      %2461 = vmatpush1.xpose.msra.mxu0 0.0
      %2462 = vmatprep.subr.mxu0 0.0
      %2463 = vmatpush1.xpose.msra.mxu0 0.0
      %2464 = vmatprep.subr.mxu0 0.0
      %2465 = vmatpush1.xpose.msra.mxu0 0.0
      %2466 = vmatprep.subr.mxu0 0.0
      %2467 = vmatpush1.xpose.msra.mxu0 0.0
      %2468 = vmatprep.subr.mxu0 0.0
      %2469 = vmatpush1.xpose.msra.mxu0 0.0
      %2470 = vmatprep.subr.mxu0 0.0
      %2471 = vmatpush1.xpose.msra.mxu0 0.0
      %2472 = vmatprep.subr.mxu0 0.0
      %2473 = vmatpush1.xpose.msra.mxu0 0.0
      %2474 = vmatprep.subr.mxu0 0.0
      %2475 = vmatpush1.xpose.msra.mxu0 0.0
      %2476 = vmatprep.subr.mxu0 0.0
      %2477 = vmatpush1.xpose.msra.mxu0 0.0
      %2478 = vmatprep.mubr.f32.mxu0 0.0
      %2479 = vmatmul.mubr.f32.gmra.mrb[0].mxu0 %v2410
      %v2480 = vpop.f32.mrb[0].mxu0
      %v2481 = vadd.f32 0.0, %v2480
      %v2482 = vpop.f32.mrb[0].mxu0
      %2483 = vdwg.mxu0
      %2484 = vrot.lane.b32.xlu0 %v1321, 104
      %v2485 = vpop.permute.xlu0 %2484
      %2486 = vrot.lane.b32.xlu0 %v1321, 72
      %v2487 = vpop.permute.xlu0 %2486
      %v2488 = vsel %vm1424, %v2485, 0
      %v2490 = vsel %vm1424, %v2487, 0
      %2492 = vmatprep.subr.mxu0 0.0
      %2493 = vmatpush1.xpose.msra.mxu0 %v2490
      %2494 = vmatprep.subr.mxu0 0.0
      %2495 = vmatpush1.xpose.msra.mxu0 0.0
      %2496 = vmatprep.subr.mxu0 0.0
      %2497 = vmatpush1.xpose.msra.mxu0 0.0
      %2498 = vmatprep.subr.mxu0 0.0
      %2499 = vmatpush1.xpose.msra.mxu0 0.0
      %2500 = vmatprep.subr.mxu0 0.0
      %2501 = vmatpush1.xpose.msra.mxu0 0.0
      %2502 = vmatprep.subr.mxu0 0.0
      %2503 = vmatpush1.xpose.msra.mxu0 0.0
      %2504 = vmatprep.subr.mxu0 0.0
      %2505 = vmatpush1.xpose.msra.mxu0 0.0
      %2506 = vmatprep.subr.mxu0 0.0
      %2507 = vmatpush1.xpose.msra.mxu0 0.0
      %2508 = vmatprep.subr.mxu0 0.0
      %2509 = vmatpush1.xpose.msra.mxu0 0.0
      %2510 = vmatprep.subr.mxu0 0.0
      %2511 = vmatpush1.xpose.msra.mxu0 0.0
      %2512 = vmatprep.subr.mxu0 0.0
      %2513 = vmatpush1.xpose.msra.mxu0 0.0
      %2514 = vmatprep.subr.mxu0 0.0
      %2515 = vmatpush1.xpose.msra.mxu0 0.0
      %2516 = vmatprep.subr.mxu0 0.0
      %2517 = vmatpush1.xpose.msra.mxu0 0.0
      %2518 = vmatprep.subr.mxu0 0.0
      %2519 = vmatpush1.xpose.msra.mxu0 0.0
      %2520 = vmatprep.subr.mxu0 0.0
      %2521 = vmatpush1.xpose.msra.mxu0 0.0
      %2522 = vmatprep.subr.mxu0 0.0
      %2523 = vmatpush1.xpose.msra.mxu0 0.0
      %2524 = vmatprep.subr.mxu0 0.0
      %2525 = vmatpush1.xpose.msra.mxu0 0.0
      %2526 = vmatprep.subr.mxu0 0.0
      %2527 = vmatpush1.xpose.msra.mxu0 0.0
      %2528 = vmatprep.subr.mxu0 0.0
      %2529 = vmatpush1.xpose.msra.mxu0 0.0
      %2530 = vmatprep.subr.mxu0 0.0
      %2531 = vmatpush1.xpose.msra.mxu0 0.0
      %2532 = vmatprep.subr.mxu0 0.0
      %2533 = vmatpush1.xpose.msra.mxu0 0.0
      %2534 = vmatprep.subr.mxu0 0.0
      %2535 = vmatpush1.xpose.msra.mxu0 0.0
      %2536 = vmatprep.subr.mxu0 0.0
      %2537 = vmatpush1.xpose.msra.mxu0 0.0
      %2538 = vmatprep.subr.mxu0 0.0
      %2539 = vmatpush1.xpose.msra.mxu0 0.0
      %2540 = vmatprep.subr.mxu0 0.0
      %2541 = vmatpush1.xpose.msra.mxu0 0.0
      %2542 = vmatprep.subr.mxu0 0.0
      %2543 = vmatpush1.xpose.msra.mxu0 0.0
      %2544 = vmatprep.subr.mxu0 0.0
      %2545 = vmatpush1.xpose.msra.mxu0 0.0
      %2546 = vmatprep.subr.mxu0 0.0
      %2547 = vmatpush1.xpose.msra.mxu0 0.0
      %2548 = vmatprep.subr.mxu0 0.0
      %2549 = vmatpush1.xpose.msra.mxu0 0.0
      %2550 = vmatprep.subr.mxu0 0.0
      %2551 = vmatpush1.xpose.msra.mxu0 0.0
      %2552 = vmatprep.subr.mxu0 0.0
      %2553 = vmatpush1.xpose.msra.mxu0 0.0
      %2554 = vmatprep.subr.mxu0 0.0
      %2555 = vmatpush1.xpose.msra.mxu0 0.0
      %2556 = vmatprep.mubr.f32.mxu0 0.0
      %2557 = vmatmul.mubr.f32.gmra.mrb[0].mxu0 %v2488
      %v2558 = vpop.f32.mrb[0].mxu0
      %v2559 = vadd.f32 0.0, %v2558
      %v2560 = vpop.f32.mrb[0].mxu0
      %2561 = vdwg.mxu0
      %v2562 = vsel %vm1424, %v2481, -inf
      %2563 = vmax.xlane.f32.xlu0 %v2562
      %v2564 = vpop.xlane.xlu0 %2563
      %v2565 = vsel %vm1424, %v2559, -inf
      %2566 = vmax.xlane.f32.xlu0 %v2565
      %v2567 = vpop.xlane.xlu0 %2566
      %v2568 = vsub.f32 %v2481, %v2564
      %v2569 = vsub.f32 %v2559, %v2567
      %v2570 = vmul.f32 %v2568, 1.442695
      %v2571 = vpow.pop %v2570
      %v2572 = vmul.f32 %v2569, 1.442695
      %v2573 = vpow.pop %v2572
      %v2574 = vsel %vm1424, %v2571, 0.0
      %2575 = vadd.xlane.f32.xlu0 %v2574
      %v2576 = vpop.xlane.xlu0 %2575
      %v2577 = vsel %vm1424, %v2573, 0.0
      %2578 = vadd.xlane.f32.xlu0 %v2577
      %v2579 = vpop.xlane.xlu0 %2578
      %v2580 = vrcp.pop %v2576
      %v2581 = vrcp.pop %v2579
      %v2582 = vmul.f32 %v2571, %v2580
      %v2583 = vmul.f32 %v2573, %v2581
      %2584 = vrot.lane.b32.xlu0 %v1408, 104
      %v2585 = vpop.permute.xlu0 %2584
      %v2588 = vsel %vm1424, %v2582, 0
      %2590 = vmatprep.subr.mxu0 0.0
      %2591 = vmatpush1.msra.mxu0 %v2585
      %2592 = vmatprep.subr.mxu0 0.0
      %2593 = vmatpush1.msra.mxu0 0.0
      %2594 = vmatprep.subr.mxu0 0.0
      %2595 = vmatpush1.msra.mxu0 0.0
      %2596 = vmatprep.subr.mxu0 0.0
      %2597 = vmatpush1.msra.mxu0 0.0
      %2598 = vmatprep.subr.mxu0 0.0
      %2599 = vmatpush1.msra.mxu0 0.0
      %2600 = vmatprep.subr.mxu0 0.0
      %2601 = vmatpush1.msra.mxu0 0.0
      %2602 = vmatprep.subr.mxu0 0.0
      %2603 = vmatpush1.msra.mxu0 0.0
      %2604 = vmatprep.subr.mxu0 0.0
      %2605 = vmatpush1.msra.mxu0 0.0
      %2606 = vmatprep.subr.mxu0 0.0
      %2607 = vmatpush1.msra.mxu0 0.0
      %2608 = vmatprep.subr.mxu0 0.0
      %2609 = vmatpush1.msra.mxu0 0.0
      %2610 = vmatprep.subr.mxu0 0.0
      %2611 = vmatpush1.msra.mxu0 0.0
      %2612 = vmatprep.subr.mxu0 0.0
      %2613 = vmatpush1.msra.mxu0 0.0
      %2614 = vmatprep.subr.mxu0 0.0
      %2615 = vmatpush1.msra.mxu0 0.0
      %2616 = vmatprep.subr.mxu0 0.0
      %2617 = vmatpush1.msra.mxu0 0.0
      %2618 = vmatprep.subr.mxu0 0.0
      %2619 = vmatpush1.msra.mxu0 0.0
      %2620 = vmatprep.subr.mxu0 0.0
      %2621 = vmatpush1.msra.mxu0 0.0
      %2622 = vmatprep.subr.mxu0 0.0
      %2623 = vmatpush1.msra.mxu0 0.0
      %2624 = vmatprep.subr.mxu0 0.0
      %2625 = vmatpush1.msra.mxu0 0.0
      %2626 = vmatprep.subr.mxu0 0.0
      %2627 = vmatpush1.msra.mxu0 0.0
      %2628 = vmatprep.subr.mxu0 0.0
      %2629 = vmatpush1.msra.mxu0 0.0
      %2630 = vmatprep.subr.mxu0 0.0
      %2631 = vmatpush1.msra.mxu0 0.0
      %2632 = vmatprep.subr.mxu0 0.0
      %2633 = vmatpush1.msra.mxu0 0.0
      %2634 = vmatprep.subr.mxu0 0.0
      %2635 = vmatpush1.msra.mxu0 0.0
      %2636 = vmatprep.subr.mxu0 0.0
      %2637 = vmatpush1.msra.mxu0 0.0
      %2638 = vmatprep.subr.mxu0 0.0
      %2639 = vmatpush1.msra.mxu0 0.0
      %2640 = vmatprep.subr.mxu0 0.0
      %2641 = vmatpush1.msra.mxu0 0.0
      %2642 = vmatprep.subr.mxu0 0.0
      %2643 = vmatpush1.msra.mxu0 0.0
      %2644 = vmatprep.subr.mxu0 0.0
      %2645 = vmatpush1.msra.mxu0 0.0
      %2646 = vmatprep.subr.mxu0 0.0
      %2647 = vmatpush1.msra.mxu0 0.0
      %2648 = vmatprep.subr.mxu0 0.0
      %2649 = vmatpush1.msra.mxu0 0.0
      %2650 = vmatprep.subr.mxu0 0.0
      %2651 = vmatpush1.msra.mxu0 0.0
      %2652 = vmatprep.subr.mxu0 0.0
      %2653 = vmatpush1.msra.mxu0 0.0
      %2654 = vmatprep.mubr.f32.mxu0 0.0
      %2655 = vmatmul.mubr.f32.gmra.mrb[0].mxu0 %v2588
      %v2656 = vpop.f32.mrb[0].mxu0
      %v2657 = vadd.f32 0.0, %v2656
      %v2658 = vpop.f32.mrb[0].mxu0
      %2659 = vdwg.mxu0
      %2660 = vrot.lane.b32.xlu0 %v1413, 104
      %v2661 = vpop.permute.xlu0 %2660
      %v2664 = vsel %vm1424, %v2583, 0
      %2666 = vmatprep.subr.mxu0 0.0
      %2667 = vmatpush1.msra.mxu0 %v2661
      %2668 = vmatprep.subr.mxu0 0.0
      %2669 = vmatpush1.msra.mxu0 0.0
      %2670 = vmatprep.subr.mxu0 0.0
      %2671 = vmatpush1.msra.mxu0 0.0
      %2672 = vmatprep.subr.mxu0 0.0
      %2673 = vmatpush1.msra.mxu0 0.0
      %2674 = vmatprep.subr.mxu0 0.0
      %2675 = vmatpush1.msra.mxu0 0.0
      %2676 = vmatprep.subr.mxu0 0.0
      %2677 = vmatpush1.msra.mxu0 0.0
      %2678 = vmatprep.subr.mxu0 0.0
      %2679 = vmatpush1.msra.mxu0 0.0
      %2680 = vmatprep.subr.mxu0 0.0
      %2681 = vmatpush1.msra.mxu0 0.0
      %2682 = vmatprep.subr.mxu0 0.0
      %2683 = vmatpush1.msra.mxu0 0.0
      %2684 = vmatprep.subr.mxu0 0.0
      %2685 = vmatpush1.msra.mxu0 0.0
      %2686 = vmatprep.subr.mxu0 0.0
      %2687 = vmatpush1.msra.mxu0 0.0
      %2688 = vmatprep.subr.mxu0 0.0
      %2689 = vmatpush1.msra.mxu0 0.0
      %2690 = vmatprep.subr.mxu0 0.0
      %2691 = vmatpush1.msra.mxu0 0.0
      %2692 = vmatprep.subr.mxu0 0.0
      %2693 = vmatpush1.msra.mxu0 0.0
      %2694 = vmatprep.subr.mxu0 0.0
      %2695 = vmatpush1.msra.mxu0 0.0
      %2696 = vmatprep.subr.mxu0 0.0
      %2697 = vmatpush1.msra.mxu0 0.0
      %2698 = vmatprep.subr.mxu0 0.0
      %2699 = vmatpush1.msra.mxu0 0.0
      %2700 = vmatprep.subr.mxu0 0.0
      %2701 = vmatpush1.msra.mxu0 0.0
      %2702 = vmatprep.subr.mxu0 0.0
      %2703 = vmatpush1.msra.mxu0 0.0
      %2704 = vmatprep.subr.mxu0 0.0
      %2705 = vmatpush1.msra.mxu0 0.0
      %2706 = vmatprep.subr.mxu0 0.0
      %2707 = vmatpush1.msra.mxu0 0.0
      %2708 = vmatprep.subr.mxu0 0.0
      %2709 = vmatpush1.msra.mxu0 0.0
      %2710 = vmatprep.subr.mxu0 0.0
      %2711 = vmatpush1.msra.mxu0 0.0
      %2712 = vmatprep.subr.mxu0 0.0
      %2713 = vmatpush1.msra.mxu0 0.0
      %2714 = vmatprep.subr.mxu0 0.0
      %2715 = vmatpush1.msra.mxu0 0.0
      %2716 = vmatprep.subr.mxu0 0.0
      %2717 = vmatpush1.msra.mxu0 0.0
      %2718 = vmatprep.subr.mxu0 0.0
      %2719 = vmatpush1.msra.mxu0 0.0
      %2720 = vmatprep.subr.mxu0 0.0
      %2721 = vmatpush1.msra.mxu0 0.0
      %2722 = vmatprep.subr.mxu0 0.0
      %2723 = vmatpush1.msra.mxu0 0.0
      %2724 = vmatprep.subr.mxu0 0.0
      %2725 = vmatpush1.msra.mxu0 0.0
      %2726 = vmatprep.subr.mxu0 0.0
      %2727 = vmatpush1.msra.mxu0 0.0
      %2728 = vmatprep.subr.mxu0 0.0
      %2729 = vmatpush1.msra.mxu0 0.0
      %2730 = vmatprep.mubr.f32.mxu0 0.0
      %2731 = vmatmul.mubr.f32.gmra.mrb[0].mxu0 %v2664
      %v2732 = vpop.f32.mrb[0].mxu0
      %v2733 = vadd.f32 0.0, %v2732
      %v2734 = vpop.f32.mrb[0].mxu0
      %2735 = vdwg.mxu0
      %2738 = vrot.lane.b32.xlu0 %v1996, 8
      %v2739 = vpop.permute.xlu0 %2738
      %2740 = vrot.lane.b32.xlu0 %v2073, 8
      %v2741 = vpop.permute.xlu0 %2740
      %2746 = vrot.lane.b32.xlu0 %v2327, 16
      %v2747 = vpop.permute.xlu0 %2746
      %2748 = vrot.lane.b32.xlu0 %v2403, 16
      %v2749 = vpop.permute.xlu0 %2748
      %2754 = vrot.lane.b32.xlu0 %v2657, 24
      %v2755 = vpop.permute.xlu0 %2754
      %2756 = vrot.lane.b32.xlu0 %v2733, 24
      %v2757 = vpop.permute.xlu0 %2756
      %v2760 = vsel %vm1424, %v1668, %v2739
      %v2761 = vsel %vm1424, %v1741, %v2741
      %vm2762 = vcmask 130048
      %v2763 = vsel %vm2762, %v2760, %v2747
      %v2764 = vsel %vm2762, %v2761, %v2749
      %vm2765 = vcmask 195584
      %v2766 = vsel %vm2765, %v2763, %v2755
      %v2767 = vsel %vm2765, %v2764, %v2757
      %v2769 = vlaneseq
      %v2770 = vshrl.u32 %v2769, 7
      %v2771 = vsub.s32 0, %v2770
      %v2772 = vrot.slane %v1420, %v2771
      %v2775 = vsel %vm1242, %v2766, 0
      %v2778 = vsel %vm1242, %v2767, 0
      %2780 = vmatprep.subr.mxu0 0.0
      %2781 = vmatpush1.msra.mxu0 %v1416
      %2782 = vmatprep.subr.mxu0 0.0
      %2783 = vmatpush1.msra.mxu0 %v1417
      %2784 = vmatprep.subr.mxu0 0.0
      %2785 = vmatpush1.msra.mxu0 %v1418
      %2786 = vmatprep.subr.mxu0 0.0
      %2787 = vmatpush1.msra.mxu0 %v1419
      %2788 = vmatprep.subr.mxu0 0.0
      %2789 = vmatpush1.msra.mxu0 0.0
      %2790 = vmatprep.subr.mxu0 0.0
      %2791 = vmatpush1.msra.mxu0 0.0
      %2792 = vmatprep.subr.mxu0 0.0
      %2793 = vmatpush1.msra.mxu0 0.0
      %2794 = vmatprep.subr.mxu0 0.0
      %2795 = vmatpush1.msra.mxu0 0.0
      %2796 = vmatprep.subr.mxu0 0.0
      %2797 = vmatpush1.msra.mxu0 0.0
      %2798 = vmatprep.subr.mxu0 0.0
      %2799 = vmatpush1.msra.mxu0 0.0
      %2800 = vmatprep.subr.mxu0 0.0
      %2801 = vmatpush1.msra.mxu0 0.0
      %2802 = vmatprep.subr.mxu0 0.0
      %2803 = vmatpush1.msra.mxu0 0.0
      %2804 = vmatprep.subr.mxu0 0.0
      %2805 = vmatpush1.msra.mxu0 0.0
      %2806 = vmatprep.subr.mxu0 0.0
      %2807 = vmatpush1.msra.mxu0 0.0
      %2808 = vmatprep.subr.mxu0 0.0
      %2809 = vmatpush1.msra.mxu0 0.0
      %2810 = vmatprep.subr.mxu0 0.0
      %2811 = vmatpush1.msra.mxu0 0.0
      %2812 = vmatprep.subr.mxu0 0.0
      %2813 = vmatpush1.msra.mxu0 0.0
      %2814 = vmatprep.subr.mxu0 0.0
      %2815 = vmatpush1.msra.mxu0 0.0
      %2816 = vmatprep.subr.mxu0 0.0
      %2817 = vmatpush1.msra.mxu0 0.0
      %2818 = vmatprep.subr.mxu0 0.0
      %2819 = vmatpush1.msra.mxu0 0.0
      %2820 = vmatprep.subr.mxu0 0.0
      %2821 = vmatpush1.msra.mxu0 0.0
      %2822 = vmatprep.subr.mxu0 0.0
      %2823 = vmatpush1.msra.mxu0 0.0
      %2824 = vmatprep.subr.mxu0 0.0
      %2825 = vmatpush1.msra.mxu0 0.0
      %2826 = vmatprep.subr.mxu0 0.0
      %2827 = vmatpush1.msra.mxu0 0.0
      %2828 = vmatprep.subr.mxu0 0.0
      %2829 = vmatpush1.msra.mxu0 0.0
      %2830 = vmatprep.subr.mxu0 0.0
      %2831 = vmatpush1.msra.mxu0 0.0
      %2832 = vmatprep.subr.mxu0 0.0
      %2833 = vmatpush1.msra.mxu0 0.0
      %2834 = vmatprep.subr.mxu0 0.0
      %2835 = vmatpush1.msra.mxu0 0.0
      %2836 = vmatprep.subr.mxu0 0.0
      %2837 = vmatpush1.msra.mxu0 0.0
      %2838 = vmatprep.subr.mxu0 0.0
      %2839 = vmatpush1.msra.mxu0 0.0
      %2840 = vmatprep.subr.mxu0 0.0
      %2841 = vmatpush1.msra.mxu0 0.0
      %2842 = vmatprep.subr.mxu0 0.0
      %2843 = vmatpush1.msra.mxu0 0.0
      %2844 = vmatprep.mubr.f32.mxu0 0.0
      %2845 = vmatmul.mubr.f32.gmra.mrb[0].mxu0 %v2775
      %v2846 = vpop.f32.mrb[0].mxu0
      %v2847 = vadd.f32 %v2772, %v2846
      %v2848 = vpop.f32.mrb[0].mxu0
      %2849 = vmatprep.mubr.f32.mxu0 0.0
      %2850 = vmatmul.mubr.f32.gmra.mrb[0].mxu0 %v2778
      %v2851 = vpop.f32.mrb[0].mxu0
      %v2852 = vadd.f32 %v2772, %v2851
      %v2853 = vpop.f32.mrb[0].mxu0
      %2854 = vdwg.mxu0
      %v2855 = vadd.f32 %v1225, %v2847
      %v2856 = vadd.f32 %v1226, %v2852
      %v2857 = vld [vmem:[%s1195] sm:$0x1]
      %v2858 = vld [vmem:[%s1198] sm:$0x1]
      %v2859 = vsel %vm1242, %v2855, 0.0
      %2860 = vadd.xlane.f32.xlu0 %v2859
      %v2861 = vpop.xlane.xlu0 %2860
      %v2862 = vsel %vm1242, %v2856, 0.0
      %2863 = vadd.xlane.f32.xlu0 %v2862
      %v2864 = vpop.xlane.xlu0 %2863
      %v2865 = vrcp.pop 32.0
      %v2866 = vmul.f32 %v2861, %v2865
      %v2867 = vmul.f32 %v2864, %v2865
      %v2868 = vsub.f32 %v2855, %v2866
      %v2869 = vsub.f32 %v2856, %v2867
      %v2870 = vmul.f32 %v2868, %v2868
      %v2871 = vmul.f32 %v2869, %v2869
      %v2872 = vsel %vm1242, %v2870, 0.0
      %2873 = vadd.xlane.f32.xlu0 %v2872
      %v2874 = vpop.xlane.xlu0 %2873
      %v2875 = vsel %vm1242, %v2871, 0.0
      %2876 = vadd.xlane.f32.xlu0 %v2875
      %v2877 = vpop.xlane.xlu0 %2876
      %v2878 = vmul.f32 %v2874, %v2865
      %v2879 = vmul.f32 %v2877, %v2865
      %v2880 = vadd.f32 %v2878, 1e-05
      %v2881 = vadd.f32 %v2879, 1e-05
      %v2882 = vrsqrt.pop %v2880
      %v2883 = vrsqrt.pop %v2881
      %v2884 = vmul.f32 %v2868, %v2882
      %v2885 = vmul.f32 %v2869, %v2883
      %v2887 = vlaneseq
      %v2888 = vshrl.u32 %v2887, 7
      %v2889 = vsub.s32 0, %v2888
      %v2890 = vrot.slane %v2857, %v2889
      %v2892 = vmul.f32 %v2884, %v2890
      %v2893 = vmul.f32 %v2885, %v2890
      %v2895 = vlaneseq
      %v2896 = vshrl.u32 %v2895, 7
      %v2897 = vsub.s32 0, %v2896
      %v2898 = vrot.slane %v2858, %v2897
      %v2900 = vadd.f32 %v2892, %v2898
      %v2901 = vadd.f32 %v2893, %v2898
      %v2902 = vadd.f32 %v2900, %v1227
      %v2903 = vadd.f32 %v2901, %v1228
      %v2904 = vld [vmem:[%s1149] sm:$0xff]
      %v2905 = vld [vmem:[%s1149 + $0x8] sm:$0xff]
      %v2906 = vld [vmem:[%s1149 + $0x10] sm:$0xff]
      %v2907 = vld [vmem:[%s1149 + $0x18] sm:$0xff]
      %v2908 = vld [vmem:[%s1152] sm:$0x1]
      %v2910 = vlaneseq
      %v2911 = vshrl.u32 %v2910, 7
      %v2912 = vsub.s32 0, %v2911
      %v2913 = vrot.slane %v2908, %v2912
      %v2916 = vsel %vm1242, %v2902, 0
      %v2919 = vsel %vm1242, %v2903, 0
      %2921 = vmatprep.subr.mxu0 0.0
      %2922 = vmatpush1.msra.mxu0 %v2904
      %2923 = vmatprep.subr.mxu0 0.0
      %2924 = vmatpush1.msra.mxu0 %v2905
      %2925 = vmatprep.subr.mxu0 0.0
      %2926 = vmatpush1.msra.mxu0 %v2906
      %2927 = vmatprep.subr.mxu0 0.0
      %2928 = vmatpush1.msra.mxu0 %v2907
      %2929 = vmatprep.subr.mxu0 0.0
      %2930 = vmatpush1.msra.mxu0 0.0
      %2931 = vmatprep.subr.mxu0 0.0
      %2932 = vmatpush1.msra.mxu0 0.0
      %2933 = vmatprep.subr.mxu0 0.0
      %2934 = vmatpush1.msra.mxu0 0.0
      %2935 = vmatprep.subr.mxu0 0.0
      %2936 = vmatpush1.msra.mxu0 0.0
      %2937 = vmatprep.subr.mxu0 0.0
      %2938 = vmatpush1.msra.mxu0 0.0
      %2939 = vmatprep.subr.mxu0 0.0
      %2940 = vmatpush1.msra.mxu0 0.0
      %2941 = vmatprep.subr.mxu0 0.0
      %2942 = vmatpush1.msra.mxu0 0.0
      %2943 = vmatprep.subr.mxu0 0.0
      %2944 = vmatpush1.msra.mxu0 0.0
      %2945 = vmatprep.subr.mxu0 0.0
      %2946 = vmatpush1.msra.mxu0 0.0
      %2947 = vmatprep.subr.mxu0 0.0
      %2948 = vmatpush1.msra.mxu0 0.0
      %2949 = vmatprep.subr.mxu0 0.0
      %2950 = vmatpush1.msra.mxu0 0.0
      %2951 = vmatprep.subr.mxu0 0.0
      %2952 = vmatpush1.msra.mxu0 0.0
      %2953 = vmatprep.subr.mxu0 0.0
      %2954 = vmatpush1.msra.mxu0 0.0
      %2955 = vmatprep.subr.mxu0 0.0
      %2956 = vmatpush1.msra.mxu0 0.0
      %2957 = vmatprep.subr.mxu0 0.0
      %2958 = vmatpush1.msra.mxu0 0.0
      %2959 = vmatprep.subr.mxu0 0.0
      %2960 = vmatpush1.msra.mxu0 0.0
      %2961 = vmatprep.subr.mxu0 0.0
      %2962 = vmatpush1.msra.mxu0 0.0
      %2963 = vmatprep.subr.mxu0 0.0
      %2964 = vmatpush1.msra.mxu0 0.0
      %2965 = vmatprep.subr.mxu0 0.0
      %2966 = vmatpush1.msra.mxu0 0.0
      %2967 = vmatprep.subr.mxu0 0.0
      %2968 = vmatpush1.msra.mxu0 0.0
      %2969 = vmatprep.subr.mxu0 0.0
      %2970 = vmatpush1.msra.mxu0 0.0
      %2971 = vmatprep.subr.mxu0 0.0
      %2972 = vmatpush1.msra.mxu0 0.0
      %2973 = vmatprep.subr.mxu0 0.0
      %2974 = vmatpush1.msra.mxu0 0.0
      %2975 = vmatprep.subr.mxu0 0.0
      %2976 = vmatpush1.msra.mxu0 0.0
      %2977 = vmatprep.subr.mxu0 0.0
      %2978 = vmatpush1.msra.mxu0 0.0
      %2979 = vmatprep.subr.mxu0 0.0
      %2980 = vmatpush1.msra.mxu0 0.0
      %2981 = vmatprep.subr.mxu0 0.0
      %2982 = vmatpush1.msra.mxu0 0.0
      %2983 = vmatprep.subr.mxu0 0.0
      %2984 = vmatpush1.msra.mxu0 0.0
      %2985 = vmatprep.mubr.f32.mxu0 0.0
      %2986 = vmatmul.mubr.f32.gmra.mrb[0].mxu0 %v2916
      %v2987 = vpop.f32.mrb[0].mxu0
      %v2988 = vadd.f32 %v2913, %v2987
      %v2989 = vpop.f32.mrb[0].mxu0
      %2990 = vmatprep.mubr.f32.mxu0 0.0
      %2991 = vmatmul.mubr.f32.gmra.mrb[0].mxu0 %v2919
      %v2992 = vpop.f32.mrb[0].mxu0
      %v2993 = vadd.f32 %v2913, %v2992
      %v2994 = vpop.f32.mrb[0].mxu0
      %2995 = vdwg.mxu0
      %v2996 = vld [vmem:[%s2] sm:$0xff]
      %v2997 = vld [vmem:[%s2 + $0x8] sm:$0xff]
      %v2998 = vld [vmem:[%s2 + $0x10] sm:$0xff]
      %v2999 = vld [vmem:[%s2 + $0x18] sm:$0xff]
      %v3000 = vld [vmem:[%s1157] sm:$0xff]
      %v3001 = vld [vmem:[%s1157 + $0x8] sm:$0xff]
      %v3002 = vld [vmem:[%s1157 + $0x10] sm:$0xff]
      %v3003 = vld [vmem:[%s1157 + $0x18] sm:$0xff]
      %v3004 = vld [vmem:[%s1160] sm:$0x1]
      %v3006 = vlaneseq
      %v3007 = vshrl.u32 %v3006, 7
      %v3008 = vsub.s32 0, %v3007
      %v3009 = vrot.slane %v3004, %v3008
      %v3012 = vsel %vm1242, %v2996, 0
      %v3015 = vsel %vm1242, %v2997, 0
      %v3018 = vsel %vm1242, %v2998, 0
      %v3021 = vsel %vm1242, %v2999, 0
      %3023 = vmatprep.subr.mxu0 0.0
      %3024 = vmatpush1.msra.mxu0 %v3000
      %3025 = vmatprep.subr.mxu0 0.0
      %3026 = vmatpush1.msra.mxu0 %v3001
      %3027 = vmatprep.subr.mxu0 0.0
      %3028 = vmatpush1.msra.mxu0 %v3002
      %3029 = vmatprep.subr.mxu0 0.0
      %3030 = vmatpush1.msra.mxu0 %v3003
      %3031 = vmatprep.subr.mxu0 0.0
      %3032 = vmatpush1.msra.mxu0 0.0
      %3033 = vmatprep.subr.mxu0 0.0
      %3034 = vmatpush1.msra.mxu0 0.0
      %3035 = vmatprep.subr.mxu0 0.0
      %3036 = vmatpush1.msra.mxu0 0.0
      %3037 = vmatprep.subr.mxu0 0.0
      %3038 = vmatpush1.msra.mxu0 0.0
      %3039 = vmatprep.subr.mxu0 0.0
      %3040 = vmatpush1.msra.mxu0 0.0
      %3041 = vmatprep.subr.mxu0 0.0
      %3042 = vmatpush1.msra.mxu0 0.0
      %3043 = vmatprep.subr.mxu0 0.0
      %3044 = vmatpush1.msra.mxu0 0.0
      %3045 = vmatprep.subr.mxu0 0.0
      %3046 = vmatpush1.msra.mxu0 0.0
      %3047 = vmatprep.subr.mxu0 0.0
      %3048 = vmatpush1.msra.mxu0 0.0
      %3049 = vmatprep.subr.mxu0 0.0
      %3050 = vmatpush1.msra.mxu0 0.0
      %3051 = vmatprep.subr.mxu0 0.0
      %3052 = vmatpush1.msra.mxu0 0.0
      %3053 = vmatprep.subr.mxu0 0.0
      %3054 = vmatpush1.msra.mxu0 0.0
      %3055 = vmatprep.subr.mxu0 0.0
      %3056 = vmatpush1.msra.mxu0 0.0
      %3057 = vmatprep.subr.mxu0 0.0
      %3058 = vmatpush1.msra.mxu0 0.0
      %3059 = vmatprep.subr.mxu0 0.0
      %3060 = vmatpush1.msra.mxu0 0.0
      %3061 = vmatprep.subr.mxu0 0.0
      %3062 = vmatpush1.msra.mxu0 0.0
      %3063 = vmatprep.subr.mxu0 0.0
      %3064 = vmatpush1.msra.mxu0 0.0
      %3065 = vmatprep.subr.mxu0 0.0
      %3066 = vmatpush1.msra.mxu0 0.0
      %3067 = vmatprep.subr.mxu0 0.0
      %3068 = vmatpush1.msra.mxu0 0.0
      %3069 = vmatprep.subr.mxu0 0.0
      %3070 = vmatpush1.msra.mxu0 0.0
      %3071 = vmatprep.subr.mxu0 0.0
      %3072 = vmatpush1.msra.mxu0 0.0
      %3073 = vmatprep.subr.mxu0 0.0
      %3074 = vmatpush1.msra.mxu0 0.0
      %3075 = vmatprep.subr.mxu0 0.0
      %3076 = vmatpush1.msra.mxu0 0.0
      %3077 = vmatprep.subr.mxu0 0.0
      %3078 = vmatpush1.msra.mxu0 0.0
      %3079 = vmatprep.subr.mxu0 0.0
      %3080 = vmatpush1.msra.mxu0 0.0
      %3081 = vmatprep.subr.mxu0 0.0
      %3082 = vmatpush1.msra.mxu0 0.0
      %3083 = vmatprep.subr.mxu0 0.0
      %3084 = vmatpush1.msra.mxu0 0.0
      %3085 = vmatprep.subr.mxu0 0.0
      %3086 = vmatpush1.msra.mxu0 0.0
      %3087 = vmatprep.mubr.f32.mxu0 0.0
      %3088 = vmatmul.mubr.f32.gmra.mrb[0].mxu0 %v3012
      %v3089 = vpop.f32.mrb[0].mxu0
      %v3090 = vadd.f32 %v3009, %v3089
      %v3091 = vpop.f32.mrb[0].mxu0
      %3092 = vmatprep.mubr.f32.mxu0 0.0
      %3093 = vmatmul.mubr.f32.gmra.mrb[0].mxu0 %v3015
      %v3094 = vpop.f32.mrb[0].mxu0
      %v3095 = vadd.f32 %v3009, %v3094
      %v3096 = vpop.f32.mrb[0].mxu0
      %3097 = vmatprep.mubr.f32.mxu0 0.0
      %3098 = vmatmul.mubr.f32.gmra.mrb[0].mxu0 %v3018
      %v3099 = vpop.f32.mrb[0].mxu0
      %v3100 = vadd.f32 %v3009, %v3099
      %v3101 = vpop.f32.mrb[0].mxu0
      %3102 = vmatprep.mubr.f32.mxu0 0.0
      %3103 = vmatmul.mubr.f32.gmra.mrb[0].mxu0 %v3021
      %v3104 = vpop.f32.mrb[0].mxu0
      %v3105 = vadd.f32 %v3009, %v3104
      %v3106 = vpop.f32.mrb[0].mxu0
      %3107 = vdwg.mxu0
      %v3108 = vld [vmem:[%s3] sm:$0xff]
      %v3109 = vld [vmem:[%s3 + $0x8] sm:$0xff]
      %v3110 = vld [vmem:[%s3 + $0x10] sm:$0xff]
      %v3111 = vld [vmem:[%s3 + $0x18] sm:$0xff]
      %v3112 = vld [vmem:[%s1165] sm:$0xff]
      %v3113 = vld [vmem:[%s1165 + $0x8] sm:$0xff]
      %v3114 = vld [vmem:[%s1165 + $0x10] sm:$0xff]
      %v3115 = vld [vmem:[%s1165 + $0x18] sm:$0xff]
      %v3116 = vld [vmem:[%s1168] sm:$0x1]
      %v3118 = vlaneseq
      %v3119 = vshrl.u32 %v3118, 7
      %v3120 = vsub.s32 0, %v3119
      %v3121 = vrot.slane %v3116, %v3120
      %v3124 = vsel %vm1242, %v3108, 0
      %v3127 = vsel %vm1242, %v3109, 0
      %v3130 = vsel %vm1242, %v3110, 0
      %v3133 = vsel %vm1242, %v3111, 0
      %3135 = vmatprep.subr.mxu0 0.0
      %3136 = vmatpush1.msra.mxu0 %v3112
      %3137 = vmatprep.subr.mxu0 0.0
      %3138 = vmatpush1.msra.mxu0 %v3113
      %3139 = vmatprep.subr.mxu0 0.0
      %3140 = vmatpush1.msra.mxu0 %v3114
      %3141 = vmatprep.subr.mxu0 0.0
      %3142 = vmatpush1.msra.mxu0 %v3115
      %3143 = vmatprep.subr.mxu0 0.0
      %3144 = vmatpush1.msra.mxu0 0.0
      %3145 = vmatprep.subr.mxu0 0.0
      %3146 = vmatpush1.msra.mxu0 0.0
      %3147 = vmatprep.subr.mxu0 0.0
      %3148 = vmatpush1.msra.mxu0 0.0
      %3149 = vmatprep.subr.mxu0 0.0
      %3150 = vmatpush1.msra.mxu0 0.0
      %3151 = vmatprep.subr.mxu0 0.0
      %3152 = vmatpush1.msra.mxu0 0.0
      %3153 = vmatprep.subr.mxu0 0.0
      %3154 = vmatpush1.msra.mxu0 0.0
      %3155 = vmatprep.subr.mxu0 0.0
      %3156 = vmatpush1.msra.mxu0 0.0
      %3157 = vmatprep.subr.mxu0 0.0
      %3158 = vmatpush1.msra.mxu0 0.0
      %3159 = vmatprep.subr.mxu0 0.0
      %3160 = vmatpush1.msra.mxu0 0.0
      %3161 = vmatprep.subr.mxu0 0.0
      %3162 = vmatpush1.msra.mxu0 0.0
      %3163 = vmatprep.subr.mxu0 0.0
      %3164 = vmatpush1.msra.mxu0 0.0
      %3165 = vmatprep.subr.mxu0 0.0
      %3166 = vmatpush1.msra.mxu0 0.0
      %3167 = vmatprep.subr.mxu0 0.0
      %3168 = vmatpush1.msra.mxu0 0.0
      %3169 = vmatprep.subr.mxu0 0.0
      %3170 = vmatpush1.msra.mxu0 0.0
      %3171 = vmatprep.subr.mxu0 0.0
      %3172 = vmatpush1.msra.mxu0 0.0
      %3173 = vmatprep.subr.mxu0 0.0
      %3174 = vmatpush1.msra.mxu0 0.0
      %3175 = vmatprep.subr.mxu0 0.0
      %3176 = vmatpush1.msra.mxu0 0.0
      %3177 = vmatprep.subr.mxu0 0.0
      %3178 = vmatpush1.msra.mxu0 0.0
      %3179 = vmatprep.subr.mxu0 0.0
      %3180 = vmatpush1.msra.mxu0 0.0
      %3181 = vmatprep.subr.mxu0 0.0
      %3182 = vmatpush1.msra.mxu0 0.0
      %3183 = vmatprep.subr.mxu0 0.0
      %3184 = vmatpush1.msra.mxu0 0.0
      %3185 = vmatprep.subr.mxu0 0.0
      %3186 = vmatpush1.msra.mxu0 0.0
      %3187 = vmatprep.subr.mxu0 0.0
      %3188 = vmatpush1.msra.mxu0 0.0
      %3189 = vmatprep.subr.mxu0 0.0
      %3190 = vmatpush1.msra.mxu0 0.0
      %3191 = vmatprep.subr.mxu0 0.0
      %3192 = vmatpush1.msra.mxu0 0.0
      %3193 = vmatprep.subr.mxu0 0.0
      %3194 = vmatpush1.msra.mxu0 0.0
      %3195 = vmatprep.subr.mxu0 0.0
      %3196 = vmatpush1.msra.mxu0 0.0
      %3197 = vmatprep.subr.mxu0 0.0
      %3198 = vmatpush1.msra.mxu0 0.0
      %3199 = vmatprep.mubr.f32.mxu0 0.0
      %3200 = vmatmul.mubr.f32.gmra.mrb[0].mxu0 %v3124
      %v3201 = vpop.f32.mrb[0].mxu0
      %v3202 = vadd.f32 %v3121, %v3201
      %v3203 = vpop.f32.mrb[0].mxu0
      %3204 = vmatprep.mubr.f32.mxu0 0.0
      %3205 = vmatmul.mubr.f32.gmra.mrb[0].mxu0 %v3127
      %v3206 = vpop.f32.mrb[0].mxu0
      %v3207 = vadd.f32 %v3121, %v3206
      %v3208 = vpop.f32.mrb[0].mxu0
      %3209 = vmatprep.mubr.f32.mxu0 0.0
      %3210 = vmatmul.mubr.f32.gmra.mrb[0].mxu0 %v3130
      %v3211 = vpop.f32.mrb[0].mxu0
      %v3212 = vadd.f32 %v3121, %v3211
      %v3213 = vpop.f32.mrb[0].mxu0
      %3214 = vmatprep.mubr.f32.mxu0 0.0
      %3215 = vmatmul.mubr.f32.gmra.mrb[0].mxu0 %v3133
      %v3216 = vpop.f32.mrb[0].mxu0
      %v3217 = vadd.f32 %v3121, %v3216
      %v3218 = vpop.f32.mrb[0].mxu0
      %3219 = vdwg.mxu0
      %v3220 = vld [vmem:[%s1173] sm:$0xff]
      %v3221 = vld [vmem:[%s1173 + $0x8] sm:$0xff]
      %v3222 = vld [vmem:[%s1173 + $0x10] sm:$0xff]
      %v3223 = vld [vmem:[%s1173 + $0x18] sm:$0xff]
      %v3224 = vld [vmem:[%s1176] sm:$0x1]
      %v3226 = vsel %vm1424, %v2988, 0
      %v3229 = vsel %vm1424, %v3090, 0
      %v3232 = vsel %vm1424, %v3095, 0
      %3234 = vmatprep.subr.mxu0 0.0
      %3235 = vmatpush1.xpose.msra.mxu0 %v3229
      %3236 = vmatprep.subr.mxu0 0.0
      %3237 = vmatpush1.xpose.msra.mxu0 %v3232
      %3238 = vmatprep.subr.mxu0 0.0
      %3239 = vmatpush1.xpose.msra.mxu0 0.0
      %3240 = vmatprep.subr.mxu0 0.0
      %3241 = vmatpush1.xpose.msra.mxu0 0.0
      %3242 = vmatprep.subr.mxu0 0.0
      %3243 = vmatpush1.xpose.msra.mxu0 0.0
      %3244 = vmatprep.subr.mxu0 0.0
      %3245 = vmatpush1.xpose.msra.mxu0 0.0
      %3246 = vmatprep.subr.mxu0 0.0
      %3247 = vmatpush1.xpose.msra.mxu0 0.0
      %3248 = vmatprep.subr.mxu0 0.0
      %3249 = vmatpush1.xpose.msra.mxu0 0.0
      %3250 = vmatprep.subr.mxu0 0.0
      %3251 = vmatpush1.xpose.msra.mxu0 0.0
      %3252 = vmatprep.subr.mxu0 0.0
      %3253 = vmatpush1.xpose.msra.mxu0 0.0
      %3254 = vmatprep.subr.mxu0 0.0
      %3255 = vmatpush1.xpose.msra.mxu0 0.0
      %3256 = vmatprep.subr.mxu0 0.0
      %3257 = vmatpush1.xpose.msra.mxu0 0.0
      %3258 = vmatprep.subr.mxu0 0.0
      %3259 = vmatpush1.xpose.msra.mxu0 0.0
      %3260 = vmatprep.subr.mxu0 0.0
      %3261 = vmatpush1.xpose.msra.mxu0 0.0
      %3262 = vmatprep.subr.mxu0 0.0
      %3263 = vmatpush1.xpose.msra.mxu0 0.0
      %3264 = vmatprep.subr.mxu0 0.0
      %3265 = vmatpush1.xpose.msra.mxu0 0.0
      %3266 = vmatprep.subr.mxu0 0.0
      %3267 = vmatpush1.xpose.msra.mxu0 0.0
      %3268 = vmatprep.subr.mxu0 0.0
      %3269 = vmatpush1.xpose.msra.mxu0 0.0
      %3270 = vmatprep.subr.mxu0 0.0
      %3271 = vmatpush1.xpose.msra.mxu0 0.0
      %3272 = vmatprep.subr.mxu0 0.0
      %3273 = vmatpush1.xpose.msra.mxu0 0.0
      %3274 = vmatprep.subr.mxu0 0.0
      %3275 = vmatpush1.xpose.msra.mxu0 0.0
      %3276 = vmatprep.subr.mxu0 0.0
      %3277 = vmatpush1.xpose.msra.mxu0 0.0
      %3278 = vmatprep.subr.mxu0 0.0
      %3279 = vmatpush1.xpose.msra.mxu0 0.0
      %3280 = vmatprep.subr.mxu0 0.0
      %3281 = vmatpush1.xpose.msra.mxu0 0.0
      %3282 = vmatprep.subr.mxu0 0.0
      %3283 = vmatpush1.xpose.msra.mxu0 0.0
      %3284 = vmatprep.subr.mxu0 0.0
      %3285 = vmatpush1.xpose.msra.mxu0 0.0
      %3286 = vmatprep.subr.mxu0 0.0
      %3287 = vmatpush1.xpose.msra.mxu0 0.0
      %3288 = vmatprep.subr.mxu0 0.0
      %3289 = vmatpush1.xpose.msra.mxu0 0.0
      %3290 = vmatprep.subr.mxu0 0.0
      %3291 = vmatpush1.xpose.msra.mxu0 0.0
      %3292 = vmatprep.subr.mxu0 0.0
      %3293 = vmatpush1.xpose.msra.mxu0 0.0
      %3294 = vmatprep.subr.mxu0 0.0
      %3295 = vmatpush1.xpose.msra.mxu0 0.0
      %3296 = vmatprep.subr.mxu0 0.0
      %3297 = vmatpush1.xpose.msra.mxu0 0.0
      %3298 = vmatprep.mubr.f32.mxu0 0.0
      %3299 = vmatmul.mubr.f32.gmra.mrb[0].mxu0 %v3226
      %v3300 = vpop.f32.mrb[0].mxu0
      %v3301 = vadd.f32 0.0, %v3300
      %v3302 = vpop.f32.mrb[0].mxu0
      %3303 = vdwg.mxu0
      %v3305 = vsel %vm1424, %v2993, 0
      %v3308 = vsel %vm1424, %v3100, 0
      %v3311 = vsel %vm1424, %v3105, 0
      %3313 = vmatprep.subr.mxu0 0.0
      %3314 = vmatpush1.xpose.msra.mxu0 %v3308
      %3315 = vmatprep.subr.mxu0 0.0
      %3316 = vmatpush1.xpose.msra.mxu0 %v3311
      %3317 = vmatprep.subr.mxu0 0.0
      %3318 = vmatpush1.xpose.msra.mxu0 0.0
      %3319 = vmatprep.subr.mxu0 0.0
      %3320 = vmatpush1.xpose.msra.mxu0 0.0
      %3321 = vmatprep.subr.mxu0 0.0
      %3322 = vmatpush1.xpose.msra.mxu0 0.0
      %3323 = vmatprep.subr.mxu0 0.0
      %3324 = vmatpush1.xpose.msra.mxu0 0.0
      %3325 = vmatprep.subr.mxu0 0.0
      %3326 = vmatpush1.xpose.msra.mxu0 0.0
      %3327 = vmatprep.subr.mxu0 0.0
      %3328 = vmatpush1.xpose.msra.mxu0 0.0
      %3329 = vmatprep.subr.mxu0 0.0
      %3330 = vmatpush1.xpose.msra.mxu0 0.0
      %3331 = vmatprep.subr.mxu0 0.0
      %3332 = vmatpush1.xpose.msra.mxu0 0.0
      %3333 = vmatprep.subr.mxu0 0.0
      %3334 = vmatpush1.xpose.msra.mxu0 0.0
      %3335 = vmatprep.subr.mxu0 0.0
      %3336 = vmatpush1.xpose.msra.mxu0 0.0
      %3337 = vmatprep.subr.mxu0 0.0
      %3338 = vmatpush1.xpose.msra.mxu0 0.0
      %3339 = vmatprep.subr.mxu0 0.0
      %3340 = vmatpush1.xpose.msra.mxu0 0.0
      %3341 = vmatprep.subr.mxu0 0.0
      %3342 = vmatpush1.xpose.msra.mxu0 0.0
      %3343 = vmatprep.subr.mxu0 0.0
      %3344 = vmatpush1.xpose.msra.mxu0 0.0
      %3345 = vmatprep.subr.mxu0 0.0
      %3346 = vmatpush1.xpose.msra.mxu0 0.0
      %3347 = vmatprep.subr.mxu0 0.0
      %3348 = vmatpush1.xpose.msra.mxu0 0.0
      %3349 = vmatprep.subr.mxu0 0.0
      %3350 = vmatpush1.xpose.msra.mxu0 0.0
      %3351 = vmatprep.subr.mxu0 0.0
      %3352 = vmatpush1.xpose.msra.mxu0 0.0
      %3353 = vmatprep.subr.mxu0 0.0
      %3354 = vmatpush1.xpose.msra.mxu0 0.0
      %3355 = vmatprep.subr.mxu0 0.0
      %3356 = vmatpush1.xpose.msra.mxu0 0.0
      %3357 = vmatprep.subr.mxu0 0.0
      %3358 = vmatpush1.xpose.msra.mxu0 0.0
      %3359 = vmatprep.subr.mxu0 0.0
      %3360 = vmatpush1.xpose.msra.mxu0 0.0
      %3361 = vmatprep.subr.mxu0 0.0
      %3362 = vmatpush1.xpose.msra.mxu0 0.0
      %3363 = vmatprep.subr.mxu0 0.0
      %3364 = vmatpush1.xpose.msra.mxu0 0.0
      %3365 = vmatprep.subr.mxu0 0.0
      %3366 = vmatpush1.xpose.msra.mxu0 0.0
      %3367 = vmatprep.subr.mxu0 0.0
      %3368 = vmatpush1.xpose.msra.mxu0 0.0
      %3369 = vmatprep.subr.mxu0 0.0
      %3370 = vmatpush1.xpose.msra.mxu0 0.0
      %3371 = vmatprep.subr.mxu0 0.0
      %3372 = vmatpush1.xpose.msra.mxu0 0.0
      %3373 = vmatprep.subr.mxu0 0.0
      %3374 = vmatpush1.xpose.msra.mxu0 0.0
      %3375 = vmatprep.subr.mxu0 0.0
      %3376 = vmatpush1.xpose.msra.mxu0 0.0
      %3377 = vmatprep.mubr.f32.mxu0 0.0
      %3378 = vmatmul.mubr.f32.gmra.mrb[0].mxu0 %v3305
      %v3379 = vpop.f32.mrb[0].mxu0
      %v3380 = vadd.f32 0.0, %v3379
      %v3381 = vpop.f32.mrb[0].mxu0
      %3382 = vdwg.mxu0
      %v3383 = vsel %vm2762, %v3301, -inf
      %3384 = vmax.xlane.f32.xlu0 %v3383
      %v3385 = vpop.xlane.xlu0 %3384
      %v3386 = vsel %vm2762, %v3380, -inf
      %3387 = vmax.xlane.f32.xlu0 %v3386
      %v3388 = vpop.xlane.xlu0 %3387
      %v3389 = vsub.f32 %v3301, %v3385
      %v3390 = vsub.f32 %v3380, %v3388
      %v3391 = vmul.f32 %v3389, 1.442695
      %v3392 = vpow.pop %v3391
      %v3393 = vmul.f32 %v3390, 1.442695
      %v3394 = vpow.pop %v3393
      %v3395 = vsel %vm2762, %v3392, 0.0
      %3396 = vadd.xlane.f32.xlu0 %v3395
      %v3397 = vpop.xlane.xlu0 %3396
      %v3398 = vsel %vm2762, %v3394, 0.0
      %3399 = vadd.xlane.f32.xlu0 %v3398
      %v3400 = vpop.xlane.xlu0 %3399
      %v3401 = vrcp.pop %v3397
      %v3402 = vrcp.pop %v3400
      %v3403 = vmul.f32 %v3392, %v3401
      %v3404 = vmul.f32 %v3394, %v3402
      %v3406 = vsel %vm2762, %v3403, 0
      %3408 = vmatprep.subr.mxu0 0.0
      %3409 = vmatpush1.msra.mxu0 %v3202
      %3410 = vmatprep.subr.mxu0 0.0
      %3411 = vmatpush1.msra.mxu0 %v3207
      %3412 = vmatprep.subr.mxu0 0.0
      %3413 = vmatpush1.msra.mxu0 0.0
      %3414 = vmatprep.subr.mxu0 0.0
      %3415 = vmatpush1.msra.mxu0 0.0
      %3416 = vmatprep.subr.mxu0 0.0
      %3417 = vmatpush1.msra.mxu0 0.0
      %3418 = vmatprep.subr.mxu0 0.0
      %3419 = vmatpush1.msra.mxu0 0.0
      %3420 = vmatprep.subr.mxu0 0.0
      %3421 = vmatpush1.msra.mxu0 0.0
      %3422 = vmatprep.subr.mxu0 0.0
      %3423 = vmatpush1.msra.mxu0 0.0
      %3424 = vmatprep.subr.mxu0 0.0
      %3425 = vmatpush1.msra.mxu0 0.0
      %3426 = vmatprep.subr.mxu0 0.0
      %3427 = vmatpush1.msra.mxu0 0.0
      %3428 = vmatprep.subr.mxu0 0.0
      %3429 = vmatpush1.msra.mxu0 0.0
      %3430 = vmatprep.subr.mxu0 0.0
      %3431 = vmatpush1.msra.mxu0 0.0
      %3432 = vmatprep.subr.mxu0 0.0
      %3433 = vmatpush1.msra.mxu0 0.0
      %3434 = vmatprep.subr.mxu0 0.0
      %3435 = vmatpush1.msra.mxu0 0.0
      %3436 = vmatprep.subr.mxu0 0.0
      %3437 = vmatpush1.msra.mxu0 0.0
      %3438 = vmatprep.subr.mxu0 0.0
      %3439 = vmatpush1.msra.mxu0 0.0
      %3440 = vmatprep.subr.mxu0 0.0
      %3441 = vmatpush1.msra.mxu0 0.0
      %3442 = vmatprep.subr.mxu0 0.0
      %3443 = vmatpush1.msra.mxu0 0.0
      %3444 = vmatprep.subr.mxu0 0.0
      %3445 = vmatpush1.msra.mxu0 0.0
      %3446 = vmatprep.subr.mxu0 0.0
      %3447 = vmatpush1.msra.mxu0 0.0
      %3448 = vmatprep.subr.mxu0 0.0
      %3449 = vmatpush1.msra.mxu0 0.0
      %3450 = vmatprep.subr.mxu0 0.0
      %3451 = vmatpush1.msra.mxu0 0.0
      %3452 = vmatprep.subr.mxu0 0.0
      %3453 = vmatpush1.msra.mxu0 0.0
      %3454 = vmatprep.subr.mxu0 0.0
      %3455 = vmatpush1.msra.mxu0 0.0
      %3456 = vmatprep.subr.mxu0 0.0
      %3457 = vmatpush1.msra.mxu0 0.0
      %3458 = vmatprep.subr.mxu0 0.0
      %3459 = vmatpush1.msra.mxu0 0.0
      %3460 = vmatprep.subr.mxu0 0.0
      %3461 = vmatpush1.msra.mxu0 0.0
      %3462 = vmatprep.subr.mxu0 0.0
      %3463 = vmatpush1.msra.mxu0 0.0
      %3464 = vmatprep.subr.mxu0 0.0
      %3465 = vmatpush1.msra.mxu0 0.0
      %3466 = vmatprep.subr.mxu0 0.0
      %3467 = vmatpush1.msra.mxu0 0.0
      %3468 = vmatprep.subr.mxu0 0.0
      %3469 = vmatpush1.msra.mxu0 0.0
      %3470 = vmatprep.subr.mxu0 0.0
      %3471 = vmatpush1.msra.mxu0 0.0
      %3472 = vmatprep.mubr.f32.mxu0 0.0
      %3473 = vmatmul.mubr.f32.gmra.mrb[0].mxu0 %v3406
      %v3474 = vpop.f32.mrb[0].mxu0
      %v3475 = vadd.f32 0.0, %v3474
      %v3476 = vpop.f32.mrb[0].mxu0
      %3477 = vdwg.mxu0
      %v3479 = vsel %vm2762, %v3404, 0
      %3481 = vmatprep.subr.mxu0 0.0
      %3482 = vmatpush1.msra.mxu0 %v3212
      %3483 = vmatprep.subr.mxu0 0.0
      %3484 = vmatpush1.msra.mxu0 %v3217
      %3485 = vmatprep.subr.mxu0 0.0
      %3486 = vmatpush1.msra.mxu0 0.0
      %3487 = vmatprep.subr.mxu0 0.0
      %3488 = vmatpush1.msra.mxu0 0.0
      %3489 = vmatprep.subr.mxu0 0.0
      %3490 = vmatpush1.msra.mxu0 0.0
      %3491 = vmatprep.subr.mxu0 0.0
      %3492 = vmatpush1.msra.mxu0 0.0
      %3493 = vmatprep.subr.mxu0 0.0
      %3494 = vmatpush1.msra.mxu0 0.0
      %3495 = vmatprep.subr.mxu0 0.0
      %3496 = vmatpush1.msra.mxu0 0.0
      %3497 = vmatprep.subr.mxu0 0.0
      %3498 = vmatpush1.msra.mxu0 0.0
      %3499 = vmatprep.subr.mxu0 0.0
      %3500 = vmatpush1.msra.mxu0 0.0
      %3501 = vmatprep.subr.mxu0 0.0
      %3502 = vmatpush1.msra.mxu0 0.0
      %3503 = vmatprep.subr.mxu0 0.0
      %3504 = vmatpush1.msra.mxu0 0.0
      %3505 = vmatprep.subr.mxu0 0.0
      %3506 = vmatpush1.msra.mxu0 0.0
      %3507 = vmatprep.subr.mxu0 0.0
      %3508 = vmatpush1.msra.mxu0 0.0
      %3509 = vmatprep.subr.mxu0 0.0
      %3510 = vmatpush1.msra.mxu0 0.0
      %3511 = vmatprep.subr.mxu0 0.0
      %3512 = vmatpush1.msra.mxu0 0.0
      %3513 = vmatprep.subr.mxu0 0.0
      %3514 = vmatpush1.msra.mxu0 0.0
      %3515 = vmatprep.subr.mxu0 0.0
      %3516 = vmatpush1.msra.mxu0 0.0
      %3517 = vmatprep.subr.mxu0 0.0
      %3518 = vmatpush1.msra.mxu0 0.0
      %3519 = vmatprep.subr.mxu0 0.0
      %3520 = vmatpush1.msra.mxu0 0.0
      %3521 = vmatprep.subr.mxu0 0.0
      %3522 = vmatpush1.msra.mxu0 0.0
      %3523 = vmatprep.subr.mxu0 0.0
      %3524 = vmatpush1.msra.mxu0 0.0
      %3525 = vmatprep.subr.mxu0 0.0
      %3526 = vmatpush1.msra.mxu0 0.0
      %3527 = vmatprep.subr.mxu0 0.0
      %3528 = vmatpush1.msra.mxu0 0.0
      %3529 = vmatprep.subr.mxu0 0.0
      %3530 = vmatpush1.msra.mxu0 0.0
      %3531 = vmatprep.subr.mxu0 0.0
      %3532 = vmatpush1.msra.mxu0 0.0
      %3533 = vmatprep.subr.mxu0 0.0
      %3534 = vmatpush1.msra.mxu0 0.0
      %3535 = vmatprep.subr.mxu0 0.0
      %3536 = vmatpush1.msra.mxu0 0.0
      %3537 = vmatprep.subr.mxu0 0.0
      %3538 = vmatpush1.msra.mxu0 0.0
      %3539 = vmatprep.subr.mxu0 0.0
      %3540 = vmatpush1.msra.mxu0 0.0
      %3541 = vmatprep.subr.mxu0 0.0
      %3542 = vmatpush1.msra.mxu0 0.0
      %3543 = vmatprep.subr.mxu0 0.0
      %3544 = vmatpush1.msra.mxu0 0.0
      %3545 = vmatprep.mubr.f32.mxu0 0.0
      %3546 = vmatmul.mubr.f32.gmra.mrb[0].mxu0 %v3479
      %v3547 = vpop.f32.mrb[0].mxu0
      %v3548 = vadd.f32 0.0, %v3547
      %v3549 = vpop.f32.mrb[0].mxu0
      %3550 = vdwg.mxu0
      %3551 = vrot.lane.b32.xlu0 %v2988, 120
      %v3552 = vpop.permute.xlu0 %3551
      %3553 = vrot.lane.b32.xlu0 %v3090, 120
      %v3554 = vpop.permute.xlu0 %3553
      %3555 = vrot.lane.b32.xlu0 %v3095, 120
      %v3556 = vpop.permute.xlu0 %3555
      %v3557 = vsel %vm1424, %v3552, 0
      %v3559 = vsel %vm1424, %v3554, 0
      %v3561 = vsel %vm1424, %v3556, 0
      %3563 = vmatprep.subr.mxu0 0.0
      %3564 = vmatpush1.xpose.msra.mxu0 %v3559
      %3565 = vmatprep.subr.mxu0 0.0
      %3566 = vmatpush1.xpose.msra.mxu0 %v3561
      %3567 = vmatprep.subr.mxu0 0.0
      %3568 = vmatpush1.xpose.msra.mxu0 0.0
      %3569 = vmatprep.subr.mxu0 0.0
      %3570 = vmatpush1.xpose.msra.mxu0 0.0
      %3571 = vmatprep.subr.mxu0 0.0
      %3572 = vmatpush1.xpose.msra.mxu0 0.0
      %3573 = vmatprep.subr.mxu0 0.0
      %3574 = vmatpush1.xpose.msra.mxu0 0.0
      %3575 = vmatprep.subr.mxu0 0.0
      %3576 = vmatpush1.xpose.msra.mxu0 0.0
      %3577 = vmatprep.subr.mxu0 0.0
      %3578 = vmatpush1.xpose.msra.mxu0 0.0
      %3579 = vmatprep.subr.mxu0 0.0
      %3580 = vmatpush1.xpose.msra.mxu0 0.0
      %3581 = vmatprep.subr.mxu0 0.0
      %3582 = vmatpush1.xpose.msra.mxu0 0.0
      %3583 = vmatprep.subr.mxu0 0.0
      %3584 = vmatpush1.xpose.msra.mxu0 0.0
      %3585 = vmatprep.subr.mxu0 0.0
      %3586 = vmatpush1.xpose.msra.mxu0 0.0
      %3587 = vmatprep.subr.mxu0 0.0
      %3588 = vmatpush1.xpose.msra.mxu0 0.0
      %3589 = vmatprep.subr.mxu0 0.0
      %3590 = vmatpush1.xpose.msra.mxu0 0.0
      %3591 = vmatprep.subr.mxu0 0.0
      %3592 = vmatpush1.xpose.msra.mxu0 0.0
      %3593 = vmatprep.subr.mxu0 0.0
      %3594 = vmatpush1.xpose.msra.mxu0 0.0
      %3595 = vmatprep.subr.mxu0 0.0
      %3596 = vmatpush1.xpose.msra.mxu0 0.0
      %3597 = vmatprep.subr.mxu0 0.0
      %3598 = vmatpush1.xpose.msra.mxu0 0.0
      %3599 = vmatprep.subr.mxu0 0.0
      %3600 = vmatpush1.xpose.msra.mxu0 0.0
      %3601 = vmatprep.subr.mxu0 0.0
      %3602 = vmatpush1.xpose.msra.mxu0 0.0
      %3603 = vmatprep.subr.mxu0 0.0
      %3604 = vmatpush1.xpose.msra.mxu0 0.0
      %3605 = vmatprep.subr.mxu0 0.0
      %3606 = vmatpush1.xpose.msra.mxu0 0.0
      %3607 = vmatprep.subr.mxu0 0.0
      %3608 = vmatpush1.xpose.msra.mxu0 0.0
      %3609 = vmatprep.subr.mxu0 0.0
      %3610 = vmatpush1.xpose.msra.mxu0 0.0
      %3611 = vmatprep.subr.mxu0 0.0
      %3612 = vmatpush1.xpose.msra.mxu0 0.0
      %3613 = vmatprep.subr.mxu0 0.0
      %3614 = vmatpush1.xpose.msra.mxu0 0.0
      %3615 = vmatprep.subr.mxu0 0.0
      %3616 = vmatpush1.xpose.msra.mxu0 0.0
      %3617 = vmatprep.subr.mxu0 0.0
      %3618 = vmatpush1.xpose.msra.mxu0 0.0
      %3619 = vmatprep.subr.mxu0 0.0
      %3620 = vmatpush1.xpose.msra.mxu0 0.0
      %3621 = vmatprep.subr.mxu0 0.0
      %3622 = vmatpush1.xpose.msra.mxu0 0.0
      %3623 = vmatprep.subr.mxu0 0.0
      %3624 = vmatpush1.xpose.msra.mxu0 0.0
      %3625 = vmatprep.subr.mxu0 0.0
      %3626 = vmatpush1.xpose.msra.mxu0 0.0
      %3627 = vmatprep.mubr.f32.mxu0 0.0
      %3628 = vmatmul.mubr.f32.gmra.mrb[0].mxu0 %v3557
      %v3629 = vpop.f32.mrb[0].mxu0
      %v3630 = vadd.f32 0.0, %v3629
      %v3631 = vpop.f32.mrb[0].mxu0
      %3632 = vdwg.mxu0
      %3633 = vrot.lane.b32.xlu0 %v2993, 120
      %v3634 = vpop.permute.xlu0 %3633
      %3635 = vrot.lane.b32.xlu0 %v3100, 120
      %v3636 = vpop.permute.xlu0 %3635
      %3637 = vrot.lane.b32.xlu0 %v3105, 120
      %v3638 = vpop.permute.xlu0 %3637
      %v3639 = vsel %vm1424, %v3634, 0
      %v3641 = vsel %vm1424, %v3636, 0
      %v3643 = vsel %vm1424, %v3638, 0
      %3645 = vmatprep.subr.mxu0 0.0
      %3646 = vmatpush1.xpose.msra.mxu0 %v3641
      %3647 = vmatprep.subr.mxu0 0.0
      %3648 = vmatpush1.xpose.msra.mxu0 %v3643
      %3649 = vmatprep.subr.mxu0 0.0
      %3650 = vmatpush1.xpose.msra.mxu0 0.0
      %3651 = vmatprep.subr.mxu0 0.0
      %3652 = vmatpush1.xpose.msra.mxu0 0.0
      %3653 = vmatprep.subr.mxu0 0.0
      %3654 = vmatpush1.xpose.msra.mxu0 0.0
      %3655 = vmatprep.subr.mxu0 0.0
      %3656 = vmatpush1.xpose.msra.mxu0 0.0
      %3657 = vmatprep.subr.mxu0 0.0
      %3658 = vmatpush1.xpose.msra.mxu0 0.0
      %3659 = vmatprep.subr.mxu0 0.0
      %3660 = vmatpush1.xpose.msra.mxu0 0.0
      %3661 = vmatprep.subr.mxu0 0.0
      %3662 = vmatpush1.xpose.msra.mxu0 0.0
      %3663 = vmatprep.subr.mxu0 0.0
      %3664 = vmatpush1.xpose.msra.mxu0 0.0
      %3665 = vmatprep.subr.mxu0 0.0
      %3666 = vmatpush1.xpose.msra.mxu0 0.0
      %3667 = vmatprep.subr.mxu0 0.0
      %3668 = vmatpush1.xpose.msra.mxu0 0.0
      %3669 = vmatprep.subr.mxu0 0.0
      %3670 = vmatpush1.xpose.msra.mxu0 0.0
      %3671 = vmatprep.subr.mxu0 0.0
      %3672 = vmatpush1.xpose.msra.mxu0 0.0
      %3673 = vmatprep.subr.mxu0 0.0
      %3674 = vmatpush1.xpose.msra.mxu0 0.0
      %3675 = vmatprep.subr.mxu0 0.0
      %3676 = vmatpush1.xpose.msra.mxu0 0.0
      %3677 = vmatprep.subr.mxu0 0.0
      %3678 = vmatpush1.xpose.msra.mxu0 0.0
      %3679 = vmatprep.subr.mxu0 0.0
      %3680 = vmatpush1.xpose.msra.mxu0 0.0
      %3681 = vmatprep.subr.mxu0 0.0
      %3682 = vmatpush1.xpose.msra.mxu0 0.0
      %3683 = vmatprep.subr.mxu0 0.0
      %3684 = vmatpush1.xpose.msra.mxu0 0.0
      %3685 = vmatprep.subr.mxu0 0.0
      %3686 = vmatpush1.xpose.msra.mxu0 0.0
      %3687 = vmatprep.subr.mxu0 0.0
      %3688 = vmatpush1.xpose.msra.mxu0 0.0
      %3689 = vmatprep.subr.mxu0 0.0
      %3690 = vmatpush1.xpose.msra.mxu0 0.0
      %3691 = vmatprep.subr.mxu0 0.0
      %3692 = vmatpush1.xpose.msra.mxu0 0.0
      %3693 = vmatprep.subr.mxu0 0.0
      %3694 = vmatpush1.xpose.msra.mxu0 0.0
      %3695 = vmatprep.subr.mxu0 0.0
      %3696 = vmatpush1.xpose.msra.mxu0 0.0
      %3697 = vmatprep.subr.mxu0 0.0
      %3698 = vmatpush1.xpose.msra.mxu0 0.0
      %3699 = vmatprep.subr.mxu0 0.0
      %3700 = vmatpush1.xpose.msra.mxu0 0.0
      %3701 = vmatprep.subr.mxu0 0.0
      %3702 = vmatpush1.xpose.msra.mxu0 0.0
      %3703 = vmatprep.subr.mxu0 0.0
      %3704 = vmatpush1.xpose.msra.mxu0 0.0
      %3705 = vmatprep.subr.mxu0 0.0
      %3706 = vmatpush1.xpose.msra.mxu0 0.0
      %3707 = vmatprep.subr.mxu0 0.0
      %3708 = vmatpush1.xpose.msra.mxu0 0.0
      %3709 = vmatprep.mubr.f32.mxu0 0.0
      %3710 = vmatmul.mubr.f32.gmra.mrb[0].mxu0 %v3639
      %v3711 = vpop.f32.mrb[0].mxu0
      %v3712 = vadd.f32 0.0, %v3711
      %v3713 = vpop.f32.mrb[0].mxu0
      %3714 = vdwg.mxu0
      %v3715 = vsel %vm2762, %v3630, -inf
      %3716 = vmax.xlane.f32.xlu0 %v3715
      %v3717 = vpop.xlane.xlu0 %3716
      %v3718 = vsel %vm2762, %v3712, -inf
      %3719 = vmax.xlane.f32.xlu0 %v3718
      %v3720 = vpop.xlane.xlu0 %3719
      %v3721 = vsub.f32 %v3630, %v3717
      %v3722 = vsub.f32 %v3712, %v3720
      %v3723 = vmul.f32 %v3721, 1.442695
      %v3724 = vpow.pop %v3723
      %v3725 = vmul.f32 %v3722, 1.442695
      %v3726 = vpow.pop %v3725
      %v3727 = vsel %vm2762, %v3724, 0.0
      %3728 = vadd.xlane.f32.xlu0 %v3727
      %v3729 = vpop.xlane.xlu0 %3728
      %v3730 = vsel %vm2762, %v3726, 0.0
      %3731 = vadd.xlane.f32.xlu0 %v3730
      %v3732 = vpop.xlane.xlu0 %3731
      %v3733 = vrcp.pop %v3729
      %v3734 = vrcp.pop %v3732
      %v3735 = vmul.f32 %v3724, %v3733
      %v3736 = vmul.f32 %v3726, %v3734
      %3739 = vrot.lane.b32.xlu0 %v3202, 120
      %v3740 = vpop.permute.xlu0 %3739
      %3741 = vrot.lane.b32.xlu0 %v3207, 120
      %v3742 = vpop.permute.xlu0 %3741
      %v3746 = vsel %vm2762, %v3735, 0
      %3748 = vmatprep.subr.mxu0 0.0
      %3749 = vmatpush1.msra.mxu0 %v3740
      %3750 = vmatprep.subr.mxu0 0.0
      %3751 = vmatpush1.msra.mxu0 %v3742
      %3752 = vmatprep.subr.mxu0 0.0
      %3753 = vmatpush1.msra.mxu0 0.0
      %3754 = vmatprep.subr.mxu0 0.0
      %3755 = vmatpush1.msra.mxu0 0.0
      %3756 = vmatprep.subr.mxu0 0.0
      %3757 = vmatpush1.msra.mxu0 0.0
      %3758 = vmatprep.subr.mxu0 0.0
      %3759 = vmatpush1.msra.mxu0 0.0
      %3760 = vmatprep.subr.mxu0 0.0
      %3761 = vmatpush1.msra.mxu0 0.0
      %3762 = vmatprep.subr.mxu0 0.0
      %3763 = vmatpush1.msra.mxu0 0.0
      %3764 = vmatprep.subr.mxu0 0.0
      %3765 = vmatpush1.msra.mxu0 0.0
      %3766 = vmatprep.subr.mxu0 0.0
      %3767 = vmatpush1.msra.mxu0 0.0
      %3768 = vmatprep.subr.mxu0 0.0
      %3769 = vmatpush1.msra.mxu0 0.0
      %3770 = vmatprep.subr.mxu0 0.0
      %3771 = vmatpush1.msra.mxu0 0.0
      %3772 = vmatprep.subr.mxu0 0.0
      %3773 = vmatpush1.msra.mxu0 0.0
      %3774 = vmatprep.subr.mxu0 0.0
      %3775 = vmatpush1.msra.mxu0 0.0
      %3776 = vmatprep.subr.mxu0 0.0
      %3777 = vmatpush1.msra.mxu0 0.0
      %3778 = vmatprep.subr.mxu0 0.0
      %3779 = vmatpush1.msra.mxu0 0.0
      %3780 = vmatprep.subr.mxu0 0.0
      %3781 = vmatpush1.msra.mxu0 0.0
      %3782 = vmatprep.subr.mxu0 0.0
      %3783 = vmatpush1.msra.mxu0 0.0
      %3784 = vmatprep.subr.mxu0 0.0
      %3785 = vmatpush1.msra.mxu0 0.0
      %3786 = vmatprep.subr.mxu0 0.0
      %3787 = vmatpush1.msra.mxu0 0.0
      %3788 = vmatprep.subr.mxu0 0.0
      %3789 = vmatpush1.msra.mxu0 0.0
      %3790 = vmatprep.subr.mxu0 0.0
      %3791 = vmatpush1.msra.mxu0 0.0
      %3792 = vmatprep.subr.mxu0 0.0
      %3793 = vmatpush1.msra.mxu0 0.0
      %3794 = vmatprep.subr.mxu0 0.0
      %3795 = vmatpush1.msra.mxu0 0.0
      %3796 = vmatprep.subr.mxu0 0.0
      %3797 = vmatpush1.msra.mxu0 0.0
      %3798 = vmatprep.subr.mxu0 0.0
      %3799 = vmatpush1.msra.mxu0 0.0
      %3800 = vmatprep.subr.mxu0 0.0
      %3801 = vmatpush1.msra.mxu0 0.0
      %3802 = vmatprep.subr.mxu0 0.0
      %3803 = vmatpush1.msra.mxu0 0.0
      %3804 = vmatprep.subr.mxu0 0.0
      %3805 = vmatpush1.msra.mxu0 0.0
      %3806 = vmatprep.subr.mxu0 0.0
      %3807 = vmatpush1.msra.mxu0 0.0
      %3808 = vmatprep.subr.mxu0 0.0
      %3809 = vmatpush1.msra.mxu0 0.0
      %3810 = vmatprep.subr.mxu0 0.0
      %3811 = vmatpush1.msra.mxu0 0.0
      %3812 = vmatprep.mubr.f32.mxu0 0.0
      %3813 = vmatmul.mubr.f32.gmra.mrb[0].mxu0 %v3746
      %v3814 = vpop.f32.mrb[0].mxu0
      %v3815 = vadd.f32 0.0, %v3814
      %v3816 = vpop.f32.mrb[0].mxu0
      %3817 = vdwg.mxu0
      %3820 = vrot.lane.b32.xlu0 %v3212, 120
      %v3821 = vpop.permute.xlu0 %3820
      %3822 = vrot.lane.b32.xlu0 %v3217, 120
      %v3823 = vpop.permute.xlu0 %3822
      %v3827 = vsel %vm2762, %v3736, 0
      %3829 = vmatprep.subr.mxu0 0.0
      %3830 = vmatpush1.msra.mxu0 %v3821
      %3831 = vmatprep.subr.mxu0 0.0
      %3832 = vmatpush1.msra.mxu0 %v3823
      %3833 = vmatprep.subr.mxu0 0.0
      %3834 = vmatpush1.msra.mxu0 0.0
      %3835 = vmatprep.subr.mxu0 0.0
      %3836 = vmatpush1.msra.mxu0 0.0
      %3837 = vmatprep.subr.mxu0 0.0
      %3838 = vmatpush1.msra.mxu0 0.0
      %3839 = vmatprep.subr.mxu0 0.0
      %3840 = vmatpush1.msra.mxu0 0.0
      %3841 = vmatprep.subr.mxu0 0.0
      %3842 = vmatpush1.msra.mxu0 0.0
      %3843 = vmatprep.subr.mxu0 0.0
      %3844 = vmatpush1.msra.mxu0 0.0
      %3845 = vmatprep.subr.mxu0 0.0
      %3846 = vmatpush1.msra.mxu0 0.0
      %3847 = vmatprep.subr.mxu0 0.0
      %3848 = vmatpush1.msra.mxu0 0.0
      %3849 = vmatprep.subr.mxu0 0.0
      %3850 = vmatpush1.msra.mxu0 0.0
      %3851 = vmatprep.subr.mxu0 0.0
      %3852 = vmatpush1.msra.mxu0 0.0
      %3853 = vmatprep.subr.mxu0 0.0
      %3854 = vmatpush1.msra.mxu0 0.0
      %3855 = vmatprep.subr.mxu0 0.0
      %3856 = vmatpush1.msra.mxu0 0.0
      %3857 = vmatprep.subr.mxu0 0.0
      %3858 = vmatpush1.msra.mxu0 0.0
      %3859 = vmatprep.subr.mxu0 0.0
      %3860 = vmatpush1.msra.mxu0 0.0
      %3861 = vmatprep.subr.mxu0 0.0
      %3862 = vmatpush1.msra.mxu0 0.0
      %3863 = vmatprep.subr.mxu0 0.0
      %3864 = vmatpush1.msra.mxu0 0.0
      %3865 = vmatprep.subr.mxu0 0.0
      %3866 = vmatpush1.msra.mxu0 0.0
      %3867 = vmatprep.subr.mxu0 0.0
      %3868 = vmatpush1.msra.mxu0 0.0
      %3869 = vmatprep.subr.mxu0 0.0
      %3870 = vmatpush1.msra.mxu0 0.0
      %3871 = vmatprep.subr.mxu0 0.0
      %3872 = vmatpush1.msra.mxu0 0.0
      %3873 = vmatprep.subr.mxu0 0.0
      %3874 = vmatpush1.msra.mxu0 0.0
      %3875 = vmatprep.subr.mxu0 0.0
      %3876 = vmatpush1.msra.mxu0 0.0
      %3877 = vmatprep.subr.mxu0 0.0
      %3878 = vmatpush1.msra.mxu0 0.0
      %3879 = vmatprep.subr.mxu0 0.0
      %3880 = vmatpush1.msra.mxu0 0.0
      %3881 = vmatprep.subr.mxu0 0.0
      %3882 = vmatpush1.msra.mxu0 0.0
      %3883 = vmatprep.subr.mxu0 0.0
      %3884 = vmatpush1.msra.mxu0 0.0
      %3885 = vmatprep.subr.mxu0 0.0
      %3886 = vmatpush1.msra.mxu0 0.0
      %3887 = vmatprep.subr.mxu0 0.0
      %3888 = vmatpush1.msra.mxu0 0.0
      %3889 = vmatprep.subr.mxu0 0.0
      %3890 = vmatpush1.msra.mxu0 0.0
      %3891 = vmatprep.subr.mxu0 0.0
      %3892 = vmatpush1.msra.mxu0 0.0
      %3893 = vmatprep.mubr.f32.mxu0 0.0
      %3894 = vmatmul.mubr.f32.gmra.mrb[0].mxu0 %v3827
      %v3895 = vpop.f32.mrb[0].mxu0
      %v3896 = vadd.f32 0.0, %v3895
      %v3897 = vpop.f32.mrb[0].mxu0
      %3898 = vdwg.mxu0
      %3899 = vrot.lane.b32.xlu0 %v2988, 112
      %v3900 = vpop.permute.xlu0 %3899
      %3901 = vrot.lane.b32.xlu0 %v3090, 112
      %v3902 = vpop.permute.xlu0 %3901
      %3903 = vrot.lane.b32.xlu0 %v3095, 112
      %v3904 = vpop.permute.xlu0 %3903
      %v3905 = vsel %vm1424, %v3900, 0
      %v3907 = vsel %vm1424, %v3902, 0
      %v3909 = vsel %vm1424, %v3904, 0
      %3911 = vmatprep.subr.mxu0 0.0
      %3912 = vmatpush1.xpose.msra.mxu0 %v3907
      %3913 = vmatprep.subr.mxu0 0.0
      %3914 = vmatpush1.xpose.msra.mxu0 %v3909
      %3915 = vmatprep.subr.mxu0 0.0
      %3916 = vmatpush1.xpose.msra.mxu0 0.0
      %3917 = vmatprep.subr.mxu0 0.0
      %3918 = vmatpush1.xpose.msra.mxu0 0.0
      %3919 = vmatprep.subr.mxu0 0.0
      %3920 = vmatpush1.xpose.msra.mxu0 0.0
      %3921 = vmatprep.subr.mxu0 0.0
      %3922 = vmatpush1.xpose.msra.mxu0 0.0
      %3923 = vmatprep.subr.mxu0 0.0
      %3924 = vmatpush1.xpose.msra.mxu0 0.0
      %3925 = vmatprep.subr.mxu0 0.0
      %3926 = vmatpush1.xpose.msra.mxu0 0.0
      %3927 = vmatprep.subr.mxu0 0.0
      %3928 = vmatpush1.xpose.msra.mxu0 0.0
      %3929 = vmatprep.subr.mxu0 0.0
      %3930 = vmatpush1.xpose.msra.mxu0 0.0
      %3931 = vmatprep.subr.mxu0 0.0
      %3932 = vmatpush1.xpose.msra.mxu0 0.0
      %3933 = vmatprep.subr.mxu0 0.0
      %3934 = vmatpush1.xpose.msra.mxu0 0.0
      %3935 = vmatprep.subr.mxu0 0.0
      %3936 = vmatpush1.xpose.msra.mxu0 0.0
      %3937 = vmatprep.subr.mxu0 0.0
      %3938 = vmatpush1.xpose.msra.mxu0 0.0
      %3939 = vmatprep.subr.mxu0 0.0
      %3940 = vmatpush1.xpose.msra.mxu0 0.0
      %3941 = vmatprep.subr.mxu0 0.0
      %3942 = vmatpush1.xpose.msra.mxu0 0.0
      %3943 = vmatprep.subr.mxu0 0.0
      %3944 = vmatpush1.xpose.msra.mxu0 0.0
      %3945 = vmatprep.subr.mxu0 0.0
      %3946 = vmatpush1.xpose.msra.mxu0 0.0
      %3947 = vmatprep.subr.mxu0 0.0
      %3948 = vmatpush1.xpose.msra.mxu0 0.0
      %3949 = vmatprep.subr.mxu0 0.0
      %3950 = vmatpush1.xpose.msra.mxu0 0.0
      %3951 = vmatprep.subr.mxu0 0.0
      %3952 = vmatpush1.xpose.msra.mxu0 0.0
      %3953 = vmatprep.subr.mxu0 0.0
      %3954 = vmatpush1.xpose.msra.mxu0 0.0
      %3955 = vmatprep.subr.mxu0 0.0
      %3956 = vmatpush1.xpose.msra.mxu0 0.0
      %3957 = vmatprep.subr.mxu0 0.0
      %3958 = vmatpush1.xpose.msra.mxu0 0.0
      %3959 = vmatprep.subr.mxu0 0.0
      %3960 = vmatpush1.xpose.msra.mxu0 0.0
      %3961 = vmatprep.subr.mxu0 0.0
      %3962 = vmatpush1.xpose.msra.mxu0 0.0
      %3963 = vmatprep.subr.mxu0 0.0
      %3964 = vmatpush1.xpose.msra.mxu0 0.0
      %3965 = vmatprep.subr.mxu0 0.0
      %3966 = vmatpush1.xpose.msra.mxu0 0.0
      %3967 = vmatprep.subr.mxu0 0.0
      %3968 = vmatpush1.xpose.msra.mxu0 0.0
      %3969 = vmatprep.subr.mxu0 0.0
      %3970 = vmatpush1.xpose.msra.mxu0 0.0
      %3971 = vmatprep.subr.mxu0 0.0
      %3972 = vmatpush1.xpose.msra.mxu0 0.0
      %3973 = vmatprep.subr.mxu0 0.0
      %3974 = vmatpush1.xpose.msra.mxu0 0.0
      %3975 = vmatprep.mubr.f32.mxu0 0.0
      %3976 = vmatmul.mubr.f32.gmra.mrb[0].mxu0 %v3905
      %v3977 = vpop.f32.mrb[0].mxu0
      %v3978 = vadd.f32 0.0, %v3977
      %v3979 = vpop.f32.mrb[0].mxu0
      %3980 = vdwg.mxu0
      %3981 = vrot.lane.b32.xlu0 %v2993, 112
      %v3982 = vpop.permute.xlu0 %3981
      %3983 = vrot.lane.b32.xlu0 %v3100, 112
      %v3984 = vpop.permute.xlu0 %3983
      %3985 = vrot.lane.b32.xlu0 %v3105, 112
      %v3986 = vpop.permute.xlu0 %3985
      %v3987 = vsel %vm1424, %v3982, 0
      %v3989 = vsel %vm1424, %v3984, 0
      %v3991 = vsel %vm1424, %v3986, 0
      %3993 = vmatprep.subr.mxu0 0.0
      %3994 = vmatpush1.xpose.msra.mxu0 %v3989
      %3995 = vmatprep.subr.mxu0 0.0
      %3996 = vmatpush1.xpose.msra.mxu0 %v3991
      %3997 = vmatprep.subr.mxu0 0.0
      %3998 = vmatpush1.xpose.msra.mxu0 0.0
      %3999 = vmatprep.subr.mxu0 0.0
      %4000 = vmatpush1.xpose.msra.mxu0 0.0
      %4001 = vmatprep.subr.mxu0 0.0
      %4002 = vmatpush1.xpose.msra.mxu0 0.0
      %4003 = vmatprep.subr.mxu0 0.0
      %4004 = vmatpush1.xpose.msra.mxu0 0.0
      %4005 = vmatprep.subr.mxu0 0.0
      %4006 = vmatpush1.xpose.msra.mxu0 0.0
      %4007 = vmatprep.subr.mxu0 0.0
      %4008 = vmatpush1.xpose.msra.mxu0 0.0
      %4009 = vmatprep.subr.mxu0 0.0
      %4010 = vmatpush1.xpose.msra.mxu0 0.0
      %4011 = vmatprep.subr.mxu0 0.0
      %4012 = vmatpush1.xpose.msra.mxu0 0.0
      %4013 = vmatprep.subr.mxu0 0.0
      %4014 = vmatpush1.xpose.msra.mxu0 0.0
      %4015 = vmatprep.subr.mxu0 0.0
      %4016 = vmatpush1.xpose.msra.mxu0 0.0
      %4017 = vmatprep.subr.mxu0 0.0
      %4018 = vmatpush1.xpose.msra.mxu0 0.0
      %4019 = vmatprep.subr.mxu0 0.0
      %4020 = vmatpush1.xpose.msra.mxu0 0.0
      %4021 = vmatprep.subr.mxu0 0.0
      %4022 = vmatpush1.xpose.msra.mxu0 0.0
      %4023 = vmatprep.subr.mxu0 0.0
      %4024 = vmatpush1.xpose.msra.mxu0 0.0
      %4025 = vmatprep.subr.mxu0 0.0
      %4026 = vmatpush1.xpose.msra.mxu0 0.0
      %4027 = vmatprep.subr.mxu0 0.0
      %4028 = vmatpush1.xpose.msra.mxu0 0.0
      %4029 = vmatprep.subr.mxu0 0.0
      %4030 = vmatpush1.xpose.msra.mxu0 0.0
      %4031 = vmatprep.subr.mxu0 0.0
      %4032 = vmatpush1.xpose.msra.mxu0 0.0
      %4033 = vmatprep.subr.mxu0 0.0
      %4034 = vmatpush1.xpose.msra.mxu0 0.0
      %4035 = vmatprep.subr.mxu0 0.0
      %4036 = vmatpush1.xpose.msra.mxu0 0.0
      %4037 = vmatprep.subr.mxu0 0.0
      %4038 = vmatpush1.xpose.msra.mxu0 0.0
      %4039 = vmatprep.subr.mxu0 0.0
      %4040 = vmatpush1.xpose.msra.mxu0 0.0
      %4041 = vmatprep.subr.mxu0 0.0
      %4042 = vmatpush1.xpose.msra.mxu0 0.0
      %4043 = vmatprep.subr.mxu0 0.0
      %4044 = vmatpush1.xpose.msra.mxu0 0.0
      %4045 = vmatprep.subr.mxu0 0.0
      %4046 = vmatpush1.xpose.msra.mxu0 0.0
      %4047 = vmatprep.subr.mxu0 0.0
      %4048 = vmatpush1.xpose.msra.mxu0 0.0
      %4049 = vmatprep.subr.mxu0 0.0
      %4050 = vmatpush1.xpose.msra.mxu0 0.0
      %4051 = vmatprep.subr.mxu0 0.0
      %4052 = vmatpush1.xpose.msra.mxu0 0.0
      %4053 = vmatprep.subr.mxu0 0.0
      %4054 = vmatpush1.xpose.msra.mxu0 0.0
      %4055 = vmatprep.subr.mxu0 0.0
      %4056 = vmatpush1.xpose.msra.mxu0 0.0
      %4057 = vmatprep.mubr.f32.mxu0 0.0
      %4058 = vmatmul.mubr.f32.gmra.mrb[0].mxu0 %v3987
      %v4059 = vpop.f32.mrb[0].mxu0
      %v4060 = vadd.f32 0.0, %v4059
      %v4061 = vpop.f32.mrb[0].mxu0
      %4062 = vdwg.mxu0
      %v4063 = vsel %vm2762, %v3978, -inf
      %4064 = vmax.xlane.f32.xlu0 %v4063
      %v4065 = vpop.xlane.xlu0 %4064
      %v4066 = vsel %vm2762, %v4060, -inf
      %4067 = vmax.xlane.f32.xlu0 %v4066
      %v4068 = vpop.xlane.xlu0 %4067
      %v4069 = vsub.f32 %v3978, %v4065
      %v4070 = vsub.f32 %v4060, %v4068
      %v4071 = vmul.f32 %v4069, 1.442695
      %v4072 = vpow.pop %v4071
      %v4073 = vmul.f32 %v4070, 1.442695
      %v4074 = vpow.pop %v4073
      %v4075 = vsel %vm2762, %v4072, 0.0
      %4076 = vadd.xlane.f32.xlu0 %v4075
      %v4077 = vpop.xlane.xlu0 %4076
      %v4078 = vsel %vm2762, %v4074, 0.0
      %4079 = vadd.xlane.f32.xlu0 %v4078
      %v4080 = vpop.xlane.xlu0 %4079
      %v4081 = vrcp.pop %v4077
      %v4082 = vrcp.pop %v4080
      %v4083 = vmul.f32 %v4072, %v4081
      %v4084 = vmul.f32 %v4074, %v4082
      %4085 = vrot.lane.b32.xlu0 %v3202, 112
      %v4086 = vpop.permute.xlu0 %4085
      %4087 = vrot.lane.b32.xlu0 %v3207, 112
      %v4088 = vpop.permute.xlu0 %4087
      %v4092 = vsel %vm2762, %v4083, 0
      %4094 = vmatprep.subr.mxu0 0.0
      %4095 = vmatpush1.msra.mxu0 %v4086
      %4096 = vmatprep.subr.mxu0 0.0
      %4097 = vmatpush1.msra.mxu0 %v4088
      %4098 = vmatprep.subr.mxu0 0.0
      %4099 = vmatpush1.msra.mxu0 0.0
      %4100 = vmatprep.subr.mxu0 0.0
      %4101 = vmatpush1.msra.mxu0 0.0
      %4102 = vmatprep.subr.mxu0 0.0
      %4103 = vmatpush1.msra.mxu0 0.0
      %4104 = vmatprep.subr.mxu0 0.0
      %4105 = vmatpush1.msra.mxu0 0.0
      %4106 = vmatprep.subr.mxu0 0.0
      %4107 = vmatpush1.msra.mxu0 0.0
      %4108 = vmatprep.subr.mxu0 0.0
      %4109 = vmatpush1.msra.mxu0 0.0
      %4110 = vmatprep.subr.mxu0 0.0
      %4111 = vmatpush1.msra.mxu0 0.0
      %4112 = vmatprep.subr.mxu0 0.0
      %4113 = vmatpush1.msra.mxu0 0.0
      %4114 = vmatprep.subr.mxu0 0.0
      %4115 = vmatpush1.msra.mxu0 0.0
      %4116 = vmatprep.subr.mxu0 0.0
      %4117 = vmatpush1.msra.mxu0 0.0
      %4118 = vmatprep.subr.mxu0 0.0
      %4119 = vmatpush1.msra.mxu0 0.0
      %4120 = vmatprep.subr.mxu0 0.0
      %4121 = vmatpush1.msra.mxu0 0.0
      %4122 = vmatprep.subr.mxu0 0.0
      %4123 = vmatpush1.msra.mxu0 0.0
      %4124 = vmatprep.subr.mxu0 0.0
      %4125 = vmatpush1.msra.mxu0 0.0
      %4126 = vmatprep.subr.mxu0 0.0
      %4127 = vmatpush1.msra.mxu0 0.0
      %4128 = vmatprep.subr.mxu0 0.0
      %4129 = vmatpush1.msra.mxu0 0.0
      %4130 = vmatprep.subr.mxu0 0.0
      %4131 = vmatpush1.msra.mxu0 0.0
      %4132 = vmatprep.subr.mxu0 0.0
      %4133 = vmatpush1.msra.mxu0 0.0
      %4134 = vmatprep.subr.mxu0 0.0
      %4135 = vmatpush1.msra.mxu0 0.0
      %4136 = vmatprep.subr.mxu0 0.0
      %4137 = vmatpush1.msra.mxu0 0.0
      %4138 = vmatprep.subr.mxu0 0.0
      %4139 = vmatpush1.msra.mxu0 0.0
      %4140 = vmatprep.subr.mxu0 0.0
      %4141 = vmatpush1.msra.mxu0 0.0
      %4142 = vmatprep.subr.mxu0 0.0
      %4143 = vmatpush1.msra.mxu0 0.0
      %4144 = vmatprep.subr.mxu0 0.0
      %4145 = vmatpush1.msra.mxu0 0.0
      %4146 = vmatprep.subr.mxu0 0.0
      %4147 = vmatpush1.msra.mxu0 0.0
      %4148 = vmatprep.subr.mxu0 0.0
      %4149 = vmatpush1.msra.mxu0 0.0
      %4150 = vmatprep.subr.mxu0 0.0
      %4151 = vmatpush1.msra.mxu0 0.0
      %4152 = vmatprep.subr.mxu0 0.0
      %4153 = vmatpush1.msra.mxu0 0.0
      %4154 = vmatprep.subr.mxu0 0.0
      %4155 = vmatpush1.msra.mxu0 0.0
      %4156 = vmatprep.subr.mxu0 0.0
      %4157 = vmatpush1.msra.mxu0 0.0
      %4158 = vmatprep.mubr.f32.mxu0 0.0
      %4159 = vmatmul.mubr.f32.gmra.mrb[0].mxu0 %v4092
      %v4160 = vpop.f32.mrb[0].mxu0
      %v4161 = vadd.f32 0.0, %v4160
      %v4162 = vpop.f32.mrb[0].mxu0
      %4163 = vdwg.mxu0
      %4164 = vrot.lane.b32.xlu0 %v3212, 112
      %v4165 = vpop.permute.xlu0 %4164
      %4166 = vrot.lane.b32.xlu0 %v3217, 112
      %v4167 = vpop.permute.xlu0 %4166
      %v4171 = vsel %vm2762, %v4084, 0
      %4173 = vmatprep.subr.mxu0 0.0
      %4174 = vmatpush1.msra.mxu0 %v4165
      %4175 = vmatprep.subr.mxu0 0.0
      %4176 = vmatpush1.msra.mxu0 %v4167
      %4177 = vmatprep.subr.mxu0 0.0
      %4178 = vmatpush1.msra.mxu0 0.0
      %4179 = vmatprep.subr.mxu0 0.0
      %4180 = vmatpush1.msra.mxu0 0.0
      %4181 = vmatprep.subr.mxu0 0.0
      %4182 = vmatpush1.msra.mxu0 0.0
      %4183 = vmatprep.subr.mxu0 0.0
      %4184 = vmatpush1.msra.mxu0 0.0
      %4185 = vmatprep.subr.mxu0 0.0
      %4186 = vmatpush1.msra.mxu0 0.0
      %4187 = vmatprep.subr.mxu0 0.0
      %4188 = vmatpush1.msra.mxu0 0.0
      %4189 = vmatprep.subr.mxu0 0.0
      %4190 = vmatpush1.msra.mxu0 0.0
      %4191 = vmatprep.subr.mxu0 0.0
      %4192 = vmatpush1.msra.mxu0 0.0
      %4193 = vmatprep.subr.mxu0 0.0
      %4194 = vmatpush1.msra.mxu0 0.0
      %4195 = vmatprep.subr.mxu0 0.0
      %4196 = vmatpush1.msra.mxu0 0.0
      %4197 = vmatprep.subr.mxu0 0.0
      %4198 = vmatpush1.msra.mxu0 0.0
      %4199 = vmatprep.subr.mxu0 0.0
      %4200 = vmatpush1.msra.mxu0 0.0
      %4201 = vmatprep.subr.mxu0 0.0
      %4202 = vmatpush1.msra.mxu0 0.0
      %4203 = vmatprep.subr.mxu0 0.0
      %4204 = vmatpush1.msra.mxu0 0.0
      %4205 = vmatprep.subr.mxu0 0.0
      %4206 = vmatpush1.msra.mxu0 0.0
      %4207 = vmatprep.subr.mxu0 0.0
      %4208 = vmatpush1.msra.mxu0 0.0
      %4209 = vmatprep.subr.mxu0 0.0
      %4210 = vmatpush1.msra.mxu0 0.0
      %4211 = vmatprep.subr.mxu0 0.0
      %4212 = vmatpush1.msra.mxu0 0.0
      %4213 = vmatprep.subr.mxu0 0.0
      %4214 = vmatpush1.msra.mxu0 0.0
      %4215 = vmatprep.subr.mxu0 0.0
      %4216 = vmatpush1.msra.mxu0 0.0
      %4217 = vmatprep.subr.mxu0 0.0
      %4218 = vmatpush1.msra.mxu0 0.0
      %4219 = vmatprep.subr.mxu0 0.0
      %4220 = vmatpush1.msra.mxu0 0.0
      %4221 = vmatprep.subr.mxu0 0.0
      %4222 = vmatpush1.msra.mxu0 0.0
      %4223 = vmatprep.subr.mxu0 0.0
      %4224 = vmatpush1.msra.mxu0 0.0
      %4225 = vmatprep.subr.mxu0 0.0
      %4226 = vmatpush1.msra.mxu0 0.0
      %4227 = vmatprep.subr.mxu0 0.0
      %4228 = vmatpush1.msra.mxu0 0.0
      %4229 = vmatprep.subr.mxu0 0.0
      %4230 = vmatpush1.msra.mxu0 0.0
      %4231 = vmatprep.subr.mxu0 0.0
      %4232 = vmatpush1.msra.mxu0 0.0
      %4233 = vmatprep.subr.mxu0 0.0
      %4234 = vmatpush1.msra.mxu0 0.0
      %4235 = vmatprep.subr.mxu0 0.0
      %4236 = vmatpush1.msra.mxu0 0.0
      %4237 = vmatprep.mubr.f32.mxu0 0.0
      %4238 = vmatmul.mubr.f32.gmra.mrb[0].mxu0 %v4171
      %v4239 = vpop.f32.mrb[0].mxu0
      %v4240 = vadd.f32 0.0, %v4239
      %v4241 = vpop.f32.mrb[0].mxu0
      %4242 = vdwg.mxu0
      %4243 = vrot.lane.b32.xlu0 %v2988, 104
      %v4244 = vpop.permute.xlu0 %4243
      %4245 = vrot.lane.b32.xlu0 %v3090, 104
      %v4246 = vpop.permute.xlu0 %4245
      %4247 = vrot.lane.b32.xlu0 %v3095, 104
      %v4248 = vpop.permute.xlu0 %4247
      %v4249 = vsel %vm1424, %v4244, 0
      %v4251 = vsel %vm1424, %v4246, 0
      %v4253 = vsel %vm1424, %v4248, 0
      %4255 = vmatprep.subr.mxu0 0.0
      %4256 = vmatpush1.xpose.msra.mxu0 %v4251
      %4257 = vmatprep.subr.mxu0 0.0
      %4258 = vmatpush1.xpose.msra.mxu0 %v4253
      %4259 = vmatprep.subr.mxu0 0.0
      %4260 = vmatpush1.xpose.msra.mxu0 0.0
      %4261 = vmatprep.subr.mxu0 0.0
      %4262 = vmatpush1.xpose.msra.mxu0 0.0
      %4263 = vmatprep.subr.mxu0 0.0
      %4264 = vmatpush1.xpose.msra.mxu0 0.0
      %4265 = vmatprep.subr.mxu0 0.0
      %4266 = vmatpush1.xpose.msra.mxu0 0.0
      %4267 = vmatprep.subr.mxu0 0.0
      %4268 = vmatpush1.xpose.msra.mxu0 0.0
      %4269 = vmatprep.subr.mxu0 0.0
      %4270 = vmatpush1.xpose.msra.mxu0 0.0
      %4271 = vmatprep.subr.mxu0 0.0
      %4272 = vmatpush1.xpose.msra.mxu0 0.0
      %4273 = vmatprep.subr.mxu0 0.0
      %4274 = vmatpush1.xpose.msra.mxu0 0.0
      %4275 = vmatprep.subr.mxu0 0.0
      %4276 = vmatpush1.xpose.msra.mxu0 0.0
      %4277 = vmatprep.subr.mxu0 0.0
      %4278 = vmatpush1.xpose.msra.mxu0 0.0
      %4279 = vmatprep.subr.mxu0 0.0
      %4280 = vmatpush1.xpose.msra.mxu0 0.0
      %4281 = vmatprep.subr.mxu0 0.0
      %4282 = vmatpush1.xpose.msra.mxu0 0.0
      %4283 = vmatprep.subr.mxu0 0.0
      %4284 = vmatpush1.xpose.msra.mxu0 0.0
      %4285 = vmatprep.subr.mxu0 0.0
      %4286 = vmatpush1.xpose.msra.mxu0 0.0
      %4287 = vmatprep.subr.mxu0 0.0
      %4288 = vmatpush1.xpose.msra.mxu0 0.0
      %4289 = vmatprep.subr.mxu0 0.0
      %4290 = vmatpush1.xpose.msra.mxu0 0.0
      %4291 = vmatprep.subr.mxu0 0.0
      %4292 = vmatpush1.xpose.msra.mxu0 0.0
      %4293 = vmatprep.subr.mxu0 0.0
      %4294 = vmatpush1.xpose.msra.mxu0 0.0
      %4295 = vmatprep.subr.mxu0 0.0
      %4296 = vmatpush1.xpose.msra.mxu0 0.0
      %4297 = vmatprep.subr.mxu0 0.0
      %4298 = vmatpush1.xpose.msra.mxu0 0.0
      %4299 = vmatprep.subr.mxu0 0.0
      %4300 = vmatpush1.xpose.msra.mxu0 0.0
      %4301 = vmatprep.subr.mxu0 0.0
      %4302 = vmatpush1.xpose.msra.mxu0 0.0
      %4303 = vmatprep.subr.mxu0 0.0
      %4304 = vmatpush1.xpose.msra.mxu0 0.0
      %4305 = vmatprep.subr.mxu0 0.0
      %4306 = vmatpush1.xpose.msra.mxu0 0.0
      %4307 = vmatprep.subr.mxu0 0.0
      %4308 = vmatpush1.xpose.msra.mxu0 0.0
      %4309 = vmatprep.subr.mxu0 0.0
      %4310 = vmatpush1.xpose.msra.mxu0 0.0
      %4311 = vmatprep.subr.mxu0 0.0
      %4312 = vmatpush1.xpose.msra.mxu0 0.0
      %4313 = vmatprep.subr.mxu0 0.0
      %4314 = vmatpush1.xpose.msra.mxu0 0.0
      %4315 = vmatprep.subr.mxu0 0.0
      %4316 = vmatpush1.xpose.msra.mxu0 0.0
      %4317 = vmatprep.subr.mxu0 0.0
      %4318 = vmatpush1.xpose.msra.mxu0 0.0
      %4319 = vmatprep.mubr.f32.mxu0 0.0
      %4320 = vmatmul.mubr.f32.gmra.mrb[0].mxu0 %v4249
      %v4321 = vpop.f32.mrb[0].mxu0
      %v4322 = vadd.f32 0.0, %v4321
      %v4323 = vpop.f32.mrb[0].mxu0
      %4324 = vdwg.mxu0
      %4325 = vrot.lane.b32.xlu0 %v2993, 104
      %v4326 = vpop.permute.xlu0 %4325
      %4327 = vrot.lane.b32.xlu0 %v3100, 104
      %v4328 = vpop.permute.xlu0 %4327
      %4329 = vrot.lane.b32.xlu0 %v3105, 104
      %v4330 = vpop.permute.xlu0 %4329
      %v4331 = vsel %vm1424, %v4326, 0
      %v4333 = vsel %vm1424, %v4328, 0
      %v4335 = vsel %vm1424, %v4330, 0
      %4337 = vmatprep.subr.mxu0 0.0
      %4338 = vmatpush1.xpose.msra.mxu0 %v4333
      %4339 = vmatprep.subr.mxu0 0.0
      %4340 = vmatpush1.xpose.msra.mxu0 %v4335
      %4341 = vmatprep.subr.mxu0 0.0
      %4342 = vmatpush1.xpose.msra.mxu0 0.0
      %4343 = vmatprep.subr.mxu0 0.0
      %4344 = vmatpush1.xpose.msra.mxu0 0.0
      %4345 = vmatprep.subr.mxu0 0.0
      %4346 = vmatpush1.xpose.msra.mxu0 0.0
      %4347 = vmatprep.subr.mxu0 0.0
      %4348 = vmatpush1.xpose.msra.mxu0 0.0
      %4349 = vmatprep.subr.mxu0 0.0
      %4350 = vmatpush1.xpose.msra.mxu0 0.0
      %4351 = vmatprep.subr.mxu0 0.0
      %4352 = vmatpush1.xpose.msra.mxu0 0.0
      %4353 = vmatprep.subr.mxu0 0.0
      %4354 = vmatpush1.xpose.msra.mxu0 0.0
      %4355 = vmatprep.subr.mxu0 0.0
      %4356 = vmatpush1.xpose.msra.mxu0 0.0
      %4357 = vmatprep.subr.mxu0 0.0
      %4358 = vmatpush1.xpose.msra.mxu0 0.0
      %4359 = vmatprep.subr.mxu0 0.0
      %4360 = vmatpush1.xpose.msra.mxu0 0.0
      %4361 = vmatprep.subr.mxu0 0.0
      %4362 = vmatpush1.xpose.msra.mxu0 0.0
      %4363 = vmatprep.subr.mxu0 0.0
      %4364 = vmatpush1.xpose.msra.mxu0 0.0
      %4365 = vmatprep.subr.mxu0 0.0
      %4366 = vmatpush1.xpose.msra.mxu0 0.0
      %4367 = vmatprep.subr.mxu0 0.0
      %4368 = vmatpush1.xpose.msra.mxu0 0.0
      %4369 = vmatprep.subr.mxu0 0.0
      %4370 = vmatpush1.xpose.msra.mxu0 0.0
      %4371 = vmatprep.subr.mxu0 0.0
      %4372 = vmatpush1.xpose.msra.mxu0 0.0
      %4373 = vmatprep.subr.mxu0 0.0
      %4374 = vmatpush1.xpose.msra.mxu0 0.0
      %4375 = vmatprep.subr.mxu0 0.0
      %4376 = vmatpush1.xpose.msra.mxu0 0.0
      %4377 = vmatprep.subr.mxu0 0.0
      %4378 = vmatpush1.xpose.msra.mxu0 0.0
      %4379 = vmatprep.subr.mxu0 0.0
      %4380 = vmatpush1.xpose.msra.mxu0 0.0
      %4381 = vmatprep.subr.mxu0 0.0
      %4382 = vmatpush1.xpose.msra.mxu0 0.0
      %4383 = vmatprep.subr.mxu0 0.0
      %4384 = vmatpush1.xpose.msra.mxu0 0.0
      %4385 = vmatprep.subr.mxu0 0.0
      %4386 = vmatpush1.xpose.msra.mxu0 0.0
      %4387 = vmatprep.subr.mxu0 0.0
      %4388 = vmatpush1.xpose.msra.mxu0 0.0
      %4389 = vmatprep.subr.mxu0 0.0
      %4390 = vmatpush1.xpose.msra.mxu0 0.0
      %4391 = vmatprep.subr.mxu0 0.0
      %4392 = vmatpush1.xpose.msra.mxu0 0.0
      %4393 = vmatprep.subr.mxu0 0.0
      %4394 = vmatpush1.xpose.msra.mxu0 0.0
      %4395 = vmatprep.subr.mxu0 0.0
      %4396 = vmatpush1.xpose.msra.mxu0 0.0
      %4397 = vmatprep.subr.mxu0 0.0
      %4398 = vmatpush1.xpose.msra.mxu0 0.0
      %4399 = vmatprep.subr.mxu0 0.0
      %4400 = vmatpush1.xpose.msra.mxu0 0.0
      %4401 = vmatprep.mubr.f32.mxu0 0.0
      %4402 = vmatmul.mubr.f32.gmra.mrb[0].mxu0 %v4331
      %v4403 = vpop.f32.mrb[0].mxu0
      %v4404 = vadd.f32 0.0, %v4403
      %v4405 = vpop.f32.mrb[0].mxu0
      %4406 = vdwg.mxu0
      %v4407 = vsel %vm2762, %v4322, -inf
      %4408 = vmax.xlane.f32.xlu0 %v4407
      %v4409 = vpop.xlane.xlu0 %4408
      %v4410 = vsel %vm2762, %v4404, -inf
      %4411 = vmax.xlane.f32.xlu0 %v4410
      %v4412 = vpop.xlane.xlu0 %4411
      %v4413 = vsub.f32 %v4322, %v4409
      %v4414 = vsub.f32 %v4404, %v4412
      %v4415 = vmul.f32 %v4413, 1.442695
      %v4416 = vpow.pop %v4415
      %v4417 = vmul.f32 %v4414, 1.442695
      %v4418 = vpow.pop %v4417
      %v4419 = vsel %vm2762, %v4416, 0.0
      %4420 = vadd.xlane.f32.xlu0 %v4419
      %v4421 = vpop.xlane.xlu0 %4420
      %v4422 = vsel %vm2762, %v4418, 0.0
      %4423 = vadd.xlane.f32.xlu0 %v4422
      %v4424 = vpop.xlane.xlu0 %4423
      %v4425 = vrcp.pop %v4421
      %v4426 = vrcp.pop %v4424
      %v4427 = vmul.f32 %v4416, %v4425
      %v4428 = vmul.f32 %v4418, %v4426
      %4429 = vrot.lane.b32.xlu0 %v3202, 104
      %v4430 = vpop.permute.xlu0 %4429
      %4431 = vrot.lane.b32.xlu0 %v3207, 104
      %v4432 = vpop.permute.xlu0 %4431
      %v4436 = vsel %vm2762, %v4427, 0
      %4438 = vmatprep.subr.mxu0 0.0
      %4439 = vmatpush1.msra.mxu0 %v4430
      %4440 = vmatprep.subr.mxu0 0.0
      %4441 = vmatpush1.msra.mxu0 %v4432
      %4442 = vmatprep.subr.mxu0 0.0
      %4443 = vmatpush1.msra.mxu0 0.0
      %4444 = vmatprep.subr.mxu0 0.0
      %4445 = vmatpush1.msra.mxu0 0.0
      %4446 = vmatprep.subr.mxu0 0.0
      %4447 = vmatpush1.msra.mxu0 0.0
      %4448 = vmatprep.subr.mxu0 0.0
      %4449 = vmatpush1.msra.mxu0 0.0
      %4450 = vmatprep.subr.mxu0 0.0
      %4451 = vmatpush1.msra.mxu0 0.0
      %4452 = vmatprep.subr.mxu0 0.0
      %4453 = vmatpush1.msra.mxu0 0.0
      %4454 = vmatprep.subr.mxu0 0.0
      %4455 = vmatpush1.msra.mxu0 0.0
      %4456 = vmatprep.subr.mxu0 0.0
      %4457 = vmatpush1.msra.mxu0 0.0
      %4458 = vmatprep.subr.mxu0 0.0
      %4459 = vmatpush1.msra.mxu0 0.0
      %4460 = vmatprep.subr.mxu0 0.0
      %4461 = vmatpush1.msra.mxu0 0.0
      %4462 = vmatprep.subr.mxu0 0.0
      %4463 = vmatpush1.msra.mxu0 0.0
      %4464 = vmatprep.subr.mxu0 0.0
      %4465 = vmatpush1.msra.mxu0 0.0
      %4466 = vmatprep.subr.mxu0 0.0
      %4467 = vmatpush1.msra.mxu0 0.0
      %4468 = vmatprep.subr.mxu0 0.0
      %4469 = vmatpush1.msra.mxu0 0.0
      %4470 = vmatprep.subr.mxu0 0.0
      %4471 = vmatpush1.msra.mxu0 0.0
      %4472 = vmatprep.subr.mxu0 0.0
      %4473 = vmatpush1.msra.mxu0 0.0
      %4474 = vmatprep.subr.mxu0 0.0
      %4475 = vmatpush1.msra.mxu0 0.0
      %4476 = vmatprep.subr.mxu0 0.0
      %4477 = vmatpush1.msra.mxu0 0.0
      %4478 = vmatprep.subr.mxu0 0.0
      %4479 = vmatpush1.msra.mxu0 0.0
      %4480 = vmatprep.subr.mxu0 0.0
      %4481 = vmatpush1.msra.mxu0 0.0
      %4482 = vmatprep.subr.mxu0 0.0
      %4483 = vmatpush1.msra.mxu0 0.0
      %4484 = vmatprep.subr.mxu0 0.0
      %4485 = vmatpush1.msra.mxu0 0.0
      %4486 = vmatprep.subr.mxu0 0.0
      %4487 = vmatpush1.msra.mxu0 0.0
      %4488 = vmatprep.subr.mxu0 0.0
      %4489 = vmatpush1.msra.mxu0 0.0
      %4490 = vmatprep.subr.mxu0 0.0
      %4491 = vmatpush1.msra.mxu0 0.0
      %4492 = vmatprep.subr.mxu0 0.0
      %4493 = vmatpush1.msra.mxu0 0.0
      %4494 = vmatprep.subr.mxu0 0.0
      %4495 = vmatpush1.msra.mxu0 0.0
      %4496 = vmatprep.subr.mxu0 0.0
      %4497 = vmatpush1.msra.mxu0 0.0
      %4498 = vmatprep.subr.mxu0 0.0
      %4499 = vmatpush1.msra.mxu0 0.0
      %4500 = vmatprep.subr.mxu0 0.0
      %4501 = vmatpush1.msra.mxu0 0.0
      %4502 = vmatprep.mubr.f32.mxu0 0.0
      %4503 = vmatmul.mubr.f32.gmra.mrb[0].mxu0 %v4436
      %v4504 = vpop.f32.mrb[0].mxu0
      %v4505 = vadd.f32 0.0, %v4504
      %v4506 = vpop.f32.mrb[0].mxu0
      %4507 = vdwg.mxu0
      %4508 = vrot.lane.b32.xlu0 %v3212, 104
      %v4509 = vpop.permute.xlu0 %4508
      %4510 = vrot.lane.b32.xlu0 %v3217, 104
      %v4511 = vpop.permute.xlu0 %4510
      %v4515 = vsel %vm2762, %v4428, 0
      %4517 = vmatprep.subr.mxu0 0.0
      %4518 = vmatpush1.msra.mxu0 %v4509
      %4519 = vmatprep.subr.mxu0 0.0
      %4520 = vmatpush1.msra.mxu0 %v4511
      %4521 = vmatprep.subr.mxu0 0.0
      %4522 = vmatpush1.msra.mxu0 0.0
      %4523 = vmatprep.subr.mxu0 0.0
      %4524 = vmatpush1.msra.mxu0 0.0
      %4525 = vmatprep.subr.mxu0 0.0
      %4526 = vmatpush1.msra.mxu0 0.0
      %4527 = vmatprep.subr.mxu0 0.0
      %4528 = vmatpush1.msra.mxu0 0.0
      %4529 = vmatprep.subr.mxu0 0.0
      %4530 = vmatpush1.msra.mxu0 0.0
      %4531 = vmatprep.subr.mxu0 0.0
      %4532 = vmatpush1.msra.mxu0 0.0
      %4533 = vmatprep.subr.mxu0 0.0
      %4534 = vmatpush1.msra.mxu0 0.0
      %4535 = vmatprep.subr.mxu0 0.0
      %4536 = vmatpush1.msra.mxu0 0.0
      %4537 = vmatprep.subr.mxu0 0.0
      %4538 = vmatpush1.msra.mxu0 0.0
      %4539 = vmatprep.subr.mxu0 0.0
      %4540 = vmatpush1.msra.mxu0 0.0
      %4541 = vmatprep.subr.mxu0 0.0
      %4542 = vmatpush1.msra.mxu0 0.0
      %4543 = vmatprep.subr.mxu0 0.0
      %4544 = vmatpush1.msra.mxu0 0.0
      %4545 = vmatprep.subr.mxu0 0.0
      %4546 = vmatpush1.msra.mxu0 0.0
      %4547 = vmatprep.subr.mxu0 0.0
      %4548 = vmatpush1.msra.mxu0 0.0
      %4549 = vmatprep.subr.mxu0 0.0
      %4550 = vmatpush1.msra.mxu0 0.0
      %4551 = vmatprep.subr.mxu0 0.0
      %4552 = vmatpush1.msra.mxu0 0.0
      %4553 = vmatprep.subr.mxu0 0.0
      %4554 = vmatpush1.msra.mxu0 0.0
      %4555 = vmatprep.subr.mxu0 0.0
      %4556 = vmatpush1.msra.mxu0 0.0
      %4557 = vmatprep.subr.mxu0 0.0
      %4558 = vmatpush1.msra.mxu0 0.0
      %4559 = vmatprep.subr.mxu0 0.0
      %4560 = vmatpush1.msra.mxu0 0.0
      %4561 = vmatprep.subr.mxu0 0.0
      %4562 = vmatpush1.msra.mxu0 0.0
      %4563 = vmatprep.subr.mxu0 0.0
      %4564 = vmatpush1.msra.mxu0 0.0
      %4565 = vmatprep.subr.mxu0 0.0
      %4566 = vmatpush1.msra.mxu0 0.0
      %4567 = vmatprep.subr.mxu0 0.0
      %4568 = vmatpush1.msra.mxu0 0.0
      %4569 = vmatprep.subr.mxu0 0.0
      %4570 = vmatpush1.msra.mxu0 0.0
      %4571 = vmatprep.subr.mxu0 0.0
      %4572 = vmatpush1.msra.mxu0 0.0
      %4573 = vmatprep.subr.mxu0 0.0
      %4574 = vmatpush1.msra.mxu0 0.0
      %4575 = vmatprep.subr.mxu0 0.0
      %4576 = vmatpush1.msra.mxu0 0.0
      %4577 = vmatprep.subr.mxu0 0.0
      %4578 = vmatpush1.msra.mxu0 0.0
      %4579 = vmatprep.subr.mxu0 0.0
      %4580 = vmatpush1.msra.mxu0 0.0
      %4581 = vmatprep.mubr.f32.mxu0 0.0
      %4582 = vmatmul.mubr.f32.gmra.mrb[0].mxu0 %v4515
      %v4583 = vpop.f32.mrb[0].mxu0
      %v4584 = vadd.f32 0.0, %v4583
      %v4585 = vpop.f32.mrb[0].mxu0
      %4586 = vdwg.mxu0
      %4589 = vrot.lane.b32.xlu0 %v3815, 8
      %v4590 = vpop.permute.xlu0 %4589
      %4591 = vrot.lane.b32.xlu0 %v3896, 8
      %v4592 = vpop.permute.xlu0 %4591
      %4597 = vrot.lane.b32.xlu0 %v4161, 16
      %v4598 = vpop.permute.xlu0 %4597
      %4599 = vrot.lane.b32.xlu0 %v4240, 16
      %v4600 = vpop.permute.xlu0 %4599
      %4605 = vrot.lane.b32.xlu0 %v4505, 24
      %v4606 = vpop.permute.xlu0 %4605
      %4607 = vrot.lane.b32.xlu0 %v4584, 24
      %v4608 = vpop.permute.xlu0 %4607
      %v4611 = vsel %vm1424, %v3475, %v4590
      %v4612 = vsel %vm1424, %v3548, %v4592
      %v4613 = vsel %vm2762, %v4611, %v4598
      %v4614 = vsel %vm2762, %v4612, %v4600
      %v4615 = vsel %vm2765, %v4613, %v4606
      %v4616 = vsel %vm2765, %v4614, %v4608
      %v4618 = vlaneseq
      %v4619 = vshrl.u32 %v4618, 7
      %v4620 = vsub.s32 0, %v4619
      %v4621 = vrot.slane %v3224, %v4620
      %v4624 = vsel %vm1242, %v4615, 0
      %v4627 = vsel %vm1242, %v4616, 0
      %4629 = vmatprep.subr.mxu0 0.0
      %4630 = vmatpush1.msra.mxu0 %v3220
      %4631 = vmatprep.subr.mxu0 0.0
      %4632 = vmatpush1.msra.mxu0 %v3221
      %4633 = vmatprep.subr.mxu0 0.0
      %4634 = vmatpush1.msra.mxu0 %v3222
      %4635 = vmatprep.subr.mxu0 0.0
      %4636 = vmatpush1.msra.mxu0 %v3223
      %4637 = vmatprep.subr.mxu0 0.0
      %4638 = vmatpush1.msra.mxu0 0.0
      %4639 = vmatprep.subr.mxu0 0.0
      %4640 = vmatpush1.msra.mxu0 0.0
      %4641 = vmatprep.subr.mxu0 0.0
      %4642 = vmatpush1.msra.mxu0 0.0
      %4643 = vmatprep.subr.mxu0 0.0
      %4644 = vmatpush1.msra.mxu0 0.0
      %4645 = vmatprep.subr.mxu0 0.0
      %4646 = vmatpush1.msra.mxu0 0.0
      %4647 = vmatprep.subr.mxu0 0.0
      %4648 = vmatpush1.msra.mxu0 0.0
      %4649 = vmatprep.subr.mxu0 0.0
      %4650 = vmatpush1.msra.mxu0 0.0
      %4651 = vmatprep.subr.mxu0 0.0
      %4652 = vmatpush1.msra.mxu0 0.0
      %4653 = vmatprep.subr.mxu0 0.0
      %4654 = vmatpush1.msra.mxu0 0.0
      %4655 = vmatprep.subr.mxu0 0.0
      %4656 = vmatpush1.msra.mxu0 0.0
      %4657 = vmatprep.subr.mxu0 0.0
      %4658 = vmatpush1.msra.mxu0 0.0
      %4659 = vmatprep.subr.mxu0 0.0
      %4660 = vmatpush1.msra.mxu0 0.0
      %4661 = vmatprep.subr.mxu0 0.0
      %4662 = vmatpush1.msra.mxu0 0.0
      %4663 = vmatprep.subr.mxu0 0.0
      %4664 = vmatpush1.msra.mxu0 0.0
      %4665 = vmatprep.subr.mxu0 0.0
      %4666 = vmatpush1.msra.mxu0 0.0
      %4667 = vmatprep.subr.mxu0 0.0
      %4668 = vmatpush1.msra.mxu0 0.0
      %4669 = vmatprep.subr.mxu0 0.0
      %4670 = vmatpush1.msra.mxu0 0.0
      %4671 = vmatprep.subr.mxu0 0.0
      %4672 = vmatpush1.msra.mxu0 0.0
      %4673 = vmatprep.subr.mxu0 0.0
      %4674 = vmatpush1.msra.mxu0 0.0
      %4675 = vmatprep.subr.mxu0 0.0
      %4676 = vmatpush1.msra.mxu0 0.0
      %4677 = vmatprep.subr.mxu0 0.0
      %4678 = vmatpush1.msra.mxu0 0.0
      %4679 = vmatprep.subr.mxu0 0.0
      %4680 = vmatpush1.msra.mxu0 0.0
      %4681 = vmatprep.subr.mxu0 0.0
      %4682 = vmatpush1.msra.mxu0 0.0
      %4683 = vmatprep.subr.mxu0 0.0
      %4684 = vmatpush1.msra.mxu0 0.0
      %4685 = vmatprep.subr.mxu0 0.0
      %4686 = vmatpush1.msra.mxu0 0.0
      %4687 = vmatprep.subr.mxu0 0.0
      %4688 = vmatpush1.msra.mxu0 0.0
      %4689 = vmatprep.subr.mxu0 0.0
      %4690 = vmatpush1.msra.mxu0 0.0
      %4691 = vmatprep.subr.mxu0 0.0
      %4692 = vmatpush1.msra.mxu0 0.0
      %4693 = vmatprep.mubr.f32.mxu0 0.0
      %4694 = vmatmul.mubr.f32.gmra.mrb[0].mxu0 %v4624
      %v4695 = vpop.f32.mrb[0].mxu0
      %v4696 = vadd.f32 %v4621, %v4695
      %v4697 = vpop.f32.mrb[0].mxu0
      %4698 = vmatprep.mubr.f32.mxu0 0.0
      %4699 = vmatmul.mubr.f32.gmra.mrb[0].mxu0 %v4627
      %v4700 = vpop.f32.mrb[0].mxu0
      %v4701 = vadd.f32 %v4621, %v4700
      %v4702 = vpop.f32.mrb[0].mxu0
      %4703 = vdwg.mxu0
      %v4704 = vadd.f32 %v2900, %v4696
      %v4705 = vadd.f32 %v2901, %v4701
      %v4706 = vld [vmem:[%s1201] sm:$0x1]
      %v4707 = vld [vmem:[%s1204] sm:$0x1]
      %v4708 = vsel %vm1242, %v4704, 0.0
      %4709 = vadd.xlane.f32.xlu0 %v4708
      %v4710 = vpop.xlane.xlu0 %4709
      %v4711 = vsel %vm1242, %v4705, 0.0
      %4712 = vadd.xlane.f32.xlu0 %v4711
      %v4713 = vpop.xlane.xlu0 %4712
      %v4714 = vmul.f32 %v4710, %v2865
      %v4715 = vmul.f32 %v4713, %v2865
      %v4716 = vsub.f32 %v4704, %v4714
      %v4717 = vsub.f32 %v4705, %v4715
      %v4718 = vmul.f32 %v4716, %v4716
      %v4719 = vmul.f32 %v4717, %v4717
      %v4720 = vsel %vm1242, %v4718, 0.0
      %4721 = vadd.xlane.f32.xlu0 %v4720
      %v4722 = vpop.xlane.xlu0 %4721
      %v4723 = vsel %vm1242, %v4719, 0.0
      %4724 = vadd.xlane.f32.xlu0 %v4723
      %v4725 = vpop.xlane.xlu0 %4724
      %v4726 = vmul.f32 %v4722, %v2865
      %v4727 = vmul.f32 %v4725, %v2865
      %v4728 = vadd.f32 %v4726, 1e-05
      %v4729 = vadd.f32 %v4727, 1e-05
      %v4730 = vrsqrt.pop %v4728
      %v4731 = vrsqrt.pop %v4729
      %v4732 = vmul.f32 %v4716, %v4730
      %v4733 = vmul.f32 %v4717, %v4731
      %v4735 = vlaneseq
      %v4736 = vshrl.u32 %v4735, 7
      %v4737 = vsub.s32 0, %v4736
      %v4738 = vrot.slane %v4706, %v4737
      %v4740 = vmul.f32 %v4732, %v4738
      %v4741 = vmul.f32 %v4733, %v4738
      %v4743 = vlaneseq
      %v4744 = vshrl.u32 %v4743, 7
      %v4745 = vsub.s32 0, %v4744
      %v4746 = vrot.slane %v4707, %v4745
      %v4748 = vadd.f32 %v4740, %v4746
      %v4749 = vadd.f32 %v4741, %v4746
      %v4750 = vld [vmem:[%s1181] sm:$0xff]
      %v4751 = vld [vmem:[%s1181 + $0x8] sm:$0xff]
      %v4752 = vld [vmem:[%s1181 + $0x10] sm:$0xff]
      %v4753 = vld [vmem:[%s1181 + $0x18] sm:$0xff]
      %v4754 = vld [vmem:[%s1184] sm:$0x1]
      %v4756 = vlaneseq
      %v4757 = vshrl.u32 %v4756, 7
      %v4758 = vsub.s32 0, %v4757
      %v4759 = vrot.slane %v4754, %v4758
      %v4762 = vsel %vm1242, %v4748, 0
      %v4765 = vsel %vm1242, %v4749, 0
      %4767 = vmatprep.subr.mxu0 0.0
      %4768 = vmatpush1.msra.mxu0 %v4750
      %4769 = vmatprep.subr.mxu0 0.0
      %4770 = vmatpush1.msra.mxu0 %v4751
      %4771 = vmatprep.subr.mxu0 0.0
      %4772 = vmatpush1.msra.mxu0 %v4752
      %4773 = vmatprep.subr.mxu0 0.0
      %4774 = vmatpush1.msra.mxu0 %v4753
      %4775 = vmatprep.subr.mxu0 0.0
      %4776 = vmatpush1.msra.mxu0 0.0
      %4777 = vmatprep.subr.mxu0 0.0
      %4778 = vmatpush1.msra.mxu0 0.0
      %4779 = vmatprep.subr.mxu0 0.0
      %4780 = vmatpush1.msra.mxu0 0.0
      %4781 = vmatprep.subr.mxu0 0.0
      %4782 = vmatpush1.msra.mxu0 0.0
      %4783 = vmatprep.subr.mxu0 0.0
      %4784 = vmatpush1.msra.mxu0 0.0
      %4785 = vmatprep.subr.mxu0 0.0
      %4786 = vmatpush1.msra.mxu0 0.0
      %4787 = vmatprep.subr.mxu0 0.0
      %4788 = vmatpush1.msra.mxu0 0.0
      %4789 = vmatprep.subr.mxu0 0.0
      %4790 = vmatpush1.msra.mxu0 0.0
      %4791 = vmatprep.subr.mxu0 0.0
      %4792 = vmatpush1.msra.mxu0 0.0
      %4793 = vmatprep.subr.mxu0 0.0
      %4794 = vmatpush1.msra.mxu0 0.0
      %4795 = vmatprep.subr.mxu0 0.0
      %4796 = vmatpush1.msra.mxu0 0.0
      %4797 = vmatprep.subr.mxu0 0.0
      %4798 = vmatpush1.msra.mxu0 0.0
      %4799 = vmatprep.subr.mxu0 0.0
      %4800 = vmatpush1.msra.mxu0 0.0
      %4801 = vmatprep.subr.mxu0 0.0
      %4802 = vmatpush1.msra.mxu0 0.0
      %4803 = vmatprep.subr.mxu0 0.0
      %4804 = vmatpush1.msra.mxu0 0.0
      %4805 = vmatprep.subr.mxu0 0.0
      %4806 = vmatpush1.msra.mxu0 0.0
      %4807 = vmatprep.subr.mxu0 0.0
      %4808 = vmatpush1.msra.mxu0 0.0
      %4809 = vmatprep.subr.mxu0 0.0
      %4810 = vmatpush1.msra.mxu0 0.0
      %4811 = vmatprep.subr.mxu0 0.0
      %4812 = vmatpush1.msra.mxu0 0.0
      %4813 = vmatprep.subr.mxu0 0.0
      %4814 = vmatpush1.msra.mxu0 0.0
      %4815 = vmatprep.subr.mxu0 0.0
      %4816 = vmatpush1.msra.mxu0 0.0
      %4817 = vmatprep.subr.mxu0 0.0
      %4818 = vmatpush1.msra.mxu0 0.0
      %4819 = vmatprep.subr.mxu0 0.0
      %4820 = vmatpush1.msra.mxu0 0.0
      %4821 = vmatprep.subr.mxu0 0.0
      %4822 = vmatpush1.msra.mxu0 0.0
      %4823 = vmatprep.subr.mxu0 0.0
      %4824 = vmatpush1.msra.mxu0 0.0
      %4825 = vmatprep.subr.mxu0 0.0
      %4826 = vmatpush1.msra.mxu0 0.0
      %4827 = vmatprep.subr.mxu0 0.0
      %4828 = vmatpush1.msra.mxu0 0.0
      %4829 = vmatprep.subr.mxu0 0.0
      %4830 = vmatpush1.msra.mxu0 0.0
      %4831 = vmatprep.mubr.f32.mxu0 0.0
      %4832 = vmatmul.mubr.f32.gmra.mrb[0].mxu0 %v4762
      %v4833 = vpop.f32.mrb[0].mxu0
      %v4834 = vadd.f32 %v4759, %v4833
      %v4835 = vpop.f32.mrb[0].mxu0
      %4836 = vmatprep.mubr.f32.mxu0 0.0
      %4837 = vmatmul.mubr.f32.gmra.mrb[0].mxu0 %v4765
      %v4838 = vpop.f32.mrb[0].mxu0
      %v4839 = vadd.f32 %v4759, %v4838
      %v4840 = vpop.f32.mrb[0].mxu0
      %4841 = vdwg.mxu0
      %v4842 = vmax.f32 %v4834, 0.0
      %v4843 = vmax.f32 %v4839, 0.0
      %v4844 = vld [vmem:[%s1189] sm:$0xff]
      %v4845 = vld [vmem:[%s1189 + $0x8] sm:$0xff]
      %v4846 = vld [vmem:[%s1189 + $0x10] sm:$0xff]
      %v4847 = vld [vmem:[%s1189 + $0x18] sm:$0xff]
      %v4848 = vld [vmem:[%s1189 + $0x20] sm:$0xff]
      %v4849 = vld [vmem:[%s1189 + $0x28] sm:$0xff]
      %v4850 = vld [vmem:[%s1189 + $0x30] sm:$0xff]
      %v4851 = vld [vmem:[%s1189 + $0x38] sm:$0xff]
      %v4852 = vld [vmem:[%s1192] sm:$0x1]
      %v4854 = vlaneseq
      %v4855 = vshrl.u32 %v4854, 7
      %v4856 = vsub.s32 0, %v4855
      %v4857 = vrot.slane %v4852, %v4856
      %vm4859 = vcmask 523264
      %v4861 = vsel %vm4859, %v4842, 0
      %v4864 = vsel %vm4859, %v4843, 0
      %4866 = vmatprep.subr.mxu0 0.0
      %4867 = vmatpush1.msra.mxu0 %v4844
      %4868 = vmatprep.subr.mxu0 0.0
      %4869 = vmatpush1.msra.mxu0 %v4845
      %4870 = vmatprep.subr.mxu0 0.0
      %4871 = vmatpush1.msra.mxu0 %v4846
      %4872 = vmatprep.subr.mxu0 0.0
      %4873 = vmatpush1.msra.mxu0 %v4847
      %4874 = vmatprep.subr.mxu0 0.0
      %4875 = vmatpush1.msra.mxu0 %v4848
      %4876 = vmatprep.subr.mxu0 0.0
      %4877 = vmatpush1.msra.mxu0 %v4849
      %4878 = vmatprep.subr.mxu0 0.0
      %4879 = vmatpush1.msra.mxu0 %v4850
      %4880 = vmatprep.subr.mxu0 0.0
      %4881 = vmatpush1.msra.mxu0 %v4851
      %4882 = vmatprep.subr.mxu0 0.0
      %4883 = vmatpush1.msra.mxu0 0.0
      %4884 = vmatprep.subr.mxu0 0.0
      %4885 = vmatpush1.msra.mxu0 0.0
      %4886 = vmatprep.subr.mxu0 0.0
      %4887 = vmatpush1.msra.mxu0 0.0
      %4888 = vmatprep.subr.mxu0 0.0
      %4889 = vmatpush1.msra.mxu0 0.0
      %4890 = vmatprep.subr.mxu0 0.0
      %4891 = vmatpush1.msra.mxu0 0.0
      %4892 = vmatprep.subr.mxu0 0.0
      %4893 = vmatpush1.msra.mxu0 0.0
      %4894 = vmatprep.subr.mxu0 0.0
      %4895 = vmatpush1.msra.mxu0 0.0
      %4896 = vmatprep.subr.mxu0 0.0
      %4897 = vmatpush1.msra.mxu0 0.0
      %4898 = vmatprep.subr.mxu0 0.0
      %4899 = vmatpush1.msra.mxu0 0.0
      %4900 = vmatprep.subr.mxu0 0.0
      %4901 = vmatpush1.msra.mxu0 0.0
      %4902 = vmatprep.subr.mxu0 0.0
      %4903 = vmatpush1.msra.mxu0 0.0
      %4904 = vmatprep.subr.mxu0 0.0
      %4905 = vmatpush1.msra.mxu0 0.0
      %4906 = vmatprep.subr.mxu0 0.0
      %4907 = vmatpush1.msra.mxu0 0.0
      %4908 = vmatprep.subr.mxu0 0.0
      %4909 = vmatpush1.msra.mxu0 0.0
      %4910 = vmatprep.subr.mxu0 0.0
      %4911 = vmatpush1.msra.mxu0 0.0
      %4912 = vmatprep.subr.mxu0 0.0
      %4913 = vmatpush1.msra.mxu0 0.0
      %4914 = vmatprep.subr.mxu0 0.0
      %4915 = vmatpush1.msra.mxu0 0.0
      %4916 = vmatprep.subr.mxu0 0.0
      %4917 = vmatpush1.msra.mxu0 0.0
      %4918 = vmatprep.subr.mxu0 0.0
      %4919 = vmatpush1.msra.mxu0 0.0
      %4920 = vmatprep.subr.mxu0 0.0
      %4921 = vmatpush1.msra.mxu0 0.0
      %4922 = vmatprep.subr.mxu0 0.0
      %4923 = vmatpush1.msra.mxu0 0.0
      %4924 = vmatprep.subr.mxu0 0.0
      %4925 = vmatpush1.msra.mxu0 0.0
      %4926 = vmatprep.subr.mxu0 0.0
      %4927 = vmatpush1.msra.mxu0 0.0
      %4928 = vmatprep.subr.mxu0 0.0
      %4929 = vmatpush1.msra.mxu0 0.0
      %4930 = vmatprep.mubr.f32.mxu0 0.0
      %4931 = vmatmul.mubr.f32.gmra.mrb[0].mxu0 %v4861
      %v4932 = vpop.f32.mrb[0].mxu0
      %v4933 = vadd.f32 %v4857, %v4932
      %v4934 = vpop.f32.mrb[0].mxu0
      %4935 = vmatprep.mubr.f32.mxu0 0.0
      %4936 = vmatmul.mubr.f32.gmra.mrb[0].mxu0 %v4864
      %v4937 = vpop.f32.mrb[0].mxu0
      %v4938 = vadd.f32 %v4857, %v4937
      %v4939 = vpop.f32.mrb[0].mxu0
      %4940 = vdwg.mxu0
      %v4941 = vadd.f32 %v4748, %v4933
      %v4942 = vadd.f32 %v4749, %v4938
      %v4943 = vld [vmem:[%s1207] sm:$0x1]
      %v4944 = vld [vmem:[%s1210] sm:$0x1]
      %v4945 = vsel %vm1242, %v4941, 0.0
      %4946 = vadd.xlane.f32.xlu0 %v4945
      %v4947 = vpop.xlane.xlu0 %4946
      %v4948 = vsel %vm1242, %v4942, 0.0
      %4949 = vadd.xlane.f32.xlu0 %v4948
      %v4950 = vpop.xlane.xlu0 %4949
      %v4951 = vmul.f32 %v4947, %v2865
      %v4952 = vmul.f32 %v4950, %v2865
      %v4953 = vsub.f32 %v4941, %v4951
      %v4954 = vsub.f32 %v4942, %v4952
      %v4955 = vmul.f32 %v4953, %v4953
      %v4956 = vmul.f32 %v4954, %v4954
      %v4957 = vsel %vm1242, %v4955, 0.0
      %4958 = vadd.xlane.f32.xlu0 %v4957
      %v4959 = vpop.xlane.xlu0 %4958
      %v4960 = vsel %vm1242, %v4956, 0.0
      %4961 = vadd.xlane.f32.xlu0 %v4960
      %v4962 = vpop.xlane.xlu0 %4961
      %v4963 = vmul.f32 %v4959, %v2865
      %v4964 = vmul.f32 %v4962, %v2865
      %v4965 = vadd.f32 %v4963, 1e-05
      %v4966 = vadd.f32 %v4964, 1e-05
      %v4967 = vrsqrt.pop %v4965
      %v4968 = vrsqrt.pop %v4966
      %v4969 = vmul.f32 %v4953, %v4967
      %v4970 = vmul.f32 %v4954, %v4968
      %v4972 = vlaneseq
      %v4973 = vshrl.u32 %v4972, 7
      %v4974 = vsub.s32 0, %v4973
      %v4975 = vrot.slane %v4943, %v4974
      %v4977 = vmul.f32 %v4969, %v4975
      %v4978 = vmul.f32 %v4970, %v4975
      %v4980 = vlaneseq
      %v4981 = vshrl.u32 %v4980, 7
      %v4982 = vsub.s32 0, %v4981
      %v4983 = vrot.slane %v4944, %v4982
      %v4985 = vadd.f32 %v4977, %v4983
      %v4986 = vadd.f32 %v4978, %v4983
      %4987 = vst.msk [vmem:[#allocation2] sm:$0xff] %vm1242, %v4985
      %4988 = vst.msk [vmem:[#allocation2 + $0x8] sm:$0xff] %vm1242, %v4986
      %4989 = vst.msk [vmem:[%s1215] sm:$0xff] %vm1242, %v4985
      %4990 = vst.msk [vmem:[%s1215 + $0x8] sm:$0xff] %vm1242, %v4986
      %p4991 = scmp.lt.s32.totalorder %s39, 1
      %s4992 = scalar_select %p4991, %s39, 1
      %s4993 = smul.addr %s4992, 2
      %s4994 = smul.addr %s4993, 8
      %s4995 = scalar_lea.vmem %s28, %s4994
      // Predicated region
      $region137: #{transformer_decoder.1} parent=131 // pred_check
        %p4996 = pneg %p765
      $region138: #{transformer_decoder.1} parent=131 // pred_check_branch
        %4998 = sbr.rel (%p4996) target = $region140
      $region139: #{transformer_decoder.1} parent=131 // pred_region
        _
      $region140: #{transformer_decoder.1} parent=131 // pred_fallthru
        _
    $region132: #{transformer_decoder.1} parent=5 // pred_fallthru
      _
    %p4999 = scmp.le.s32.totalorder 2, %s34
    // Predicated region
    $region141: #{transformer_decoder.1} parent=5 // pred_check
      %p5000 = pneg %p4999
    $region142: #{transformer_decoder.1} parent=5 // pred_check_branch
      %5002 = sbr.rel (%p5000) target = $region144
    $region143: #{transformer_decoder.1} parent=5 // pred_region
      %s5003 = ssub.s32 %s34, 2
      // Predicated region
      $region145: #{transformer_decoder.1} parent=143 // pred_check
        %p5004 = pneg %p771
      $region146: #{transformer_decoder.1} parent=143 // pred_check_branch
        %5006 = sbr.rel (%p5004) target = $region148
      $region147: #{transformer_decoder.1} parent=143 // pred_region
        %p5007 = scmp.lt.s32.totalorder %s40, 1
        %s5008 = scalar_select %p5007, %s40, 1
        %s5009 = smul.addr %s5008, 2
        %s5010 = smul.addr %s5009, 8
        %s5011 = scalar_lea.vmem %s28, %s5010
      $region148: #{transformer_decoder.1} parent=143 // pred_fallthru
        _
    $region144: #{transformer_decoder.1} parent=5 // pred_fallthru
      _
  $region6: #{transformer_decoder.1} parent=0 // loop_footer
    %s38 = sadd.s32 1, %s34
  $region7: #{transformer_decoder.1} parent=0 // loop_footer_branch
    %33 = sbr.rel target = $region3
  $region8: #{transformer_decoder.1} parent=0 // loop_exit
    _

</llo_original>
